<compile_context>
chip_gen: v5e
topology: v5e:2x2
jax: 0.10.0
libtpu: 0.0.40
codegen_flags: <defaults>
</compile_context>

<pallas_src>
import functools

import jax
import jax.numpy as jnp
from jax.experimental import pallas as pl
from jax.experimental.pallas import tpu as pltpu

LN_EPS = 1e-5


# ----------------------------- kernel helpers -----------------------------

def _layernorm(x, g, b):
    mean = jnp.mean(x, axis=-1, keepdims=True)
    var = jnp.mean((x - mean) ** 2, axis=-1, keepdims=True)
    return (x - mean) * jax.lax.rsqrt(var + LN_EPS) * g + b


# ------------------------------ fused kernel ------------------------------
# Grid: (num_layers,) "arbitrary".  One encoder layer per grid step; the
# running activation slab x (M, D) persists in VMEM scratch across steps.

def encoder_layer_kernel(
        patches_ref, tmpl_ref, patch_w_ref, pre_g_ref, pre_b_ref,
        ln1g_ref, ln1b_ref, wq_ref, bq_ref, wk_ref, bk_ref, wv_ref, bv_ref,
        wo_ref, bo_ref, ln2g_ref, ln2b_ref, w1_ref, b1_ref, w2_ref, b2_ref,
        clsw_ref, clsb_ref,
        logits_ref, inter_ref,
        x_ref,
        *, num_heads, head_dim, batch, seq, seq_valid):
    f32, bf16 = jnp.float32, jnp.bfloat16
    B, S, H, hd = batch, seq, num_heads, head_dim
    M = B * S
    D = x_ref.shape[-1]
    l = pl.program_id(0)

    # ---- step 0: patch-embed matmul + cls/pos template + CLIP pre_layrnorm ----
    @pl.when(l == 0)
    def _():
        emb = jnp.dot(patches_ref[...], patch_w_ref[...],
                      preferred_element_type=f32)              # (M, D) bf16 x bf16
        tok = emb.reshape(B, S, D) + tmpl_ref[...]             # broadcast over batch
        # NOTE: rows >= seq_valid are zero padding; they flow through layernorm
        # (finite, rsqrt(eps)) but are masked out of attention and never read
        # by any valid output.
        x_ref[...] = _layernorm(tok.reshape(M, D), pre_g_ref[...], pre_b_ref[...])

    x = x_ref[...]

    # additive bias masking padded key positions (cheap, recomputed per layer)
    key_bias = jnp.where(
        jax.lax.broadcasted_iota(jnp.int32, (1, 1, S), 2) < seq_valid,
        0.0, -1e30).astype(f32)

    # ---- self-attention sub-block (pre-LN); full-width DxD projections ----
    h1 = _layernorm(x, ln1g_ref[0], ln1b_ref[0]).astype(bf16)
    q = jnp.dot(h1, wq_ref[0], preferred_element_type=f32) + bq_ref[0]  # scale folded
    k = jnp.dot(h1, wk_ref[0], preferred_element_type=f32) + bk_ref[0]
    v = jnp.dot(h1, wv_ref[0], preferred_element_type=f32) + bv_ref[0]
    q16, k16, v16 = q.astype(bf16), k.astype(bf16), v.astype(bf16)

    ctx_heads = []
    for h in range(H):                                        # static unroll
        sl = slice(h * hd, (h + 1) * hd)
        qh = q16[:, sl].reshape(B, S, hd)
        kh = k16[:, sl].reshape(B, S, hd)
        vh = v16[:, sl].reshape(B, S, hd)
        s = jnp.einsum('bqd,bkd->bqk', qh, kh,
                       preferred_element_type=f32) + key_bias
        m = jnp.max(s, axis=-1, keepdims=True)
        p = jnp.exp(s - m)
        a = p * pl.reciprocal(jnp.sum(p, axis=-1, keepdims=True), approx=False)
        ch = jnp.einsum('bqk,bkd->bqd', a.astype(bf16), vh,
                        preferred_element_type=f32)
        ctx_heads.append(ch.reshape(M, hd))
    ctx = jnp.concatenate(ctx_heads, axis=-1).astype(bf16)    # (M, D)
    attn = jnp.dot(ctx, wo_ref[0], preferred_element_type=f32) + bo_ref[0]
    x1 = x + attn                                             # residual (f32)

    # ---- MLP sub-block (pre-LN) ----
    h2 = _layernorm(x1, ln2g_ref[0], ln2b_ref[0])
    inter_ref[0] = h2.reshape(B, S, D)[:, 0, :]               # layer_norm2 hook @ cls
    z = jnp.dot(h2.astype(bf16), w1_ref[0], preferred_element_type=f32) + b1_ref[0]
    z = z * jax.nn.sigmoid(1.702 * z)                         # CLIP quick_gelu (f32)
    x2 = x1 + jnp.dot(z.astype(bf16), w2_ref[0], preferred_element_type=f32) + b2_ref[0]
    x_ref[...] = x2

    # ---- last step: classifier head on token 0 (lane-padded logits) ----
    @pl.when(l == pl.num_programs(0) - 1)
    def _():
        feat0 = x2.reshape(B, S, D)[:, 0, :].astype(bf16)
        logits_ref[...] = (jnp.dot(feat0, clsw_ref[...], preferred_element_type=f32)
                           + clsb_ref[...])


# ------------------------------- model glue -------------------------------

def extract_patches(x, patch_size):
    """NCHW image -> (B, num_patches, C*P*P), matching a stride-P conv."""
    B, C, Hh, Ww = x.shape
    P = patch_size
    Hp, Wp = Hh // P, Ww // P
    x = x.reshape(B, C, Hp, P, Wp, P)
    x = x.transpose(0, 2, 4, 1, 3, 5)                   # B, Hp, Wp, C, P, P
    return x.reshape(B, Hp * Wp, C * P * P)


def init_params(key, *, in_ch, image_size, patch_size, hidden, mlp, layers,
                num_classes):
    num_patches = (image_size // patch_size) ** 2
    keys = jax.random.split(key, 8 + layers)
    s = 0.02
    f32 = jnp.float32
    params = {
        "patch_w": s * jax.random.normal(
            keys[0], (in_ch * patch_size * patch_size, hidden), f32),
        "cls": s * jax.random.normal(keys[1], (hidden,), f32),
        "pos": s * jax.random.normal(keys[2], (num_patches + 1, hidden), f32),
        "pre_g": jnp.ones((hidden,), f32),
        "pre_b": jnp.zeros((hidden,), f32),
        "cls_w": s * jax.random.normal(keys[3], (hidden, num_classes), f32),
        "cls_b": jnp.zeros((num_classes,), f32),
        "layers": [],
    }
    for l in range(layers):
        k = jax.random.split(keys[8 + l], 6)
        params["layers"].append({
            "ln1_g": jnp.ones((hidden,), f32), "ln1_b": jnp.zeros((hidden,), f32),
            "wq": s * jax.random.normal(k[0], (hidden, hidden), f32),
            "bq": jnp.zeros((hidden,), f32),
            "wk": s * jax.random.normal(k[1], (hidden, hidden), f32),
            "bk": jnp.zeros((hidden,), f32),
            "wv": s * jax.random.normal(k[2], (hidden, hidden), f32),
            "bv": jnp.zeros((hidden,), f32),
            "wo": s * jax.random.normal(k[3], (hidden, hidden), f32),
            "bo": jnp.zeros((hidden,), f32),
            "ln2_g": jnp.ones((hidden,), f32), "ln2_b": jnp.zeros((hidden,), f32),
            "w1": s * jax.random.normal(k[4], (hidden, mlp), f32),
            "b1": jnp.zeros((mlp,), f32),
            "w2": s * jax.random.normal(k[5], (mlp, hidden), f32),
            "b2": jnp.zeros((hidden,), f32),
        })
    return params


def pack_params(params, *, num_heads):
    """One-time weight repack: stack per-layer weights, fold 1/sqrt(hd) into
    q, cast matmul weights to bf16, lane-pad the classifier. Done at init so
    the per-call path never touches weights with XLA ops."""
    f32, bf16 = jnp.float32, jnp.bfloat16
    D = params["patch_w"].shape[1]
    L = len(params["layers"])
    F = params["layers"][0]["w1"].shape[1]
    head_dim = D // num_heads
    scale = 1.0 / (head_dim ** 0.5)
    seq_valid = params["pos"].shape[0]
    S = ((seq_valid + 7) // 8) * 8
    NC = params["cls_b"].shape[0]
    NCP = ((NC + 127) // 128) * 128

    stack = lambda n: jnp.stack([lp[n] for lp in params["layers"]])

    tmpl = jnp.zeros((S, D), f32).at[:seq_valid, :].set(params["pos"])
    tmpl = tmpl.at[0, :].add(params["cls"])

    packed = {
        "patch_w": params["patch_w"].astype(bf16),
        "tmpl": tmpl,
        "pre_g": params["pre_g"].reshape(1, D),
        "pre_b": params["pre_b"].reshape(1, D),
        "ln1g": stack("ln1_g").reshape(L, 1, D),
        "ln1b": stack("ln1_b").reshape(L, 1, D),
        "wq": (stack("wq") * scale).astype(bf16),          # (L, D, D)
        "bq": (stack("bq") * scale).reshape(L, 1, D),
        "wk": stack("wk").astype(bf16),
        "bk": stack("bk").reshape(L, 1, D),
        "wv": stack("wv").astype(bf16),
        "bv": stack("bv").reshape(L, 1, D),
        "wo": stack("wo").astype(bf16),
        "bo": stack("bo").reshape(L, 1, D),
        "ln2g": stack("ln2_g").reshape(L, 1, D),
        "ln2b": stack("ln2_b").reshape(L, 1, D),
        "w1": stack("w1").astype(bf16),                     # (L, D, F)
        "b1": stack("b1").reshape(L, 1, F),
        "w2": stack("w2").astype(bf16),                     # (L, F, D)
        "b2": stack("b2").reshape(L, 1, D),
        "clsw": jnp.zeros((D, NCP), f32).at[:, :NC].set(params["cls_w"]).astype(bf16),
        "clsb": jnp.zeros((1, NCP), f32).at[0, :NC].set(params["cls_b"]),
    }
    meta = dict(num_heads=num_heads, head_dim=head_dim, num_layers=L,
                seq=S, seq_valid=seq_valid, num_classes=NC)
    return packed, meta


_PER_LAYER = ("ln1g", "ln1b", "wq", "bq", "wk", "bk", "wv", "bv",
              "wo", "bo", "ln2g", "ln2b", "w1", "b1", "w2", "b2")


def _resident_spec():
    # whole array resident in VMEM, not pipelined (no double buffering)
    return pl.BlockSpec(memory_space=pltpu.MemorySpace.VMEM)


def _layer_spec(arr):
    nd = arr.ndim
    return pl.BlockSpec((1,) + tuple(arr.shape[1:]),
                        lambda l, _n=nd: (l,) + (0,) * (_n - 1))


def model_forward(x, packed, *, patch_size, num_heads, head_dim, num_layers,
                  seq, seq_valid, num_classes, return_features=False):
    f32, bf16 = jnp.float32, jnp.bfloat16
    B = x.shape[0]
    CPP, D = packed["patch_w"].shape
    NCP = packed["clsw"].shape[1]
    L, S = num_layers, seq
    M = B * S

    # --- patchify + pad sequence (row 0 reserved for cls token) ---
    patches = extract_patches(x, patch_size)             # (B, Np, C*P*P)
    Np = patches.shape[1]
    patches_pad = jnp.zeros((B, S, CPP), bf16).at[:, 1:1 + Np, :].set(
        patches.astype(bf16))
    patches_flat = patches_pad.reshape(M, CPP)

    kernel = functools.partial(
        encoder_layer_kernel, num_heads=num_heads, head_dim=head_dim,
        batch=B, seq=S, seq_valid=seq_valid)

    per_layer = [packed[n] for n in _PER_LAYER]
    inputs = ([patches_flat, packed["tmpl"], packed["patch_w"],
               packed["pre_g"], packed["pre_b"]]
              + per_layer
              + [packed["clsw"], packed["clsb"]])
    in_specs = ([_resident_spec() for _ in range(5)]
                + [_layer_spec(a) for a in per_layer]
                + [_resident_spec(), _resident_spec()])

    logits_pad, inter = pl.pallas_call(
        kernel,
        out_shape=(jax.ShapeDtypeStruct((B, NCP), f32),
                   jax.ShapeDtypeStruct((L, B, D), f32)),
        grid=(L,),
        in_specs=in_specs,
        out_specs=(pl.BlockSpec((B, NCP), lambda l: (0, 0)),
                   pl.BlockSpec((1, B, D), lambda l: (l, 0, 0))),
        scratch_shapes=[pltpu.VMEM((M, D), f32)],         # activations across layers
        compiler_params=pltpu.CompilerParams(
            dimension_semantics=("arbitrary",),
            vmem_limit_bytes=32 * 1024 * 1024),
    )(*inputs)

    logits = logits_pad[:, :num_classes]
    if return_features:
        # torch.stack(hook outputs, dim=2)[:, 0, :, :] -> (B, L, D)
        return logits, jnp.transpose(inter, (1, 0, 2))
    return logits


# ---------------------------------- main -----------------------------------

if __name__ == "__main__":
    IN_CH, IMG, PATCH = 3, 32, 16
    HIDDEN, MLP, LAYERS, HEADS, NUM_CLASSES = 128, 256, 2, 4, 10

    key = jax.random.PRNGKey(0)
    pkey, xkey = jax.random.split(key)
    params = init_params(pkey, in_ch=IN_CH, image_size=IMG, patch_size=PATCH,
                         hidden=HIDDEN, mlp=MLP, layers=LAYERS,
                         num_classes=NUM_CLASSES)
    packed, meta = pack_params(params, num_heads=HEADS)   # hoisted: done ONCE
    x = jax.random.normal(xkey, (2, IN_CH, IMG, IMG), jnp.float32)

    fwd = jax.jit(functools.partial(model_forward, patch_size=PATCH,
                                    return_features=True, **meta))
    logits, feats = fwd(x, packed)
    jax.block_until_ready((logits, feats))

    assert logits.shape == (2, NUM_CLASSES)
    assert feats.shape == (2, LAYERS, HIDDEN)
    assert bool(jnp.all(jnp.isfinite(logits))) and bool(jnp.all(jnp.isfinite(feats)))
    print("KERNEL_OK")
</pallas_src>

<mosaic_0001>
module attributes {stable_mosaic.version = 11 : i64} {
  func.func @encoder_layer_kernel(%arg0: i32, %arg1: memref<16x768xbf16, #tpu.memory_space<vmem>>, %arg2: memref<8x128xf32, #tpu.memory_space<vmem>>, %arg3: memref<768x128xbf16, #tpu.memory_space<vmem>>, %arg4: memref<1x128xf32, #tpu.memory_space<vmem>>, %arg5: memref<1x128xf32, #tpu.memory_space<vmem>>, %arg6: memref<1x1x128xf32, #tpu.memory_space<vmem>>, %arg7: memref<1x1x128xf32, #tpu.memory_space<vmem>>, %arg8: memref<1x128x128xbf16, #tpu.memory_space<vmem>>, %arg9: memref<1x1x128xf32, #tpu.memory_space<vmem>>, %arg10: memref<1x128x128xbf16, #tpu.memory_space<vmem>>, %arg11: memref<1x1x128xf32, #tpu.memory_space<vmem>>, %arg12: memref<1x128x128xbf16, #tpu.memory_space<vmem>>, %arg13: memref<1x1x128xf32, #tpu.memory_space<vmem>>, %arg14: memref<1x128x128xbf16, #tpu.memory_space<vmem>>, %arg15: memref<1x1x128xf32, #tpu.memory_space<vmem>>, %arg16: memref<1x1x128xf32, #tpu.memory_space<vmem>>, %arg17: memref<1x1x128xf32, #tpu.memory_space<vmem>>, %arg18: memref<1x128x256xbf16, #tpu.memory_space<vmem>>, %arg19: memref<1x1x256xf32, #tpu.memory_space<vmem>>, %arg20: memref<1x256x128xbf16, #tpu.memory_space<vmem>>, %arg21: memref<1x1x128xf32, #tpu.memory_space<vmem>>, %arg22: memref<128x128xbf16, #tpu.memory_space<vmem>>, %arg23: memref<1x128xf32, #tpu.memory_space<vmem>>, %arg24: memref<2x128xf32, #tpu.memory_space<vmem>>, %arg25: memref<1x2x128xf32, #tpu.memory_space<vmem>>, %arg26: memref<16x128xf32, #tpu.memory_space<vmem>>) attributes {dimension_semantics = [#tpu.dimension_semantics<arbitrary>], iteration_bounds = array<i64: 2>, scalar_prefetch = 0 : i64, scratch_operands = 1 : i64, tpu.core_type = #tpu.core_type<tc>, window_params = [{pipeline_mode = #tpu.pipeline_mode<synchronous>, transform_indices = @transform_0, window_bounds = array<i64: 16, 768>}, {pipeline_mode = #tpu.pipeline_mode<synchronous>, transform_indices = @transform_1, window_bounds = array<i64: 8, 128>}, {pipeline_mode = #tpu.pipeline_mode<synchronous>, transform_indices = @transform_2, window_bounds = array<i64: 768, 128>}, {pipeline_mode = #tpu.pipeline_mode<synchronous>, transform_indices = @transform_3, window_bounds = array<i64: 1, 128>}, {pipeline_mode = #tpu.pipeline_mode<synchronous>, transform_indices = @transform_4, window_bounds = array<i64: 1, 128>}, {transform_indices = @transform_5, window_bounds = array<i64: 1, 1, 128>}, {transform_indices = @transform_6, window_bounds = array<i64: 1, 1, 128>}, {transform_indices = @transform_7, window_bounds = array<i64: 1, 128, 128>}, {transform_indices = @transform_8, window_bounds = array<i64: 1, 1, 128>}, {transform_indices = @transform_9, window_bounds = array<i64: 1, 128, 128>}, {transform_indices = @transform_10, window_bounds = array<i64: 1, 1, 128>}, {transform_indices = @transform_11, window_bounds = array<i64: 1, 128, 128>}, {transform_indices = @transform_12, window_bounds = array<i64: 1, 1, 128>}, {transform_indices = @transform_13, window_bounds = array<i64: 1, 128, 128>}, {transform_indices = @transform_14, window_bounds = array<i64: 1, 1, 128>}, {transform_indices = @transform_15, window_bounds = array<i64: 1, 1, 128>}, {transform_indices = @transform_16, window_bounds = array<i64: 1, 1, 128>}, {transform_indices = @transform_17, window_bounds = array<i64: 1, 128, 256>}, {transform_indices = @transform_18, window_bounds = array<i64: 1, 1, 256>}, {transform_indices = @transform_19, window_bounds = array<i64: 1, 256, 128>}, {transform_indices = @transform_20, window_bounds = array<i64: 1, 1, 128>}, {pipeline_mode = #tpu.pipeline_mode<synchronous>, transform_indices = @transform_21, window_bounds = array<i64: 128, 128>}, {pipeline_mode = #tpu.pipeline_mode<synchronous>, transform_indices = @transform_22, window_bounds = array<i64: 1, 128>}, {pipeline_mode = #tpu.pipeline_mode<synchronous>, transform_indices = @transform_23, window_bounds = array<i64: 2, 128>}, {transform_indices = @transform_24, window_bounds = array<i64: 1, 2, 128>}]} {
    %c0_i32 = arith.constant 0 : i32
    %0 = arith.cmpi eq, %arg0, %c0_i32 : i32
    %1 = arith.extui %0 : i1 to i32
    %c0_i32_0 = arith.constant 0 : i32
    %2 = arith.cmpi ne, %1, %c0_i32_0 : i32
    scf.if %2 {
      %c0_91 = arith.constant 0 : index
      %c0_92 = arith.constant 0 : index
      %220 = vector.load %arg1[%c0_91, %c0_92] : memref<16x768xbf16, #tpu.memory_space<vmem>>, vector<16x768xbf16>
      %c0_93 = arith.constant 0 : index
      %c0_94 = arith.constant 0 : index
      %221 = vector.load %arg3[%c0_93, %c0_94] : memref<768x128xbf16, #tpu.memory_space<vmem>>, vector<768x128xbf16>
      %cst_95 = arith.constant dense<0.000000e+00> : vector<16x128xf32>
      %222 = tpu.matmul %220, %221, %cst_95 {dimension_numbers = #tpu.dot_dimension_numbers<[1], [0], [0], [1], [0, 0, 1, 1], [], []>} : vector<16x768xbf16>, vector<768x128xbf16>, vector<16x128xf32> -> vector<16x128xf32>
      %223 = vector.shape_cast %222 : vector<16x128xf32> to vector<2x8x128xf32>
      %c0_96 = arith.constant 0 : index
      %c0_97 = arith.constant 0 : index
      %224 = vector.load %arg2[%c0_96, %c0_97] : memref<8x128xf32, #tpu.memory_space<vmem>>, vector<8x128xf32>
      %225 = vector.shape_cast %224 : vector<8x128xf32> to vector<1x8x128xf32>
      %226 = vector.broadcast %225 : vector<1x8x128xf32> to vector<2x8x128xf32>
      %227 = arith.addf %223, %226 : vector<2x8x128xf32>
      %228 = vector.shape_cast %227 : vector<2x8x128xf32> to vector<16x128xf32>
      %c0_98 = arith.constant 0 : index
      %c0_99 = arith.constant 0 : index
      %229 = vector.load %arg4[%c0_98, %c0_99] : memref<1x128xf32, #tpu.memory_space<vmem>>, vector<1x128xf32>
      %c0_100 = arith.constant 0 : index
      %c0_101 = arith.constant 0 : index
      %230 = vector.load %arg5[%c0_100, %c0_101] : memref<1x128xf32, #tpu.memory_space<vmem>>, vector<1x128xf32>
      %cst_102 = arith.constant dense<0.000000e+00> : vector<16xf32>
      %231 = vector.multi_reduction <add>, %228, %cst_102 [1] : vector<16x128xf32> to vector<16xf32>
      %232 = vector.shape_cast %231 : vector<16xf32> to vector<16x1xf32>
      %cst_103 = arith.constant 1.280000e+02 : f32
      %233 = vector.broadcast %cst_103 : f32 to vector<16x1xf32>
      %234 = arith.divf %232, %233 : vector<16x1xf32>
      %235 = vector.broadcast %234 : vector<16x1xf32> to vector<16x128xf32>
      %236 = arith.subf %228, %235 : vector<16x128xf32>
      %237 = arith.mulf %236, %236 : vector<16x128xf32>
      %cst_104 = arith.constant dense<0.000000e+00> : vector<16xf32>
      %238 = vector.multi_reduction <add>, %237, %cst_104 [1] : vector<16x128xf32> to vector<16xf32>
      %239 = vector.shape_cast %238 : vector<16xf32> to vector<16x1xf32>
      %cst_105 = arith.constant 1.280000e+02 : f32
      %240 = vector.broadcast %cst_105 : f32 to vector<16x1xf32>
      %241 = arith.divf %239, %240 : vector<16x1xf32>
      %242 = vector.broadcast %234 : vector<16x1xf32> to vector<16x128xf32>
      %243 = arith.subf %228, %242 : vector<16x128xf32>
      %cst_106 = arith.constant 9.99999974E-6 : f32
      %244 = vector.broadcast %cst_106 : f32 to vector<16x1xf32>
      %245 = arith.addf %241, %244 : vector<16x1xf32>
      %246 = math.rsqrt %245 : vector<16x1xf32>
      %247 = vector.broadcast %246 : vector<16x1xf32> to vector<16x128xf32>
      %248 = arith.mulf %243, %247 : vector<16x128xf32>
      %249 = vector.broadcast %229 : vector<1x128xf32> to vector<16x128xf32>
      %250 = arith.mulf %248, %249 : vector<16x128xf32>
      %251 = vector.broadcast %230 : vector<1x128xf32> to vector<16x128xf32>
      %252 = arith.addf %250, %251 : vector<16x128xf32>
      %c0_107 = arith.constant 0 : index
      %c0_108 = arith.constant 0 : index
      %253 = vector.load %arg26[%c0_107, %c0_108] : memref<16x128xf32, #tpu.memory_space<vmem>>, vector<16x128xf32>
      tpu.vector_store %arg26[%c0_107, %c0_108], %252 {strides = array<i32>} : memref<16x128xf32, #tpu.memory_space<vmem>>, vector<16x128xf32>,
    } else {
    }
    %c0 = arith.constant 0 : index
    %c0_1 = arith.constant 0 : index
    %3 = vector.load %arg26[%c0, %c0_1] : memref<16x128xf32, #tpu.memory_space<vmem>>, vector<16x128xf32>
    %4 = tpu.iota {dimensions = array<i32: 2>} : vector<1x1x8xi32>
    %c5_i32 = arith.constant 5 : i32
    %5 = vector.broadcast %c5_i32 : i32 to vector<1x1x8xi32>
    %6 = arith.cmpi slt, %4, %5 : vector<1x1x8xi32>
    %cst = arith.constant 0.000000e+00 : f32
    %cst_2 = arith.constant -1.000000e+30 : f32
    %7 = vector.broadcast %cst : f32 to vector<1x1x8xf32>
    %8 = vector.broadcast %cst_2 : f32 to vector<1x1x8xf32>
    %9 = arith.select %6, %7, %8 : vector<1x1x8xi1>, vector<1x1x8xf32>
    %c0_3 = arith.constant 0 : index
    %c0_4 = arith.constant 0 : index
    %c0_5 = arith.constant 0 : index
    %10 = vector.load %arg6[%c0_3, %c0_4, %c0_5] : memref<1x1x128xf32, #tpu.memory_space<vmem>>, vector<1x1x128xf32>
    %11 = vector.shape_cast %10 : vector<1x1x128xf32> to vector<1x128xf32>
    %c0_6 = arith.constant 0 : index
    %c0_7 = arith.constant 0 : index
    %c0_8 = arith.constant 0 : index
    %12 = vector.load %arg7[%c0_6, %c0_7, %c0_8] : memref<1x1x128xf32, #tpu.memory_space<vmem>>, vector<1x1x128xf32>
    %13 = vector.shape_cast %12 : vector<1x1x128xf32> to vector<1x128xf32>
    %cst_9 = arith.constant dense<0.000000e+00> : vector<16xf32>
    %14 = vector.multi_reduction <add>, %3, %cst_9 [1] : vector<16x128xf32> to vector<16xf32>
    %15 = vector.shape_cast %14 : vector<16xf32> to vector<16x1xf32>
    %cst_10 = arith.constant 1.280000e+02 : f32
    %16 = vector.broadcast %cst_10 : f32 to vector<16x1xf32>
    %17 = arith.divf %15, %16 : vector<16x1xf32>
    %18 = vector.broadcast %17 : vector<16x1xf32> to vector<16x128xf32>
    %19 = arith.subf %3, %18 : vector<16x128xf32>
    %20 = arith.mulf %19, %19 : vector<16x128xf32>
    %cst_11 = arith.constant dense<0.000000e+00> : vector<16xf32>
    %21 = vector.multi_reduction <add>, %20, %cst_11 [1] : vector<16x128xf32> to vector<16xf32>
    %22 = vector.shape_cast %21 : vector<16xf32> to vector<16x1xf32>
    %cst_12 = arith.constant 1.280000e+02 : f32
    %23 = vector.broadcast %cst_12 : f32 to vector<16x1xf32>
    %24 = arith.divf %22, %23 : vector<16x1xf32>
    %25 = vector.broadcast %17 : vector<16x1xf32> to vector<16x128xf32>
    %26 = arith.subf %3, %25 : vector<16x128xf32>
    %cst_13 = arith.constant 9.99999974E-6 : f32
    %27 = vector.broadcast %cst_13 : f32 to vector<16x1xf32>
    %28 = arith.addf %24, %27 : vector<16x1xf32>
    %29 = math.rsqrt %28 : vector<16x1xf32>
    %30 = vector.broadcast %29 : vector<16x1xf32> to vector<16x128xf32>
    %31 = arith.mulf %26, %30 : vector<16x128xf32>
    %32 = vector.broadcast %11 : vector<1x128xf32> to vector<16x128xf32>
    %33 = arith.mulf %31, %32 : vector<16x128xf32>
    %34 = vector.broadcast %13 : vector<1x128xf32> to vector<16x128xf32>
    %35 = arith.addf %33, %34 : vector<16x128xf32>
    %36 = arith.truncf %35 : vector<16x128xf32> to vector<16x128xbf16>
    %c0_14 = arith.constant 0 : index
    %c0_15 = arith.constant 0 : index
    %c0_16 = arith.constant 0 : index
    %37 = vector.load %arg8[%c0_14, %c0_15, %c0_16] : memref<1x128x128xbf16, #tpu.memory_space<vmem>>, vector<1x128x128xbf16>
    %38 = vector.shape_cast %37 : vector<1x128x128xbf16> to vector<128x128xbf16>
    %cst_17 = arith.constant dense<0.000000e+00> : vector<16x128xf32>
    %39 = tpu.matmul %36, %38, %cst_17 {dimension_numbers = #tpu.dot_dimension_numbers<[1], [0], [0], [1], [0, 0, 1, 1], [], []>} : vector<16x128xbf16>, vector<128x128xbf16>, vector<16x128xf32> -> vector<16x128xf32>
    %c0_18 = arith.constant 0 : index
    %c0_19 = arith.constant 0 : index
    %c0_20 = arith.constant 0 : index
    %40 = vector.load %arg9[%c0_18, %c0_19, %c0_20] : memref<1x1x128xf32, #tpu.memory_space<vmem>>, vector<1x1x128xf32>
    %41 = vector.shape_cast %40 : vector<1x1x128xf32> to vector<1x128xf32>
    %42 = vector.broadcast %41 : vector<1x128xf32> to vector<16x128xf32>
    %43 = arith.addf %39, %42 : vector<16x128xf32>
    %c0_21 = arith.constant 0 : index
    %c0_22 = arith.constant 0 : index
    %c0_23 = arith.constant 0 : index
    %44 = vector.load %arg10[%c0_21, %c0_22, %c0_23] : memref<1x128x128xbf16, #tpu.memory_space<vmem>>, vector<1x128x128xbf16>
    %45 = vector.shape_cast %44 : vector<1x128x128xbf16> to vector<128x128xbf16>
    %cst_24 = arith.constant dense<0.000000e+00> : vector<16x128xf32>
    %46 = tpu.matmul %36, %45, %cst_24 {dimension_numbers = #tpu.dot_dimension_numbers<[1], [0], [0], [1], [0, 0, 1, 1], [], []>} : vector<16x128xbf16>, vector<128x128xbf16>, vector<16x128xf32> -> vector<16x128xf32>
    %c0_25 = arith.constant 0 : index
    %c0_26 = arith.constant 0 : index
    %c0_27 = arith.constant 0 : index
    %47 = vector.load %arg11[%c0_25, %c0_26, %c0_27] : memref<1x1x128xf32, #tpu.memory_space<vmem>>, vector<1x1x128xf32>
    %48 = vector.shape_cast %47 : vector<1x1x128xf32> to vector<1x128xf32>
    %49 = vector.broadcast %48 : vector<1x128xf32> to vector<16x128xf32>
    %50 = arith.addf %46, %49 : vector<16x128xf32>
    %c0_28 = arith.constant 0 : index
    %c0_29 = arith.constant 0 : index
    %c0_30 = arith.constant 0 : index
    %51 = vector.load %arg12[%c0_28, %c0_29, %c0_30] : memref<1x128x128xbf16, #tpu.memory_space<vmem>>, vector<1x128x128xbf16>
    %52 = vector.shape_cast %51 : vector<1x128x128xbf16> to vector<128x128xbf16>
    %cst_31 = arith.constant dense<0.000000e+00> : vector<16x128xf32>
    %53 = tpu.matmul %36, %52, %cst_31 {dimension_numbers = #tpu.dot_dimension_numbers<[1], [0], [0], [1], [0, 0, 1, 1], [], []>} : vector<16x128xbf16>, vector<128x128xbf16>, vector<16x128xf32> -> vector<16x128xf32>
    %c0_32 = arith.constant 0 : index
    %c0_33 = arith.constant 0 : index
    %c0_34 = arith.constant 0 : index
    %54 = vector.load %arg13[%c0_32, %c0_33, %c0_34] : memref<1x1x128xf32, #tpu.memory_space<vmem>>, vector<1x1x128xf32>
    %55 = vector.shape_cast %54 : vector<1x1x128xf32> to vector<1x128xf32>
    %56 = vector.broadcast %55 : vector<1x128xf32> to vector<16x128xf32>
    %57 = arith.addf %53, %56 : vector<16x128xf32>
    %58 = arith.truncf %43 : vector<16x128xf32> to vector<16x128xbf16>
    %59 = arith.truncf %50 : vector<16x128xf32> to vector<16x128xbf16>
    %60 = arith.truncf %57 : vector<16x128xf32> to vector<16x128xbf16>
    %61 = vector.extract_strided_slice %58 {offsets = [0, 0], sizes = [16, 32], strides = [1, 1]} : vector<16x128xbf16> to vector<16x32xbf16>
    %62 = vector.shape_cast %61 : vector<16x32xbf16> to vector<2x8x32xbf16>
    %63 = vector.extract_strided_slice %59 {offsets = [0, 0], sizes = [16, 32], strides = [1, 1]} : vector<16x128xbf16> to vector<16x32xbf16>
    %64 = vector.shape_cast %63 : vector<16x32xbf16> to vector<2x8x32xbf16>
    %65 = vector.extract_strided_slice %60 {offsets = [0, 0], sizes = [16, 32], strides = [1, 1]} : vector<16x128xbf16> to vector<16x32xbf16>
    %66 = vector.shape_cast %65 : vector<16x32xbf16> to vector<2x8x32xbf16>
    "tpu.trace_start"() <{level = 10 : i32, message = "bqd,bkd->bqk"}> : () -> ()
    %cst_35 = arith.constant dense<0.000000e+00> : vector<2x8x8xf32>
    %67 = tpu.matmul %62, %64, %cst_35 {dimension_numbers = #tpu.dot_dimension_numbers<[2], [2], [1], [1], [0, 0, 0, 1, 1, 1], [0], [0]>} : vector<2x8x32xbf16>, vector<2x8x32xbf16>, vector<2x8x8xf32> -> vector<2x8x8xf32>
    "tpu.trace_stop"() : () -> ()
    %68 = vector.broadcast %9 : vector<1x1x8xf32> to vector<2x8x8xf32>
    %69 = arith.addf %67, %68 : vector<2x8x8xf32>
    %cst_36 = arith.constant dense<0xFF800000> : vector<2x8xf32>
    %70 = vector.multi_reduction <maximumf>, %69, %cst_36 [2] : vector<2x8x8xf32> to vector<2x8xf32>
    %71 = vector.shape_cast %70 : vector<2x8xf32> to vector<2x8x1xf32>
    %72 = vector.broadcast %71 : vector<2x8x1xf32> to vector<2x8x8xf32>
    %73 = arith.subf %69, %72 : vector<2x8x8xf32>
    %74 = math.exp %73 : vector<2x8x8xf32>
    %cst_37 = arith.constant dense<0.000000e+00> : vector<2x8xf32>
    %75 = vector.multi_reduction <add>, %74, %cst_37 [2] : vector<2x8x8xf32> to vector<2x8xf32>
    %76 = vector.shape_cast %75 : vector<2x8xf32> to vector<2x8x1xf32>
    %77 = tpu.reciprocal %76 : vector<2x8x1xf32> -> vector<2x8x1xf32>
    %78 = vector.broadcast %77 : vector<2x8x1xf32> to vector<2x8x8xf32>
    %79 = arith.mulf %74, %78 : vector<2x8x8xf32>
    %80 = arith.truncf %79 : vector<2x8x8xf32> to vector<2x8x8xbf16>
    "tpu.trace_start"() <{level = 10 : i32, message = "bqk,bkd->bqd"}> : () -> ()
    %cst_38 = arith.constant dense<0.000000e+00> : vector<2x8x32xf32>
    %81 = tpu.matmul %80, %66, %cst_38 {dimension_numbers = #tpu.dot_dimension_numbers<[2], [1], [1], [2], [0, 0, 0, 1, 1, 2], [0], [0]>} : vector<2x8x8xbf16>, vector<2x8x32xbf16>, vector<2x8x32xf32> -> vector<2x8x32xf32>
    "tpu.trace_stop"() : () -> ()
    %82 = vector.shape_cast %81 : vector<2x8x32xf32> to vector<16x32xf32>
    %83 = vector.extract_strided_slice %58 {offsets = [0, 32], sizes = [16, 32], strides = [1, 1]} : vector<16x128xbf16> to vector<16x32xbf16>
    %84 = vector.shape_cast %83 : vector<16x32xbf16> to vector<2x8x32xbf16>
    %85 = vector.extract_strided_slice %59 {offsets = [0, 32], sizes = [16, 32], strides = [1, 1]} : vector<16x128xbf16> to vector<16x32xbf16>
    %86 = vector.shape_cast %85 : vector<16x32xbf16> to vector<2x8x32xbf16>
    %87 = vector.extract_strided_slice %60 {offsets = [0, 32], sizes = [16, 32], strides = [1, 1]} : vector<16x128xbf16> to vector<16x32xbf16>
    %88 = vector.shape_cast %87 : vector<16x32xbf16> to vector<2x8x32xbf16>
    "tpu.trace_start"() <{level = 10 : i32, message = "bqd,bkd->bqk"}> : () -> ()
    %cst_39 = arith.constant dense<0.000000e+00> : vector<2x8x8xf32>
    %89 = tpu.matmul %84, %86, %cst_39 {dimension_numbers = #tpu.dot_dimension_numbers<[2], [2], [1], [1], [0, 0, 0, 1, 1, 1], [0], [0]>} : vector<2x8x32xbf16>, vector<2x8x32xbf16>, vector<2x8x8xf32> -> vector<2x8x8xf32>
    "tpu.trace_stop"() : () -> ()
    %90 = vector.broadcast %9 : vector<1x1x8xf32> to vector<2x8x8xf32>
    %91 = arith.addf %89, %90 : vector<2x8x8xf32>
    %cst_40 = arith.constant dense<0xFF800000> : vector<2x8xf32>
    %92 = vector.multi_reduction <maximumf>, %91, %cst_40 [2] : vector<2x8x8xf32> to vector<2x8xf32>
    %93 = vector.shape_cast %92 : vector<2x8xf32> to vector<2x8x1xf32>
    %94 = vector.broadcast %93 : vector<2x8x1xf32> to vector<2x8x8xf32>
    %95 = arith.subf %91, %94 : vector<2x8x8xf32>
    %96 = math.exp %95 : vector<2x8x8xf32>
    %cst_41 = arith.constant dense<0.000000e+00> : vector<2x8xf32>
    %97 = vector.multi_reduction <add>, %96, %cst_41 [2] : vector<2x8x8xf32> to vector<2x8xf32>
    %98 = vector.shape_cast %97 : vector<2x8xf32> to vector<2x8x1xf32>
    %99 = tpu.reciprocal %98 : vector<2x8x1xf32> -> vector<2x8x1xf32>
    %100 = vector.broadcast %99 : vector<2x8x1xf32> to vector<2x8x8xf32>
    %101 = arith.mulf %96, %100 : vector<2x8x8xf32>
    %102 = arith.truncf %101 : vector<2x8x8xf32> to vector<2x8x8xbf16>
    "tpu.trace_start"() <{level = 10 : i32, message = "bqk,bkd->bqd"}> : () -> ()
    %cst_42 = arith.constant dense<0.000000e+00> : vector<2x8x32xf32>
    %103 = tpu.matmul %102, %88, %cst_42 {dimension_numbers = #tpu.dot_dimension_numbers<[2], [1], [1], [2], [0, 0, 0, 1, 1, 2], [0], [0]>} : vector<2x8x8xbf16>, vector<2x8x32xbf16>, vector<2x8x32xf32> -> vector<2x8x32xf32>
    "tpu.trace_stop"() : () -> ()
    %104 = vector.shape_cast %103 : vector<2x8x32xf32> to vector<16x32xf32>
    %105 = vector.extract_strided_slice %58 {offsets = [0, 64], sizes = [16, 32], strides = [1, 1]} : vector<16x128xbf16> to vector<16x32xbf16>
    %106 = vector.shape_cast %105 : vector<16x32xbf16> to vector<2x8x32xbf16>
    %107 = vector.extract_strided_slice %59 {offsets = [0, 64], sizes = [16, 32], strides = [1, 1]} : vector<16x128xbf16> to vector<16x32xbf16>
    %108 = vector.shape_cast %107 : vector<16x32xbf16> to vector<2x8x32xbf16>
    %109 = vector.extract_strided_slice %60 {offsets = [0, 64], sizes = [16, 32], strides = [1, 1]} : vector<16x128xbf16> to vector<16x32xbf16>
    %110 = vector.shape_cast %109 : vector<16x32xbf16> to vector<2x8x32xbf16>
    "tpu.trace_start"() <{level = 10 : i32, message = "bqd,bkd->bqk"}> : () -> ()
    %cst_43 = arith.constant dense<0.000000e+00> : vector<2x8x8xf32>
    %111 = tpu.matmul %106, %108, %cst_43 {dimension_numbers = #tpu.dot_dimension_numbers<[2], [2], [1], [1], [0, 0, 0, 1, 1, 1], [0], [0]>} : vector<2x8x32xbf16>, vector<2x8x32xbf16>, vector<2x8x8xf32> -> vector<2x8x8xf32>
    "tpu.trace_stop"() : () -> ()
    %112 = vector.broadcast %9 : vector<1x1x8xf32> to vector<2x8x8xf32>
    %113 = arith.addf %111, %112 : vector<2x8x8xf32>
    %cst_44 = arith.constant dense<0xFF800000> : vector<2x8xf32>
    %114 = vector.multi_reduction <maximumf>, %113, %cst_44 [2] : vector<2x8x8xf32> to vector<2x8xf32>
    %115 = vector.shape_cast %114 : vector<2x8xf32> to vector<2x8x1xf32>
    %116 = vector.broadcast %115 : vector<2x8x1xf32> to vector<2x8x8xf32>
    %117 = arith.subf %113, %116 : vector<2x8x8xf32>
    %118 = math.exp %117 : vector<2x8x8xf32>
    %cst_45 = arith.constant dense<0.000000e+00> : vector<2x8xf32>
    %119 = vector.multi_reduction <add>, %118, %cst_45 [2] : vector<2x8x8xf32> to vector<2x8xf32>
    %120 = vector.shape_cast %119 : vector<2x8xf32> to vector<2x8x1xf32>
    %121 = tpu.reciprocal %120 : vector<2x8x1xf32> -> vector<2x8x1xf32>
    %122 = vector.broadcast %121 : vector<2x8x1xf32> to vector<2x8x8xf32>
    %123 = arith.mulf %118, %122 : vector<2x8x8xf32>
    %124 = arith.truncf %123 : vector<2x8x8xf32> to vector<2x8x8xbf16>
    "tpu.trace_start"() <{level = 10 : i32, message = "bqk,bkd->bqd"}> : () -> ()
    %cst_46 = arith.constant dense<0.000000e+00> : vector<2x8x32xf32>
    %125 = tpu.matmul %124, %110, %cst_46 {dimension_numbers = #tpu.dot_dimension_numbers<[2], [1], [1], [2], [0, 0, 0, 1, 1, 2], [0], [0]>} : vector<2x8x8xbf16>, vector<2x8x32xbf16>, vector<2x8x32xf32> -> vector<2x8x32xf32>
    "tpu.trace_stop"() : () -> ()
    %126 = vector.shape_cast %125 : vector<2x8x32xf32> to vector<16x32xf32>
    %127 = vector.extract_strided_slice %58 {offsets = [0, 96], sizes = [16, 32], strides = [1, 1]} : vector<16x128xbf16> to vector<16x32xbf16>
    %128 = vector.shape_cast %127 : vector<16x32xbf16> to vector<2x8x32xbf16>
    %129 = vector.extract_strided_slice %59 {offsets = [0, 96], sizes = [16, 32], strides = [1, 1]} : vector<16x128xbf16> to vector<16x32xbf16>
    %130 = vector.shape_cast %129 : vector<16x32xbf16> to vector<2x8x32xbf16>
    %131 = vector.extract_strided_slice %60 {offsets = [0, 96], sizes = [16, 32], strides = [1, 1]} : vector<16x128xbf16> to vector<16x32xbf16>
    %132 = vector.shape_cast %131 : vector<16x32xbf16> to vector<2x8x32xbf16>
    "tpu.trace_start"() <{level = 10 : i32, message = "bqd,bkd->bqk"}> : () -> ()
    %cst_47 = arith.constant dense<0.000000e+00> : vector<2x8x8xf32>
    %133 = tpu.matmul %128, %130, %cst_47 {dimension_numbers = #tpu.dot_dimension_numbers<[2], [2], [1], [1], [0, 0, 0, 1, 1, 1], [0], [0]>} : vector<2x8x32xbf16>, vector<2x8x32xbf16>, vector<2x8x8xf32> -> vector<2x8x8xf32>
    "tpu.trace_stop"() : () -> ()
    %134 = vector.broadcast %9 : vector<1x1x8xf32> to vector<2x8x8xf32>
    %135 = arith.addf %133, %134 : vector<2x8x8xf32>
    %cst_48 = arith.constant dense<0xFF800000> : vector<2x8xf32>
    %136 = vector.multi_reduction <maximumf>, %135, %cst_48 [2] : vector<2x8x8xf32> to vector<2x8xf32>
    %137 = vector.shape_cast %136 : vector<2x8xf32> to vector<2x8x1xf32>
    %138 = vector.broadcast %137 : vector<2x8x1xf32> to vector<2x8x8xf32>
    %139 = arith.subf %135, %138 : vector<2x8x8xf32>
    %140 = math.exp %139 : vector<2x8x8xf32>
    %cst_49 = arith.constant dense<0.000000e+00> : vector<2x8xf32>
    %141 = vector.multi_reduction <add>, %140, %cst_49 [2] : vector<2x8x8xf32> to vector<2x8xf32>
    %142 = vector.shape_cast %141 : vector<2x8xf32> to vector<2x8x1xf32>
    %143 = tpu.reciprocal %142 : vector<2x8x1xf32> -> vector<2x8x1xf32>
    %144 = vector.broadcast %143 : vector<2x8x1xf32> to vector<2x8x8xf32>
    %145 = arith.mulf %140, %144 : vector<2x8x8xf32>
    %146 = arith.truncf %145 : vector<2x8x8xf32> to vector<2x8x8xbf16>
    "tpu.trace_start"() <{level = 10 : i32, message = "bqk,bkd->bqd"}> : () -> ()
    %cst_50 = arith.constant dense<0.000000e+00> : vector<2x8x32xf32>
    %147 = tpu.matmul %146, %132, %cst_50 {dimension_numbers = #tpu.dot_dimension_numbers<[2], [1], [1], [2], [0, 0, 0, 1, 1, 2], [0], [0]>} : vector<2x8x8xbf16>, vector<2x8x32xbf16>, vector<2x8x32xf32> -> vector<2x8x32xf32>
    "tpu.trace_stop"() : () -> ()
    %148 = vector.shape_cast %147 : vector<2x8x32xf32> to vector<16x32xf32>
    %149 = tpu.concatenate %82, %104, %126, %148 in 1 : vector<16x32xf32>, vector<16x32xf32>, vector<16x32xf32>, vector<16x32xf32> -> vector<16x128xf32>
    %150 = arith.truncf %149 : vector<16x128xf32> to vector<16x128xbf16>
    %c0_51 = arith.constant 0 : index
    %c0_52 = arith.constant 0 : index
    %c0_53 = arith.constant 0 : index
    %151 = vector.load %arg14[%c0_51, %c0_52, %c0_53] : memref<1x128x128xbf16, #tpu.memory_space<vmem>>, vector<1x128x128xbf16>
    %152 = vector.shape_cast %151 : vector<1x128x128xbf16> to vector<128x128xbf16>
    %cst_54 = arith.constant dense<0.000000e+00> : vector<16x128xf32>
    %153 = tpu.matmul %150, %152, %cst_54 {dimension_numbers = #tpu.dot_dimension_numbers<[1], [0], [0], [1], [0, 0, 1, 1], [], []>} : vector<16x128xbf16>, vector<128x128xbf16>, vector<16x128xf32> -> vector<16x128xf32>
    %c0_55 = arith.constant 0 : index
    %c0_56 = arith.constant 0 : index
    %c0_57 = arith.constant 0 : index
    %154 = vector.load %arg15[%c0_55, %c0_56, %c0_57] : memref<1x1x128xf32, #tpu.memory_space<vmem>>, vector<1x1x128xf32>
    %155 = vector.shape_cast %154 : vector<1x1x128xf32> to vector<1x128xf32>
    %156 = vector.broadcast %155 : vector<1x128xf32> to vector<16x128xf32>
    %157 = arith.addf %153, %156 : vector<16x128xf32>
    %158 = arith.addf %3, %157 : vector<16x128xf32>
    %c0_58 = arith.constant 0 : index
    %c0_59 = arith.constant 0 : index
    %c0_60 = arith.constant 0 : index
    %159 = vector.load %arg16[%c0_58, %c0_59, %c0_60] : memref<1x1x128xf32, #tpu.memory_space<vmem>>, vector<1x1x128xf32>
    %160 = vector.shape_cast %159 : vector<1x1x128xf32> to vector<1x128xf32>
    %c0_61 = arith.constant 0 : index
    %c0_62 = arith.constant 0 : index
    %c0_63 = arith.constant 0 : index
    %161 = vector.load %arg17[%c0_61, %c0_62, %c0_63] : memref<1x1x128xf32, #tpu.memory_space<vmem>>, vector<1x1x128xf32>
    %162 = vector.shape_cast %161 : vector<1x1x128xf32> to vector<1x128xf32>
    %cst_64 = arith.constant dense<0.000000e+00> : vector<16xf32>
    %163 = vector.multi_reduction <add>, %158, %cst_64 [1] : vector<16x128xf32> to vector<16xf32>
    %164 = vector.shape_cast %163 : vector<16xf32> to vector<16x1xf32>
    %cst_65 = arith.constant 1.280000e+02 : f32
    %165 = vector.broadcast %cst_65 : f32 to vector<16x1xf32>
    %166 = arith.divf %164, %165 : vector<16x1xf32>
    %167 = vector.broadcast %166 : vector<16x1xf32> to vector<16x128xf32>
    %168 = arith.subf %158, %167 : vector<16x128xf32>
    %169 = arith.mulf %168, %168 : vector<16x128xf32>
    %cst_66 = arith.constant dense<0.000000e+00> : vector<16xf32>
    %170 = vector.multi_reduction <add>, %169, %cst_66 [1] : vector<16x128xf32> to vector<16xf32>
    %171 = vector.shape_cast %170 : vector<16xf32> to vector<16x1xf32>
    %cst_67 = arith.constant 1.280000e+02 : f32
    %172 = vector.broadcast %cst_67 : f32 to vector<16x1xf32>
    %173 = arith.divf %171, %172 : vector<16x1xf32>
    %174 = vector.broadcast %166 : vector<16x1xf32> to vector<16x128xf32>
    %175 = arith.subf %158, %174 : vector<16x128xf32>
    %cst_68 = arith.constant 9.99999974E-6 : f32
    %176 = vector.broadcast %cst_68 : f32 to vector<16x1xf32>
    %177 = arith.addf %173, %176 : vector<16x1xf32>
    %178 = math.rsqrt %177 : vector<16x1xf32>
    %179 = vector.broadcast %178 : vector<16x1xf32> to vector<16x128xf32>
    %180 = arith.mulf %175, %179 : vector<16x128xf32>
    %181 = vector.broadcast %160 : vector<1x128xf32> to vector<16x128xf32>
    %182 = arith.mulf %180, %181 : vector<16x128xf32>
    %183 = vector.broadcast %162 : vector<1x128xf32> to vector<16x128xf32>
    %184 = arith.addf %182, %183 : vector<16x128xf32>
    %185 = vector.shape_cast %184 : vector<16x128xf32> to vector<2x8x128xf32>
    %186 = vector.extract_strided_slice %185 {offsets = [0, 0, 0], sizes = [2, 1, 128], strides = [1, 1, 1]} : vector<2x8x128xf32> to vector<2x1x128xf32>
    %187 = vector.shape_cast %186 : vector<2x1x128xf32> to vector<2x128xf32>
    %c0_69 = arith.constant 0 : index
    %c0_70 = arith.constant 0 : index
    %c0_71 = arith.constant 0 : index
    %188 = vector.load %arg25[%c0_69, %c0_70, %c0_71] : memref<1x2x128xf32, #tpu.memory_space<vmem>>, vector<1x2x128xf32>
    %189 = vector.shape_cast %188 : vector<1x2x128xf32> to vector<2x128xf32>
    %190 = vector.shape_cast %187 : vector<2x128xf32> to vector<1x2x128xf32>
    tpu.vector_store %arg25[%c0_69, %c0_70, %c0_71], %190 {strides = array<i32>} : memref<1x2x128xf32, #tpu.memory_space<vmem>>, vector<1x2x128xf32>,
    %191 = arith.truncf %184 : vector<16x128xf32> to vector<16x128xbf16>
    %c0_72 = arith.constant 0 : index
    %c0_73 = arith.constant 0 : index
    %c0_74 = arith.constant 0 : index
    %192 = vector.load %arg18[%c0_72, %c0_73, %c0_74] : memref<1x128x256xbf16, #tpu.memory_space<vmem>>, vector<1x128x256xbf16>
    %193 = vector.shape_cast %192 : vector<1x128x256xbf16> to vector<128x256xbf16>
    %cst_75 = arith.constant dense<0.000000e+00> : vector<16x256xf32>
    %194 = tpu.matmul %191, %193, %cst_75 {dimension_numbers = #tpu.dot_dimension_numbers<[1], [0], [0], [1], [0, 0, 1, 1], [], []>} : vector<16x128xbf16>, vector<128x256xbf16>, vector<16x256xf32> -> vector<16x256xf32>
    %c0_76 = arith.constant 0 : index
    %c0_77 = arith.constant 0 : index
    %c0_78 = arith.constant 0 : index
    %195 = vector.load %arg19[%c0_76, %c0_77, %c0_78] : memref<1x1x256xf32, #tpu.memory_space<vmem>>, vector<1x1x256xf32>
    %196 = vector.shape_cast %195 : vector<1x1x256xf32> to vector<1x256xf32>
    %197 = vector.broadcast %196 : vector<1x256xf32> to vector<16x256xf32>
    %198 = arith.addf %194, %197 : vector<16x256xf32>
    %cst_79 = arith.constant 1.702000e+00 : f32
    %199 = vector.broadcast %cst_79 : f32 to vector<16x256xf32>
    %200 = arith.mulf %199, %198 : vector<16x256xf32>
    %201 = arith.negf %200 : vector<16x256xf32>
    %202 = math.exp %201 : vector<16x256xf32>
    %cst_80 = arith.constant 1.000000e+00 : f32
    %203 = vector.broadcast %cst_80 : f32 to vector<16x256xf32>
    %204 = arith.addf %203, %202 : vector<16x256xf32>
    %205 = arith.divf %203, %204 : vector<16x256xf32>
    %206 = arith.mulf %198, %205 : vector<16x256xf32>
    %207 = arith.truncf %206 : vector<16x256xf32> to vector<16x256xbf16>
    %c0_81 = arith.constant 0 : index
    %c0_82 = arith.constant 0 : index
    %c0_83 = arith.constant 0 : index
    %208 = vector.load %arg20[%c0_81, %c0_82, %c0_83] : memref<1x256x128xbf16, #tpu.memory_space<vmem>>, vector<1x256x128xbf16>
    %209 = vector.shape_cast %208 : vector<1x256x128xbf16> to vector<256x128xbf16>
    %cst_84 = arith.constant dense<0.000000e+00> : vector<16x128xf32>
    %210 = tpu.matmul %207, %209, %cst_84 {dimension_numbers = #tpu.dot_dimension_numbers<[1], [0], [0], [1], [0, 0, 1, 1], [], []>} : vector<16x256xbf16>, vector<256x128xbf16>, vector<16x128xf32> -> vector<16x128xf32>
    %211 = arith.addf %158, %210 : vector<16x128xf32>
    %c0_85 = arith.constant 0 : index
    %c0_86 = arith.constant 0 : index
    %c0_87 = arith.constant 0 : index
    %212 = vector.load %arg21[%c0_85, %c0_86, %c0_87] : memref<1x1x128xf32, #tpu.memory_space<vmem>>, vector<1x1x128xf32>
    %213 = vector.shape_cast %212 : vector<1x1x128xf32> to vector<1x128xf32>
    %214 = vector.broadcast %213 : vector<1x128xf32> to vector<16x128xf32>
    %215 = arith.addf %211, %214 : vector<16x128xf32>
    %c0_88 = arith.constant 0 : index
    %c0_89 = arith.constant 0 : index
    %216 = vector.load %arg26[%c0_88, %c0_89] : memref<16x128xf32, #tpu.memory_space<vmem>>, vector<16x128xf32>
    tpu.vector_store %arg26[%c0_88, %c0_89], %215 {strides = array<i32>} : memref<16x128xf32, #tpu.memory_space<vmem>>, vector<16x128xf32>,
    %c1_i32 = arith.constant 1 : i32
    %217 = arith.cmpi eq, %arg0, %c1_i32 : i32
    %218 = arith.extui %217 : i1 to i32
    %c0_i32_90 = arith.constant 0 : i32
    %219 = arith.cmpi ne, %218, %c0_i32_90 : i32
    scf.if %219 {
      %220 = vector.shape_cast %215 : vector<16x128xf32> to vector<2x8x128xf32>
      %221 = vector.extract_strided_slice %220 {offsets = [0, 0, 0], sizes = [2, 1, 128], strides = [1, 1, 1]} : vector<2x8x128xf32> to vector<2x1x128xf32>
      %222 = vector.shape_cast %221 : vector<2x1x128xf32> to vector<2x128xf32>
      %223 = arith.truncf %222 : vector<2x128xf32> to vector<2x128xbf16>
      %c0_91 = arith.constant 0 : index
      %c0_92 = arith.constant 0 : index
      %224 = vector.load %arg22[%c0_91, %c0_92] : memref<128x128xbf16, #tpu.memory_space<vmem>>, vector<128x128xbf16>
      %cst_93 = arith.constant dense<0.000000e+00> : vector<2x128xf32>
      %225 = tpu.matmul %223, %224, %cst_93 {dimension_numbers = #tpu.dot_dimension_numbers<[1], [0], [0], [1], [0, 0, 1, 1], [], []>} : vector<2x128xbf16>, vector<128x128xbf16>, vector<2x128xf32> -> vector<2x128xf32>
      %c0_94 = arith.constant 0 : index
      %c0_95 = arith.constant 0 : index
      %226 = vector.load %arg23[%c0_94, %c0_95] : memref<1x128xf32, #tpu.memory_space<vmem>>, vector<1x128xf32>
      %227 = vector.broadcast %226 : vector<1x128xf32> to vector<2x128xf32>
      %228 = arith.addf %225, %227 : vector<2x128xf32>
      %c0_96 = arith.constant 0 : index
      %c0_97 = arith.constant 0 : index
      %229 = vector.load %arg24[%c0_96, %c0_97] : memref<2x128xf32, #tpu.memory_space<vmem>>, vector<2x128xf32>
      tpu.vector_store %arg24[%c0_96, %c0_97], %228 {strides = array<i32>} : memref<2x128xf32, #tpu.memory_space<vmem>>, vector<2x128xf32>,
    } else {
    }
    return
  }
  func.func @transform_0(%arg0: i32) -> (i32, i32) {
    %c0_i32 = arith.constant 0 : i32
    %c0_i32_0 = arith.constant 0 : i32
    %c0_i32_1 = arith.constant 0 : i32
    return %c0_i32, %c0_i32_0 : i32, i32
  }
  func.func @transform_1(%arg0: i32) -> (i32, i32) {
    %c0_i32 = arith.constant 0 : i32
    %c0_i32_0 = arith.constant 0 : i32
    %c0_i32_1 = arith.constant 0 : i32
    return %c0_i32, %c0_i32_0 : i32, i32
  }
  func.func @transform_2(%arg0: i32) -> (i32, i32) {
    %c0_i32 = arith.constant 0 : i32
    %c0_i32_0 = arith.constant 0 : i32
    %c0_i32_1 = arith.constant 0 : i32
    return %c0_i32, %c0_i32_0 : i32, i32
  }
  func.func @transform_3(%arg0: i32) -> (i32, i32) {
    %c0_i32 = arith.constant 0 : i32
    %c0_i32_0 = arith.constant 0 : i32
    %c0_i32_1 = arith.constant 0 : i32
    return %c0_i32, %c0_i32_0 : i32, i32
  }
  func.func @transform_4(%arg0: i32) -> (i32, i32) {
    %c0_i32 = arith.constant 0 : i32
    %c0_i32_0 = arith.constant 0 : i32
    %c0_i32_1 = arith.constant 0 : i32
    return %c0_i32, %c0_i32_0 : i32, i32
  }
  func.func @transform_5(%arg0: i32) -> (i32, i32, i32) {
    %c0_i32 = arith.constant 0 : i32
    %c0_i32_0 = arith.constant 0 : i32
    %c0_i32_1 = arith.constant 0 : i32
    return %arg0, %c0_i32, %c0_i32_0 : i32, i32, i32
  }
  func.func @transform_6(%arg0: i32) -> (i32, i32, i32) {
    %c0_i32 = arith.constant 0 : i32
    %c0_i32_0 = arith.constant 0 : i32
    %c0_i32_1 = arith.constant 0 : i32
    return %arg0, %c0_i32, %c0_i32_0 : i32, i32, i32
  }
  func.func @transform_7(%arg0: i32) -> (i32, i32, i32) {
    %c0_i32 = arith.constant 0 : i32
    %c0_i32_0 = arith.constant 0 : i32
    %c0_i32_1 = arith.constant 0 : i32
    return %arg0, %c0_i32, %c0_i32_0 : i32, i32, i32
  }
  func.func @transform_8(%arg0: i32) -> (i32, i32, i32) {
    %c0_i32 = arith.constant 0 : i32
    %c0_i32_0 = arith.constant 0 : i32
    %c0_i32_1 = arith.constant 0 : i32
    return %arg0, %c0_i32, %c0_i32_0 : i32, i32, i32
  }
  func.func @transform_9(%arg0: i32) -> (i32, i32, i32) {
    %c0_i32 = arith.constant 0 : i32
    %c0_i32_0 = arith.constant 0 : i32
    %c0_i32_1 = arith.constant 0 : i32
    return %arg0, %c0_i32, %c0_i32_0 : i32, i32, i32
  }
  func.func @transform_10(%arg0: i32) -> (i32, i32, i32) {
    %c0_i32 = arith.constant 0 : i32
    %c0_i32_0 = arith.constant 0 : i32
    %c0_i32_1 = arith.constant 0 : i32
    return %arg0, %c0_i32, %c0_i32_0 : i32, i32, i32
  }
  func.func @transform_11(%arg0: i32) -> (i32, i32, i32) {
    %c0_i32 = arith.constant 0 : i32
    %c0_i32_0 = arith.constant 0 : i32
    %c0_i32_1 = arith.constant 0 : i32
    return %arg0, %c0_i32, %c0_i32_0 : i32, i32, i32
  }
  func.func @transform_12(%arg0: i32) -> (i32, i32, i32) {
    %c0_i32 = arith.constant 0 : i32
    %c0_i32_0 = arith.constant 0 : i32
    %c0_i32_1 = arith.constant 0 : i32
    return %arg0, %c0_i32, %c0_i32_0 : i32, i32, i32
  }
  func.func @transform_13(%arg0: i32) -> (i32, i32, i32) {
    %c0_i32 = arith.constant 0 : i32
    %c0_i32_0 = arith.constant 0 : i32
    %c0_i32_1 = arith.constant 0 : i32
    return %arg0, %c0_i32, %c0_i32_0 : i32, i32, i32
  }
  func.func @transform_14(%arg0: i32) -> (i32, i32, i32) {
    %c0_i32 = arith.constant 0 : i32
    %c0_i32_0 = arith.constant 0 : i32
    %c0_i32_1 = arith.constant 0 : i32
    return %arg0, %c0_i32, %c0_i32_0 : i32, i32, i32
  }
  func.func @transform_15(%arg0: i32) -> (i32, i32, i32) {
    %c0_i32 = arith.constant 0 : i32
    %c0_i32_0 = arith.constant 0 : i32
    %c0_i32_1 = arith.constant 0 : i32
    return %arg0, %c0_i32, %c0_i32_0 : i32, i32, i32
  }
  func.func @transform_16(%arg0: i32) -> (i32, i32, i32) {
    %c0_i32 = arith.constant 0 : i32
    %c0_i32_0 = arith.constant 0 : i32
    %c0_i32_1 = arith.constant 0 : i32
    return %arg0, %c0_i32, %c0_i32_0 : i32, i32, i32
  }
  func.func @transform_17(%arg0: i32) -> (i32, i32, i32) {
    %c0_i32 = arith.constant 0 : i32
    %c0_i32_0 = arith.constant 0 : i32
    %c0_i32_1 = arith.constant 0 : i32
    return %arg0, %c0_i32, %c0_i32_0 : i32, i32, i32
  }
  func.func @transform_18(%arg0: i32) -> (i32, i32, i32) {
    %c0_i32 = arith.constant 0 : i32
    %c0_i32_0 = arith.constant 0 : i32
    %c0_i32_1 = arith.constant 0 : i32
    return %arg0, %c0_i32, %c0_i32_0 : i32, i32, i32
  }
  func.func @transform_19(%arg0: i32) -> (i32, i32, i32) {
    %c0_i32 = arith.constant 0 : i32
    %c0_i32_0 = arith.constant 0 : i32
    %c0_i32_1 = arith.constant 0 : i32
    return %arg0, %c0_i32, %c0_i32_0 : i32, i32, i32
  }
  func.func @transform_20(%arg0: i32) -> (i32, i32, i32) {
    %c0_i32 = arith.constant 0 : i32
    %c0_i32_0 = arith.constant 0 : i32
    %c0_i32_1 = arith.constant 0 : i32
    return %arg0, %c0_i32, %c0_i32_0 : i32, i32, i32
  }
  func.func @transform_21(%arg0: i32) -> (i32, i32) {
    %c0_i32 = arith.constant 0 : i32
    %c0_i32_0 = arith.constant 0 : i32
    %c0_i32_1 = arith.constant 0 : i32
    return %c0_i32, %c0_i32_0 : i32, i32
  }
  func.func @transform_22(%arg0: i32) -> (i32, i32) {
    %c0_i32 = arith.constant 0 : i32
    %c0_i32_0 = arith.constant 0 : i32
    %c0_i32_1 = arith.constant 0 : i32
    return %c0_i32, %c0_i32_0 : i32, i32
  }
  func.func @transform_23(%arg0: i32) -> (i32, i32) {
    %c0_i32 = arith.constant 0 : i32
    %c0_i32_0 = arith.constant 0 : i32
    %c0_i32_1 = arith.constant 0 : i32
    return %c0_i32, %c0_i32_0 : i32, i32
  }
  func.func @transform_24(%arg0: i32) -> (i32, i32, i32) {
    %c0_i32 = arith.constant 0 : i32
    %c0_i32_0 = arith.constant 0 : i32
    %c0_i32_1 = arith.constant 0 : i32
    return %arg0, %c0_i32, %c0_i32_0 : i32, i32, i32
  }
}

</mosaic_0001>

<llo_original>
// kernel: model_forward.1
$region0: #{model_forward.1}
  #allocation0 [shape = 'u32[]', space=smem, size = 0x4, offset = 0x4, fixed_abs, tag = 'smem constant byte address 0x4 - core index']
  #allocation1 [shape = 'u32[72,128]{1,0:T(1,128)}', space=vmem, size = 0x9000, scoped, tag = 'internal scratch']
  #allocation2 [shape = 'f32[16,128]{1,0:T(8,128)}', space=vmem, size = 0x2000, scoped, tag = 'scratch operand']
  %s0 = inlined_call_operand.vmem [shape: bf16[16,768], index: 0, kind: input, shape index: {}]
  %s1 = inlined_call_operand.vmem [shape: f32[8,128], index: 1, kind: input, shape index: {}]
  %s2 = inlined_call_operand.vmem [shape: bf16[768,128], index: 2, kind: input, shape index: {}]
  %s3 = inlined_call_operand.vmem [shape: f32[1,128], index: 3, kind: input, shape index: {}]
  %s4 = inlined_call_operand.vmem [shape: f32[1,128], index: 4, kind: input, shape index: {}]
  %s5 = inlined_call_operand.vmem [shape: f32[2,1,128], index: 5, kind: input, shape index: {}]
  %s6 = inlined_call_operand.vmem [shape: f32[2,1,128], index: 6, kind: input, shape index: {}]
  %s7 = inlined_call_operand.vmem [shape: bf16[2,128,128], index: 7, kind: input, shape index: {}]
  %s8 = inlined_call_operand.vmem [shape: f32[2,1,128], index: 8, kind: input, shape index: {}]
  %s9 = inlined_call_operand.vmem [shape: bf16[2,128,128], index: 9, kind: input, shape index: {}]
  %s10 = inlined_call_operand.vmem [shape: f32[2,1,128], index: 10, kind: input, shape index: {}]
  %s11 = inlined_call_operand.hbm [shape: bf16[2,128,128], index: 11, kind: input, shape index: {}]
  %s12 = inlined_call_operand.vmem [shape: f32[2,1,128], index: 12, kind: input, shape index: {}]
  %s13 = inlined_call_operand.hbm [shape: bf16[2,128,128], index: 13, kind: input, shape index: {}]
  %s14 = inlined_call_operand.vmem [shape: f32[2,1,128], index: 14, kind: input, shape index: {}]
  %s15 = inlined_call_operand.vmem [shape: f32[2,1,128], index: 15, kind: input, shape index: {}]
  %s16 = inlined_call_operand.vmem [shape: f32[2,1,128], index: 16, kind: input, shape index: {}]
  %s17 = inlined_call_operand.vmem [shape: bf16[2,128,256], index: 17, kind: input, shape index: {}]
  %s18 = inlined_call_operand.vmem [shape: f32[2,1,256], index: 18, kind: input, shape index: {}]
  %s19 = inlined_call_operand.vmem [shape: bf16[2,256,128], index: 19, kind: input, shape index: {}]
  %s20 = inlined_call_operand.vmem [shape: f32[2,1,128], index: 20, kind: input, shape index: {}]
  %s21 = inlined_call_operand.vmem [shape: bf16[128,128], index: 21, kind: input, shape index: {}]
  %s22 = inlined_call_operand.hbm [shape: f32[1,128], index: 22, kind: input, shape index: {}]
  %s23 = inlined_call_operand.hbm [shape: f32[2,128], index: 23, kind: output, shape index: {0}]
  %s24 = inlined_call_operand.vmem [shape: f32[2,2,128], index: 24, kind: output, shape index: {1}]
  %25 = xla_tuple %s23, %s24
  %s26 = sld [smem:[#allocation0]]
  $region153: #{model_forward.1} parent=0
    _
  %s28 = ssub.s32 1, %s26
  %s29 = scalar_select 0, %s28, %s26
  $region1: #{model_forward.1} parent=0
    #allocation3 [shape = 'u8[65536]{0}', space=vmem, size = 0x10000, scoped, tag = 'input window, operand 11']
    #allocation4 [shape = 's32[2]{0}', space=sflag, size = 0x8, scoped, tag = 'scoped memory for model_forward.1']
    #allocation5 [shape = 's32[2]{0}', space=sflag, size = 0x8, scoped, tag = 'scoped memory for model_forward.1']
    #allocation6 [shape = 'u8[65536]{0}', space=vmem, size = 0x10000, scoped, tag = 'input window, operand 13']
    #allocation7 [shape = 's32[2]{0}', space=sflag, size = 0x8, scoped, tag = 'scoped memory for model_forward.1']
    #allocation8 [shape = 'u8[512]{0}', space=vmem, size = 0x400, scoped, tag = 'input window, operand 22, single buffered']
    #allocation9 [shape = 'u8[1024]{0}', space=vmem, size = 0x400, scoped, tag = 'output window, operand 0, single buffered']
    %30 = vsyncpa [#allocation4], 0
    %s31 = scalar_lea.sflag [#allocation4], 1
    %32 = vsyncpa %s31, 0
    %33 = vsyncpa [#allocation7], 0
    %s34 = scalar_lea.sflag [#allocation7], 1
    %35 = vsyncpa %s34, 0
    %36 = vsyncpa [#allocation5], 0
    loop: start=0, step=1, limit=4
    $region2: #{model_forward.1} parent=1 // loop_pre_header
      _
    $region3: #{model_forward.1} parent=1 // loop_header
      %s38 = sphi 0, %s42
      %p39 = scmp.ge.s32.totalorder %s38, 4
      %s46 = sphi 0, %s46
      %s48 = sphi 0, %s46
      %s49 = sphi 0, %s48
      %s63 = sphi 0, %s49
      %s67 = sphi 0, %s67
      %s69 = sphi 0, %s67
      %s70 = sphi 0, %s69
      %s84 = sphi 0, %s70
      %s88 = sphi 0, %s88
      %s90 = sphi 0, %s88
      %s91 = sphi 0, %s90
      %s105 = sphi 0, %s91
      %s109 = sphi 0, %s109
      %s111 = sphi 0, %s109
      %s112 = sphi 0, %s111
      %s126 = sphi 0, %s112
      %s130 = sphi 0, %s130
      %s132 = sphi 0, %s130
      %s133 = sphi 0, %s132
      %s147 = sphi 0, %s133
      %s153 = sphi 0, %s155
      %s156 = sphi 0, %s153
      %s157 = sphi 0, %s156
      %s173 = sphi 0, %s157
      %s179 = sphi 0, %s181
      %s182 = sphi 0, %s179
      %s183 = sphi 0, %s182
      %s199 = sphi 0, %s183
      %s205 = sphi 0, %s207
      %s208 = sphi 0, %s205
      %s209 = sphi 0, %s208
      %s225 = sphi 0, %s209
      %s231 = sphi 0, %s233
      %s234 = sphi 0, %s231
      %s235 = sphi 0, %s234
      %s251 = sphi 0, %s235
      %s257 = sphi 0, %s259
      %s260 = sphi 0, %s257
      %s261 = sphi 0, %s260
      %s277 = sphi 0, %s261
      %s283 = sphi 0, %s285
      %s286 = sphi 0, %s283
      %s287 = sphi 0, %s286
      %s303 = sphi 0, %s287
      %s309 = sphi 0, %s311
      %s312 = sphi 0, %s309
      %s313 = sphi 0, %s312
      %s329 = sphi 0, %s313
      %s335 = sphi 0, %s337
      %s338 = sphi 0, %s335
      %s339 = sphi 0, %s338
      %s355 = sphi 0, %s339
      %s361 = sphi 0, %s363
      %s364 = sphi 0, %s361
      %s365 = sphi 0, %s364
      %s381 = sphi 0, %s365
      %s387 = sphi 0, %s389
      %s390 = sphi 0, %s387
      %s391 = sphi 0, %s390
      %s407 = sphi 0, %s391
      %s413 = sphi 0, %s415
      %s416 = sphi 0, %s413
      %s417 = sphi 0, %s416
      %s433 = sphi 0, %s417
      %s439 = sphi 0, %s441
      %s442 = sphi 0, %s439
      %s443 = sphi 0, %s442
      %s459 = sphi 0, %s443
      %s465 = sphi 0, %s467
      %s468 = sphi 0, %s465
      %s469 = sphi 0, %s468
      %s485 = sphi 0, %s469
      %s491 = sphi 0, %s493
      %s494 = sphi 0, %s491
      %s495 = sphi 0, %s494
      %s511 = sphi 0, %s495
      %s517 = sphi 0, %s519
      %s520 = sphi 0, %s517
      %s521 = sphi 0, %s520
      %s537 = sphi 0, %s521
      %s543 = sphi 0, %s545
      %s546 = sphi 0, %s543
      %s547 = sphi 0, %s546
      %s563 = sphi 0, %s547
      %s567 = sphi 0, %s567
      %s569 = sphi 0, %s567
      %s570 = sphi 0, %s569
      %s584 = sphi 0, %s570
      %s588 = sphi 0, %s588
      %s590 = sphi 0, %s588
      %s591 = sphi 0, %s590
      %s605 = sphi 0, %s591
      %s609 = sphi 0, %s609
      %s611 = sphi 0, %s609
      %s612 = sphi 0, %s611
      %s626 = sphi 0, %s612
      %s632 = sphi 0, %s634
      %s635 = sphi 0, %s632
      %s636 = sphi 0, %s635
      %s652 = sphi 0, %s636
    $region4: #{model_forward.1} parent=1 // loop_header_branch
      %41 = sbr.rel (%p39) target = $region8
    $region5: #{model_forward.1} parent=1 // loop_body
      %s43 = ssub.s32 %s38, 1
      %s44 = ssub.s32 %s38, 2
      %s45 = sadd.s32 %s38, 1
      %s47 = sadd.s32 %s46, 1
      %p50 = scmp.eq.s32.totalorder %s38, 1
      %p51 = scmp.ne.s32.totalorder %s46, %s48
      %p52 = scmp.eq.s32.totalorder %s38, 0
      %p53 = por %p51, %p52
      %p54 = scmp.ne.s32.totalorder %s46, %s48
      %p55 = scmp.eq.s32.totalorder %s43, 1
      %p56 = por %p54, %p55
      %p57 = scmp.ne.s32.totalorder %s48, %s49
      %p58 = scmp.eq.s32.totalorder %s43, 0
      %p59 = por %p57, %p58
      %p60 = scmp.ne.s32.totalorder %s48, %s49
      %p61 = scmp.eq.s32.totalorder %s44, 1
      %p62 = por %p60, %p61
      %p64 = scmp.ne.s32.totalorder %s49, %s63
      %p65 = scmp.eq.s32.totalorder %s44, 0
      %p66 = por %p64, %p65
      %s68 = sadd.s32 %s67, 1
      %p71 = scmp.eq.s32.totalorder %s38, 1
      %p72 = scmp.ne.s32.totalorder %s67, %s69
      %p73 = scmp.eq.s32.totalorder %s38, 0
      %p74 = por %p72, %p73
      %p75 = scmp.ne.s32.totalorder %s67, %s69
      %p76 = scmp.eq.s32.totalorder %s43, 1
      %p77 = por %p75, %p76
      %p78 = scmp.ne.s32.totalorder %s69, %s70
      %p79 = scmp.eq.s32.totalorder %s43, 0
      %p80 = por %p78, %p79
      %p81 = scmp.ne.s32.totalorder %s69, %s70
      %p82 = scmp.eq.s32.totalorder %s44, 1
      %p83 = por %p81, %p82
      %p85 = scmp.ne.s32.totalorder %s70, %s84
      %p86 = scmp.eq.s32.totalorder %s44, 0
      %p87 = por %p85, %p86
      %s89 = sadd.s32 %s88, 1
      %p92 = scmp.eq.s32.totalorder %s38, 1
      %p93 = scmp.ne.s32.totalorder %s88, %s90
      %p94 = scmp.eq.s32.totalorder %s38, 0
      %p95 = por %p93, %p94
      %p96 = scmp.ne.s32.totalorder %s88, %s90
      %p97 = scmp.eq.s32.totalorder %s43, 1
      %p98 = por %p96, %p97
      %p99 = scmp.ne.s32.totalorder %s90, %s91
      %p100 = scmp.eq.s32.totalorder %s43, 0
      %p101 = por %p99, %p100
      %p102 = scmp.ne.s32.totalorder %s90, %s91
      %p103 = scmp.eq.s32.totalorder %s44, 1
      %p104 = por %p102, %p103
      %p106 = scmp.ne.s32.totalorder %s91, %s105
      %p107 = scmp.eq.s32.totalorder %s44, 0
      %p108 = por %p106, %p107
      %s110 = sadd.s32 %s109, 1
      %p113 = scmp.eq.s32.totalorder %s38, 1
      %p114 = scmp.ne.s32.totalorder %s109, %s111
      %p115 = scmp.eq.s32.totalorder %s38, 0
      %p116 = por %p114, %p115
      %p117 = scmp.ne.s32.totalorder %s109, %s111
      %p118 = scmp.eq.s32.totalorder %s43, 1
      %p119 = por %p117, %p118
      %p120 = scmp.ne.s32.totalorder %s111, %s112
      %p121 = scmp.eq.s32.totalorder %s43, 0
      %p122 = por %p120, %p121
      %p123 = scmp.ne.s32.totalorder %s111, %s112
      %p124 = scmp.eq.s32.totalorder %s44, 1
      %p125 = por %p123, %p124
      %p127 = scmp.ne.s32.totalorder %s112, %s126
      %p128 = scmp.eq.s32.totalorder %s44, 0
      %p129 = por %p127, %p128
      %s131 = sadd.s32 %s130, 1
      %p134 = scmp.eq.s32.totalorder %s38, 1
      %p135 = scmp.ne.s32.totalorder %s130, %s132
      %p136 = scmp.eq.s32.totalorder %s38, 0
      %p137 = por %p135, %p136
      %p138 = scmp.ne.s32.totalorder %s130, %s132
      %p139 = scmp.eq.s32.totalorder %s43, 1
      %p140 = por %p138, %p139
      %p141 = scmp.ne.s32.totalorder %s132, %s133
      %p142 = scmp.eq.s32.totalorder %s43, 0
      %p143 = por %p141, %p142
      %p144 = scmp.ne.s32.totalorder %s132, %s133
      %p145 = scmp.eq.s32.totalorder %s44, 1
      %p146 = por %p144, %p145
      %p148 = scmp.ne.s32.totalorder %s133, %s147
      %p149 = scmp.eq.s32.totalorder %s44, 0
      %p150 = por %p148, %p149
      %s151 = ssub.s32 %s38, %s45
      %p152 = scmp.eq.s32.totalorder %s151, 0
      %s154 = sadd.s32 %s153, 1
      %s155 = scalar_select %p152, %s153, %s154
      %p158 = pneg %p152
      %p159 = scmp.eq.s32.totalorder %s38, 1
      %p160 = por %p158, %p159
      %p161 = scmp.ne.s32.totalorder %s153, %s156
      %p162 = scmp.eq.s32.totalorder %s38, 0
      %p163 = por %p161, %p162
      %p164 = scmp.ne.s32.totalorder %s153, %s156
      %p165 = scmp.eq.s32.totalorder %s43, 1
      %p166 = por %p164, %p165
      %p167 = scmp.ne.s32.totalorder %s156, %s157
      %p168 = scmp.eq.s32.totalorder %s43, 0
      %p169 = por %p167, %p168
      %p170 = scmp.ne.s32.totalorder %s156, %s157
      %p171 = scmp.eq.s32.totalorder %s44, 1
      %p172 = por %p170, %p171
      %p174 = scmp.ne.s32.totalorder %s157, %s173
      %p175 = scmp.eq.s32.totalorder %s44, 0
      %p176 = por %p174, %p175
      %s177 = ssub.s32 %s38, %s45
      %p178 = scmp.eq.s32.totalorder %s177, 0
      %s180 = sadd.s32 %s179, 1
      %s181 = scalar_select %p178, %s179, %s180
      %p184 = pneg %p178
      %p185 = scmp.eq.s32.totalorder %s38, 1
      %p186 = por %p184, %p185
      %p187 = scmp.ne.s32.totalorder %s179, %s182
      %p188 = scmp.eq.s32.totalorder %s38, 0
      %p189 = por %p187, %p188
      %p190 = scmp.ne.s32.totalorder %s179, %s182
      %p191 = scmp.eq.s32.totalorder %s43, 1
      %p192 = por %p190, %p191
      %p193 = scmp.ne.s32.totalorder %s182, %s183
      %p194 = scmp.eq.s32.totalorder %s43, 0
      %p195 = por %p193, %p194
      %p196 = scmp.ne.s32.totalorder %s182, %s183
      %p197 = scmp.eq.s32.totalorder %s44, 1
      %p198 = por %p196, %p197
      %p200 = scmp.ne.s32.totalorder %s183, %s199
      %p201 = scmp.eq.s32.totalorder %s44, 0
      %p202 = por %p200, %p201
      %s203 = ssub.s32 %s38, %s45
      %p204 = scmp.eq.s32.totalorder %s203, 0
      %s206 = sadd.s32 %s205, 1
      %s207 = scalar_select %p204, %s205, %s206
      %p210 = pneg %p204
      %p211 = scmp.eq.s32.totalorder %s38, 1
      %p212 = por %p210, %p211
      %p213 = scmp.ne.s32.totalorder %s205, %s208
      %p214 = scmp.eq.s32.totalorder %s38, 0
      %p215 = por %p213, %p214
      %p216 = scmp.ne.s32.totalorder %s205, %s208
      %p217 = scmp.eq.s32.totalorder %s43, 1
      %p218 = por %p216, %p217
      %p219 = scmp.ne.s32.totalorder %s208, %s209
      %p220 = scmp.eq.s32.totalorder %s43, 0
      %p221 = por %p219, %p220
      %p222 = scmp.ne.s32.totalorder %s208, %s209
      %p223 = scmp.eq.s32.totalorder %s44, 1
      %p224 = por %p222, %p223
      %p226 = scmp.ne.s32.totalorder %s209, %s225
      %p227 = scmp.eq.s32.totalorder %s44, 0
      %p228 = por %p226, %p227
      %s229 = ssub.s32 %s38, %s45
      %p230 = scmp.eq.s32.totalorder %s229, 0
      %s232 = sadd.s32 %s231, 1
      %s233 = scalar_select %p230, %s231, %s232
      %p236 = pneg %p230
      %p237 = scmp.eq.s32.totalorder %s38, 1
      %p238 = por %p236, %p237
      %p239 = scmp.ne.s32.totalorder %s231, %s234
      %p240 = scmp.eq.s32.totalorder %s38, 0
      %p241 = por %p239, %p240
      %p242 = scmp.ne.s32.totalorder %s231, %s234
      %p243 = scmp.eq.s32.totalorder %s43, 1
      %p244 = por %p242, %p243
      %p245 = scmp.ne.s32.totalorder %s234, %s235
      %p246 = scmp.eq.s32.totalorder %s43, 0
      %p247 = por %p245, %p246
      %p248 = scmp.ne.s32.totalorder %s234, %s235
      %p249 = scmp.eq.s32.totalorder %s44, 1
      %p250 = por %p248, %p249
      %p252 = scmp.ne.s32.totalorder %s235, %s251
      %p253 = scmp.eq.s32.totalorder %s44, 0
      %p254 = por %p252, %p253
      %s255 = ssub.s32 %s38, %s45
      %p256 = scmp.eq.s32.totalorder %s255, 0
      %s258 = sadd.s32 %s257, 1
      %s259 = scalar_select %p256, %s257, %s258
      %p262 = pneg %p256
      %p263 = scmp.eq.s32.totalorder %s38, 1
      %p264 = por %p262, %p263
      %p265 = scmp.ne.s32.totalorder %s257, %s260
      %p266 = scmp.eq.s32.totalorder %s38, 0
      %p267 = por %p265, %p266
      %p268 = scmp.ne.s32.totalorder %s257, %s260
      %p269 = scmp.eq.s32.totalorder %s43, 1
      %p270 = por %p268, %p269
      %p271 = scmp.ne.s32.totalorder %s260, %s261
      %p272 = scmp.eq.s32.totalorder %s43, 0
      %p273 = por %p271, %p272
      %p274 = scmp.ne.s32.totalorder %s260, %s261
      %p275 = scmp.eq.s32.totalorder %s44, 1
      %p276 = por %p274, %p275
      %p278 = scmp.ne.s32.totalorder %s261, %s277
      %p279 = scmp.eq.s32.totalorder %s44, 0
      %p280 = por %p278, %p279
      %s281 = ssub.s32 %s38, %s45
      %p282 = scmp.eq.s32.totalorder %s281, 0
      %s284 = sadd.s32 %s283, 1
      %s285 = scalar_select %p282, %s283, %s284
      %p288 = pneg %p282
      %p289 = scmp.eq.s32.totalorder %s38, 1
      %p290 = por %p288, %p289
      %p291 = scmp.ne.s32.totalorder %s283, %s286
      %p292 = scmp.eq.s32.totalorder %s38, 0
      %p293 = por %p291, %p292
      %p294 = scmp.ne.s32.totalorder %s283, %s286
      %p295 = scmp.eq.s32.totalorder %s43, 1
      %p296 = por %p294, %p295
      %p297 = scmp.ne.s32.totalorder %s286, %s287
      %p298 = scmp.eq.s32.totalorder %s43, 0
      %p299 = por %p297, %p298
      %p300 = scmp.ne.s32.totalorder %s286, %s287
      %p301 = scmp.eq.s32.totalorder %s44, 1
      %p302 = por %p300, %p301
      %p304 = scmp.ne.s32.totalorder %s287, %s303
      %p305 = scmp.eq.s32.totalorder %s44, 0
      %p306 = por %p304, %p305
      %s307 = ssub.s32 %s38, %s45
      %p308 = scmp.eq.s32.totalorder %s307, 0
      %s310 = sadd.s32 %s309, 1
      %s311 = scalar_select %p308, %s309, %s310
      %p314 = pneg %p308
      %p315 = scmp.eq.s32.totalorder %s38, 1
      %p316 = por %p314, %p315
      %p317 = scmp.ne.s32.totalorder %s309, %s312
      %p318 = scmp.eq.s32.totalorder %s38, 0
      %p319 = por %p317, %p318
      %p320 = scmp.ne.s32.totalorder %s309, %s312
      %p321 = scmp.eq.s32.totalorder %s43, 1
      %p322 = por %p320, %p321
      %p323 = scmp.ne.s32.totalorder %s312, %s313
      %p324 = scmp.eq.s32.totalorder %s43, 0
      %p325 = por %p323, %p324
      %p326 = scmp.ne.s32.totalorder %s312, %s313
      %p327 = scmp.eq.s32.totalorder %s44, 1
      %p328 = por %p326, %p327
      %p330 = scmp.ne.s32.totalorder %s313, %s329
      %p331 = scmp.eq.s32.totalorder %s44, 0
      %p332 = por %p330, %p331
      %s333 = ssub.s32 %s38, %s45
      %p334 = scmp.eq.s32.totalorder %s333, 0
      %s336 = sadd.s32 %s335, 1
      %s337 = scalar_select %p334, %s335, %s336
      %p340 = pneg %p334
      %p341 = scmp.eq.s32.totalorder %s38, 1
      %p342 = por %p340, %p341
      %p343 = scmp.ne.s32.totalorder %s335, %s338
      %p344 = scmp.eq.s32.totalorder %s38, 0
      %p345 = por %p343, %p344
      %p346 = scmp.ne.s32.totalorder %s335, %s338
      %p347 = scmp.eq.s32.totalorder %s43, 1
      %p348 = por %p346, %p347
      %p349 = scmp.ne.s32.totalorder %s338, %s339
      %p350 = scmp.eq.s32.totalorder %s43, 0
      %p351 = por %p349, %p350
      %p352 = scmp.ne.s32.totalorder %s338, %s339
      %p353 = scmp.eq.s32.totalorder %s44, 1
      %p354 = por %p352, %p353
      %p356 = scmp.ne.s32.totalorder %s339, %s355
      %p357 = scmp.eq.s32.totalorder %s44, 0
      %p358 = por %p356, %p357
      %s359 = ssub.s32 %s38, %s45
      %p360 = scmp.eq.s32.totalorder %s359, 0
      %s362 = sadd.s32 %s361, 1
      %s363 = scalar_select %p360, %s361, %s362
      %p366 = pneg %p360
      %p367 = scmp.eq.s32.totalorder %s38, 1
      %p368 = por %p366, %p367
      %p369 = scmp.ne.s32.totalorder %s361, %s364
      %p370 = scmp.eq.s32.totalorder %s38, 0
      %p371 = por %p369, %p370
      %p372 = scmp.ne.s32.totalorder %s361, %s364
      %p373 = scmp.eq.s32.totalorder %s43, 1
      %p374 = por %p372, %p373
      %p375 = scmp.ne.s32.totalorder %s364, %s365
      %p376 = scmp.eq.s32.totalorder %s43, 0
      %p377 = por %p375, %p376
      %p378 = scmp.ne.s32.totalorder %s364, %s365
      %p379 = scmp.eq.s32.totalorder %s44, 1
      %p380 = por %p378, %p379
      %p382 = scmp.ne.s32.totalorder %s365, %s381
      %p383 = scmp.eq.s32.totalorder %s44, 0
      %p384 = por %p382, %p383
      %s385 = ssub.s32 %s38, %s45
      %p386 = scmp.eq.s32.totalorder %s385, 0
      %s388 = sadd.s32 %s387, 1
      %s389 = scalar_select %p386, %s387, %s388
      %p392 = pneg %p386
      %p393 = scmp.eq.s32.totalorder %s38, 1
      %p394 = por %p392, %p393
      %p395 = scmp.ne.s32.totalorder %s387, %s390
      %p396 = scmp.eq.s32.totalorder %s38, 0
      %p397 = por %p395, %p396
      %p398 = scmp.ne.s32.totalorder %s387, %s390
      %p399 = scmp.eq.s32.totalorder %s43, 1
      %p400 = por %p398, %p399
      %p401 = scmp.ne.s32.totalorder %s390, %s391
      %p402 = scmp.eq.s32.totalorder %s43, 0
      %p403 = por %p401, %p402
      %p404 = scmp.ne.s32.totalorder %s390, %s391
      %p405 = scmp.eq.s32.totalorder %s44, 1
      %p406 = por %p404, %p405
      %p408 = scmp.ne.s32.totalorder %s391, %s407
      %p409 = scmp.eq.s32.totalorder %s44, 0
      %p410 = por %p408, %p409
      %s411 = ssub.s32 %s38, %s45
      %p412 = scmp.eq.s32.totalorder %s411, 0
      %s414 = sadd.s32 %s413, 1
      %s415 = scalar_select %p412, %s413, %s414
      %p418 = pneg %p412
      %p419 = scmp.eq.s32.totalorder %s38, 1
      %p420 = por %p418, %p419
      %p421 = scmp.ne.s32.totalorder %s413, %s416
      %p422 = scmp.eq.s32.totalorder %s38, 0
      %p423 = por %p421, %p422
      %p424 = scmp.ne.s32.totalorder %s413, %s416
      %p425 = scmp.eq.s32.totalorder %s43, 1
      %p426 = por %p424, %p425
      %p427 = scmp.ne.s32.totalorder %s416, %s417
      %p428 = scmp.eq.s32.totalorder %s43, 0
      %p429 = por %p427, %p428
      %p430 = scmp.ne.s32.totalorder %s416, %s417
      %p431 = scmp.eq.s32.totalorder %s44, 1
      %p432 = por %p430, %p431
      %p434 = scmp.ne.s32.totalorder %s417, %s433
      %p435 = scmp.eq.s32.totalorder %s44, 0
      %p436 = por %p434, %p435
      %s437 = ssub.s32 %s38, %s45
      %p438 = scmp.eq.s32.totalorder %s437, 0
      %s440 = sadd.s32 %s439, 1
      %s441 = scalar_select %p438, %s439, %s440
      %p444 = pneg %p438
      %p445 = scmp.eq.s32.totalorder %s38, 1
      %p446 = por %p444, %p445
      %p447 = scmp.ne.s32.totalorder %s439, %s442
      %p448 = scmp.eq.s32.totalorder %s38, 0
      %p449 = por %p447, %p448
      %p450 = scmp.ne.s32.totalorder %s439, %s442
      %p451 = scmp.eq.s32.totalorder %s43, 1
      %p452 = por %p450, %p451
      %p453 = scmp.ne.s32.totalorder %s442, %s443
      %p454 = scmp.eq.s32.totalorder %s43, 0
      %p455 = por %p453, %p454
      %p456 = scmp.ne.s32.totalorder %s442, %s443
      %p457 = scmp.eq.s32.totalorder %s44, 1
      %p458 = por %p456, %p457
      %p460 = scmp.ne.s32.totalorder %s443, %s459
      %p461 = scmp.eq.s32.totalorder %s44, 0
      %p462 = por %p460, %p461
      %s463 = ssub.s32 %s38, %s45
      %p464 = scmp.eq.s32.totalorder %s463, 0
      %s466 = sadd.s32 %s465, 1
      %s467 = scalar_select %p464, %s465, %s466
      %p470 = pneg %p464
      %p471 = scmp.eq.s32.totalorder %s38, 1
      %p472 = por %p470, %p471
      %p473 = scmp.ne.s32.totalorder %s465, %s468
      %p474 = scmp.eq.s32.totalorder %s38, 0
      %p475 = por %p473, %p474
      %p476 = scmp.ne.s32.totalorder %s465, %s468
      %p477 = scmp.eq.s32.totalorder %s43, 1
      %p478 = por %p476, %p477
      %p479 = scmp.ne.s32.totalorder %s468, %s469
      %p480 = scmp.eq.s32.totalorder %s43, 0
      %p481 = por %p479, %p480
      %p482 = scmp.ne.s32.totalorder %s468, %s469
      %p483 = scmp.eq.s32.totalorder %s44, 1
      %p484 = por %p482, %p483
      %p486 = scmp.ne.s32.totalorder %s469, %s485
      %p487 = scmp.eq.s32.totalorder %s44, 0
      %p488 = por %p486, %p487
      %s489 = ssub.s32 %s38, %s45
      %p490 = scmp.eq.s32.totalorder %s489, 0
      %s492 = sadd.s32 %s491, 1
      %s493 = scalar_select %p490, %s491, %s492
      %p496 = pneg %p490
      %p497 = scmp.eq.s32.totalorder %s38, 1
      %p498 = por %p496, %p497
      %p499 = scmp.ne.s32.totalorder %s491, %s494
      %p500 = scmp.eq.s32.totalorder %s38, 0
      %p501 = por %p499, %p500
      %p502 = scmp.ne.s32.totalorder %s491, %s494
      %p503 = scmp.eq.s32.totalorder %s43, 1
      %p504 = por %p502, %p503
      %p505 = scmp.ne.s32.totalorder %s494, %s495
      %p506 = scmp.eq.s32.totalorder %s43, 0
      %p507 = por %p505, %p506
      %p508 = scmp.ne.s32.totalorder %s494, %s495
      %p509 = scmp.eq.s32.totalorder %s44, 1
      %p510 = por %p508, %p509
      %p512 = scmp.ne.s32.totalorder %s495, %s511
      %p513 = scmp.eq.s32.totalorder %s44, 0
      %p514 = por %p512, %p513
      %s515 = ssub.s32 %s38, %s45
      %p516 = scmp.eq.s32.totalorder %s515, 0
      %s518 = sadd.s32 %s517, 1
      %s519 = scalar_select %p516, %s517, %s518
      %p522 = pneg %p516
      %p523 = scmp.eq.s32.totalorder %s38, 1
      %p524 = por %p522, %p523
      %p525 = scmp.ne.s32.totalorder %s517, %s520
      %p526 = scmp.eq.s32.totalorder %s38, 0
      %p527 = por %p525, %p526
      %p528 = scmp.ne.s32.totalorder %s517, %s520
      %p529 = scmp.eq.s32.totalorder %s43, 1
      %p530 = por %p528, %p529
      %p531 = scmp.ne.s32.totalorder %s520, %s521
      %p532 = scmp.eq.s32.totalorder %s43, 0
      %p533 = por %p531, %p532
      %p534 = scmp.ne.s32.totalorder %s520, %s521
      %p535 = scmp.eq.s32.totalorder %s44, 1
      %p536 = por %p534, %p535
      %p538 = scmp.ne.s32.totalorder %s521, %s537
      %p539 = scmp.eq.s32.totalorder %s44, 0
      %p540 = por %p538, %p539
      %s541 = ssub.s32 %s38, %s45
      %p542 = scmp.eq.s32.totalorder %s541, 0
      %s544 = sadd.s32 %s543, 1
      %s545 = scalar_select %p542, %s543, %s544
      %p548 = pneg %p542
      %p549 = scmp.eq.s32.totalorder %s38, 1
      %p550 = por %p548, %p549
      %p551 = scmp.ne.s32.totalorder %s543, %s546
      %p552 = scmp.eq.s32.totalorder %s38, 0
      %p553 = por %p551, %p552
      %p554 = scmp.ne.s32.totalorder %s543, %s546
      %p555 = scmp.eq.s32.totalorder %s43, 1
      %p556 = por %p554, %p555
      %p557 = scmp.ne.s32.totalorder %s546, %s547
      %p558 = scmp.eq.s32.totalorder %s43, 0
      %p559 = por %p557, %p558
      %p560 = scmp.ne.s32.totalorder %s546, %s547
      %p561 = scmp.eq.s32.totalorder %s44, 1
      %p562 = por %p560, %p561
      %p564 = scmp.ne.s32.totalorder %s547, %s563
      %p565 = scmp.eq.s32.totalorder %s44, 0
      %p566 = por %p564, %p565
      %s568 = sadd.s32 %s567, 1
      %p571 = scmp.eq.s32.totalorder %s38, 1
      %p572 = scmp.ne.s32.totalorder %s567, %s569
      %p573 = scmp.eq.s32.totalorder %s38, 0
      %p574 = por %p572, %p573
      %p575 = scmp.ne.s32.totalorder %s567, %s569
      %p576 = scmp.eq.s32.totalorder %s43, 1
      %p577 = por %p575, %p576
      %p578 = scmp.ne.s32.totalorder %s569, %s570
      %p579 = scmp.eq.s32.totalorder %s43, 0
      %p580 = por %p578, %p579
      %p581 = scmp.ne.s32.totalorder %s569, %s570
      %p582 = scmp.eq.s32.totalorder %s44, 1
      %p583 = por %p581, %p582
      %p585 = scmp.ne.s32.totalorder %s570, %s584
      %p586 = scmp.eq.s32.totalorder %s44, 0
      %p587 = por %p585, %p586
      %s589 = sadd.s32 %s588, 1
      %p592 = scmp.eq.s32.totalorder %s38, 1
      %p593 = scmp.ne.s32.totalorder %s588, %s590
      %p594 = scmp.eq.s32.totalorder %s38, 0
      %p595 = por %p593, %p594
      %p596 = scmp.ne.s32.totalorder %s588, %s590
      %p597 = scmp.eq.s32.totalorder %s43, 1
      %p598 = por %p596, %p597
      %p599 = scmp.ne.s32.totalorder %s590, %s591
      %p600 = scmp.eq.s32.totalorder %s43, 0
      %p601 = por %p599, %p600
      %p602 = scmp.ne.s32.totalorder %s590, %s591
      %p603 = scmp.eq.s32.totalorder %s44, 1
      %p604 = por %p602, %p603
      %p606 = scmp.ne.s32.totalorder %s591, %s605
      %p607 = scmp.eq.s32.totalorder %s44, 0
      %p608 = por %p606, %p607
      %s610 = sadd.s32 %s609, 1
      %p613 = scmp.eq.s32.totalorder %s38, 1
      %p614 = scmp.ne.s32.totalorder %s609, %s611
      %p615 = scmp.eq.s32.totalorder %s38, 0
      %p616 = por %p614, %p615
      %p617 = scmp.ne.s32.totalorder %s609, %s611
      %p618 = scmp.eq.s32.totalorder %s43, 1
      %p619 = por %p617, %p618
      %p620 = scmp.ne.s32.totalorder %s611, %s612
      %p621 = scmp.eq.s32.totalorder %s43, 0
      %p622 = por %p620, %p621
      %p623 = scmp.ne.s32.totalorder %s611, %s612
      %p624 = scmp.eq.s32.totalorder %s44, 1
      %p625 = por %p623, %p624
      %p627 = scmp.ne.s32.totalorder %s612, %s626
      %p628 = scmp.eq.s32.totalorder %s44, 0
      %p629 = por %p627, %p628
      %s630 = ssub.s32 %s38, %s45
      %p631 = scmp.eq.s32.totalorder %s630, 0
      %s633 = sadd.s32 %s632, 1
      %s634 = scalar_select %p631, %s632, %s633
      %p637 = pneg %p631
      %p638 = scmp.eq.s32.totalorder %s38, 1
      %p639 = por %p637, %p638
      %p640 = scmp.ne.s32.totalorder %s632, %s635
      %p641 = scmp.eq.s32.totalorder %s38, 0
      %p642 = por %p640, %p641
      %p643 = scmp.ne.s32.totalorder %s632, %s635
      %p644 = scmp.eq.s32.totalorder %s43, 1
      %p645 = por %p643, %p644
      %p646 = scmp.ne.s32.totalorder %s635, %s636
      %p647 = scmp.eq.s32.totalorder %s43, 0
      %p648 = por %p646, %p647
      %p649 = scmp.ne.s32.totalorder %s635, %s636
      %p650 = scmp.eq.s32.totalorder %s44, 1
      %p651 = por %p649, %p650
      %p653 = scmp.ne.s32.totalorder %s636, %s652
      %p654 = scmp.eq.s32.totalorder %s44, 0
      %p655 = por %p653, %p654
      %p656 = scmp.le.s32.totalorder 1, %s38
      %p657 = scmp.lt.s32.totalorder %s38, 3
      %p658 = pnand %p656, %p657
      %p659 = pneg %p658
      // Predicated region
      $region9: #{model_forward.1} parent=5 // pred_check
        _
      $region10: #{model_forward.1} parent=5 // pred_check_branch
        %661 = sbr.rel (%p658) target = $region12
      $region11: #{model_forward.1} parent=5 // pred_region
        %s662 = ssub.s32 %s38, 1
        // Predicated region
        $region13: #{model_forward.1} parent=11 // pred_check
          %p663 = pneg %p59
        $region14: #{model_forward.1} parent=11 // pred_check_branch
          %665 = sbr.rel (%p663) target = $region16
        $region15: #{model_forward.1} parent=11 // pred_region
          _
        $region16: #{model_forward.1} parent=11 // pred_fallthru
          _
        // Predicated region
        $region17: #{model_forward.1} parent=11 // pred_check
          %p666 = pneg %p80
        $region18: #{model_forward.1} parent=11 // pred_check_branch
          %668 = sbr.rel (%p666) target = $region20
        $region19: #{model_forward.1} parent=11 // pred_region
          _
        $region20: #{model_forward.1} parent=11 // pred_fallthru
          _
        // Predicated region
        $region21: #{model_forward.1} parent=11 // pred_check
          %p669 = pneg %p101
        $region22: #{model_forward.1} parent=11 // pred_check_branch
          %671 = sbr.rel (%p669) target = $region24
        $region23: #{model_forward.1} parent=11 // pred_region
          _
        $region24: #{model_forward.1} parent=11 // pred_fallthru
          _
        // Predicated region
        $region25: #{model_forward.1} parent=11 // pred_check
          %p672 = pneg %p122
        $region26: #{model_forward.1} parent=11 // pred_check_branch
          %674 = sbr.rel (%p672) target = $region28
        $region27: #{model_forward.1} parent=11 // pred_region
          _
        $region28: #{model_forward.1} parent=11 // pred_fallthru
          _
        // Predicated region
        $region29: #{model_forward.1} parent=11 // pred_check
          %p675 = pneg %p143
        $region30: #{model_forward.1} parent=11 // pred_check_branch
          %677 = sbr.rel (%p675) target = $region32
        $region31: #{model_forward.1} parent=11 // pred_region
          _
        $region32: #{model_forward.1} parent=11 // pred_fallthru
          _
        // Predicated region
        $region33: #{model_forward.1} parent=11 // pred_check
          %p678 = pneg %p580
        $region34: #{model_forward.1} parent=11 // pred_check_branch
          %680 = sbr.rel (%p678) target = $region36
        $region35: #{model_forward.1} parent=11 // pred_region
          _
        $region36: #{model_forward.1} parent=11 // pred_fallthru
          _
        // Predicated region
        $region37: #{model_forward.1} parent=11 // pred_check
          %p681 = pneg %p601
        $region38: #{model_forward.1} parent=11 // pred_check_branch
          %683 = sbr.rel (%p681) target = $region40
        $region39: #{model_forward.1} parent=11 // pred_region
          %685 = vsyncadd [#allocation7], 0
          %s687 = sshll.u32 %s22, 4
          %s688 = int_to_ptr.hbm [resolvable:$true] %s687
          %s689 = sshll.u32 [#allocation8], 4
          %s690 = int_to_ptr.vmem [resolvable:$true] %s689
          %692 = dma.hbm_to_vmem [thread:$0]  %s688, 16, %s690, [#allocation7]
        $region40: #{model_forward.1} parent=11 // pred_fallthru
          _
      $region12: #{model_forward.1} parent=5 // pred_fallthru
        _
      %p693 = scmp.lt.s32.totalorder %s38, 2
      // Predicated region
      $region41: #{model_forward.1} parent=5 // pred_check
        %p694 = pneg %p693
      $region42: #{model_forward.1} parent=5 // pred_check_branch
        %696 = sbr.rel (%p694) target = $region44
      $region43: #{model_forward.1} parent=5 // pred_region
        // Predicated region
        $region45: #{model_forward.1} parent=43 // pred_check
          %p697 = pneg %p163
        $region46: #{model_forward.1} parent=43 // pred_check_branch
          %699 = sbr.rel (%p697) target = $region48
        $region47: #{model_forward.1} parent=43 // pred_region
          %p700 = scmp.lt.s32.totalorder %s38, 1
          %s701 = scalar_select %p700, %s38, 1
          %s702 = scalar_lea.vmem %s5, %s701
        $region48: #{model_forward.1} parent=43 // pred_fallthru
          _
        // Predicated region
        $region49: #{model_forward.1} parent=43 // pred_check
          %p703 = pneg %p189
        $region50: #{model_forward.1} parent=43 // pred_check_branch
          %705 = sbr.rel (%p703) target = $region52
        $region51: #{model_forward.1} parent=43 // pred_region
          %p706 = scmp.lt.s32.totalorder %s38, 1
          %s707 = scalar_select %p706, %s38, 1
          %s708 = scalar_lea.vmem %s6, %s707
        $region52: #{model_forward.1} parent=43 // pred_fallthru
          _
        // Predicated region
        $region53: #{model_forward.1} parent=43 // pred_check
          %p709 = pneg %p215
        $region54: #{model_forward.1} parent=43 // pred_check_branch
          %711 = sbr.rel (%p709) target = $region56
        $region55: #{model_forward.1} parent=43 // pred_region
          %p712 = scmp.lt.s32.totalorder %s38, 1
          %s713 = scalar_select %p712, %s38, 1
          %s714 = smul.addr %s713, 16
          %s715 = smul.addr %s714, 4
          %s716 = scalar_lea.vmem %s7, %s715
        $region56: #{model_forward.1} parent=43 // pred_fallthru
          _
        // Predicated region
        $region57: #{model_forward.1} parent=43 // pred_check
          %p717 = pneg %p241
        $region58: #{model_forward.1} parent=43 // pred_check_branch
          %719 = sbr.rel (%p717) target = $region60
        $region59: #{model_forward.1} parent=43 // pred_region
          %p720 = scmp.lt.s32.totalorder %s38, 1
          %s721 = scalar_select %p720, %s38, 1
          %s722 = scalar_lea.vmem %s8, %s721
        $region60: #{model_forward.1} parent=43 // pred_fallthru
          _
        // Predicated region
        $region61: #{model_forward.1} parent=43 // pred_check
          %p723 = pneg %p267
        $region62: #{model_forward.1} parent=43 // pred_check_branch
          %725 = sbr.rel (%p723) target = $region64
        $region63: #{model_forward.1} parent=43 // pred_region
          %p726 = scmp.lt.s32.totalorder %s38, 1
          %s727 = scalar_select %p726, %s38, 1
          %s728 = smul.addr %s727, 16
          %s729 = smul.addr %s728, 4
          %s730 = scalar_lea.vmem %s9, %s729
        $region64: #{model_forward.1} parent=43 // pred_fallthru
          _
        // Predicated region
        $region65: #{model_forward.1} parent=43 // pred_check
          %p731 = pneg %p293
        $region66: #{model_forward.1} parent=43 // pred_check_branch
          %733 = sbr.rel (%p731) target = $region68
        $region67: #{model_forward.1} parent=43 // pred_region
          %p734 = scmp.lt.s32.totalorder %s38, 1
          %s735 = scalar_select %p734, %s38, 1
          %s736 = scalar_lea.vmem %s10, %s735
        $region68: #{model_forward.1} parent=43 // pred_fallthru
          _
        // Predicated region
        $region69: #{model_forward.1} parent=43 // pred_check
          %p737 = pneg %p319
        $region70: #{model_forward.1} parent=43 // pred_check_branch
          %739 = sbr.rel (%p737) target = $region72
        $region71: #{model_forward.1} parent=43 // pred_region
          %s740 = sand.u32 %s309, 1
          %s741 = scalar_lea.sflag [#allocation4], %s740
          %s742 = sand.u32 %s309, 1
          %s743 = smul.addr %s742, 64
          %s744 = scalar_lea.vmem [#allocation3], %s743
          %746 = vsyncadd %s741, 0
          %s747 = smul.addr %s38, 16
          %s748 = smul.addr %s747, 4
          %s749 = scalar_lea.hbm %s11, %s748
          %s750 = sshll.u32 %s749, 4
          %s751 = int_to_ptr.hbm [resolvable:$true] %s750
          %s752 = sshll.u32 %s744, 4
          %s753 = int_to_ptr.vmem [resolvable:$true] %s752
          %758 = dma.hbm_to_vmem [thread:$0]  %s751, 1024, %s753, %s741, 64, 64, 4
        $region72: #{model_forward.1} parent=43 // pred_fallthru
          _
        // Predicated region
        $region73: #{model_forward.1} parent=43 // pred_check
          %p759 = pneg %p345
        $region74: #{model_forward.1} parent=43 // pred_check_branch
          %761 = sbr.rel (%p759) target = $region76
        $region75: #{model_forward.1} parent=43 // pred_region
          %p762 = scmp.lt.s32.totalorder %s38, 1
          %s763 = scalar_select %p762, %s38, 1
          %s764 = scalar_lea.vmem %s12, %s763
        $region76: #{model_forward.1} parent=43 // pred_fallthru
          _
        // Predicated region
        $region77: #{model_forward.1} parent=43 // pred_check
          %p765 = pneg %p371
        $region78: #{model_forward.1} parent=43 // pred_check_branch
          %767 = sbr.rel (%p765) target = $region80
        $region79: #{model_forward.1} parent=43 // pred_region
          %s768 = sand.u32 %s38, 1
          %s769 = scalar_lea.sflag [#allocation7], %s768
          %s770 = sand.u32 %s361, 1
          %s771 = smul.addr %s770, 64
          %s772 = scalar_lea.vmem [#allocation6], %s771
          %774 = vsyncadd %s769, 0
          %s775 = smul.addr %s38, 16
          %s776 = smul.addr %s775, 4
          %s777 = scalar_lea.hbm %s13, %s776
          %s778 = sshll.u32 %s777, 4
          %s779 = int_to_ptr.hbm [resolvable:$true] %s778
          %s780 = sshll.u32 %s772, 4
          %s781 = int_to_ptr.vmem [resolvable:$true] %s780
          %786 = dma.hbm_to_vmem [thread:$0]  %s779, 1024, %s781, %s769, 64, 64, 4
        $region80: #{model_forward.1} parent=43 // pred_fallthru
          _
        // Predicated region
        $region81: #{model_forward.1} parent=43 // pred_check
          %p787 = pneg %p397
        $region82: #{model_forward.1} parent=43 // pred_check_branch
          %789 = sbr.rel (%p787) target = $region84
        $region83: #{model_forward.1} parent=43 // pred_region
          %p790 = scmp.lt.s32.totalorder %s38, 1
          %s791 = scalar_select %p790, %s38, 1
          %s792 = scalar_lea.vmem %s14, %s791
        $region84: #{model_forward.1} parent=43 // pred_fallthru
          _
        // Predicated region
        $region85: #{model_forward.1} parent=43 // pred_check
          %p793 = pneg %p423
        $region86: #{model_forward.1} parent=43 // pred_check_branch
          %795 = sbr.rel (%p793) target = $region88
        $region87: #{model_forward.1} parent=43 // pred_region
          %p796 = scmp.lt.s32.totalorder %s38, 1
          %s797 = scalar_select %p796, %s38, 1
          %s798 = scalar_lea.vmem %s15, %s797
        $region88: #{model_forward.1} parent=43 // pred_fallthru
          _
        // Predicated region
        $region89: #{model_forward.1} parent=43 // pred_check
          %p799 = pneg %p449
        $region90: #{model_forward.1} parent=43 // pred_check_branch
          %801 = sbr.rel (%p799) target = $region92
        $region91: #{model_forward.1} parent=43 // pred_region
          %p802 = scmp.lt.s32.totalorder %s38, 1
          %s803 = scalar_select %p802, %s38, 1
          %s804 = scalar_lea.vmem %s16, %s803
        $region92: #{model_forward.1} parent=43 // pred_fallthru
          _
        // Predicated region
        $region93: #{model_forward.1} parent=43 // pred_check
          %p805 = pneg %p475
        $region94: #{model_forward.1} parent=43 // pred_check_branch
          %807 = sbr.rel (%p805) target = $region96
        $region95: #{model_forward.1} parent=43 // pred_region
          %p808 = scmp.lt.s32.totalorder %s38, 1
          %s809 = scalar_select %p808, %s38, 1
          %s810 = smul.addr %s809, 32
          %s811 = smul.addr %s810, 4
          %s812 = scalar_lea.vmem %s17, %s811
        $region96: #{model_forward.1} parent=43 // pred_fallthru
          _
        // Predicated region
        $region97: #{model_forward.1} parent=43 // pred_check
          %p813 = pneg %p501
        $region98: #{model_forward.1} parent=43 // pred_check_branch
          %815 = sbr.rel (%p813) target = $region100
        $region99: #{model_forward.1} parent=43 // pred_region
          %p816 = scmp.lt.s32.totalorder %s38, 1
          %s817 = scalar_select %p816, %s38, 1
          %s818 = smul.addr %s817, 2
          %s819 = scalar_lea.vmem %s18, %s818
        $region100: #{model_forward.1} parent=43 // pred_fallthru
          _
        // Predicated region
        $region101: #{model_forward.1} parent=43 // pred_check
          %p820 = pneg %p527
        $region102: #{model_forward.1} parent=43 // pred_check_branch
          %822 = sbr.rel (%p820) target = $region104
        $region103: #{model_forward.1} parent=43 // pred_region
          %p823 = scmp.lt.s32.totalorder %s38, 1
          %s824 = scalar_select %p823, %s38, 1
          %s825 = smul.addr %s824, 32
          %s826 = smul.addr %s825, 4
          %s827 = scalar_lea.vmem %s19, %s826
        $region104: #{model_forward.1} parent=43 // pred_fallthru
          _
        // Predicated region
        $region105: #{model_forward.1} parent=43 // pred_check
          %p828 = pneg %p553
        $region106: #{model_forward.1} parent=43 // pred_check_branch
          %830 = sbr.rel (%p828) target = $region108
        $region107: #{model_forward.1} parent=43 // pred_region
          %p831 = scmp.lt.s32.totalorder %s38, 1
          %s832 = scalar_select %p831, %s38, 1
          %s833 = scalar_lea.vmem %s20, %s832
        $region108: #{model_forward.1} parent=43 // pred_fallthru
          _
      $region44: #{model_forward.1} parent=5 // pred_fallthru
        _
      %p834 = scmp.le.s32.totalorder 1, %s38
      %p835 = scmp.lt.s32.totalorder %s38, 3
      %p836 = pnand %p834, %p835
      %p837 = pneg %p836
      // Predicated region
      $region109: #{model_forward.1} parent=5 // pred_check
        _
      $region110: #{model_forward.1} parent=5 // pred_check_branch
        %839 = sbr.rel (%p836) target = $region112
      $region111: #{model_forward.1} parent=5 // pred_region
        %s840 = ssub.s32 %s38, 1
        %s841 = sand.u32 %s312, 1
        %s842 = scalar_lea.sflag [#allocation4], %s841
        %s843 = sand.u32 %s312, 1
        %s844 = smul.addr %s843, 64
        %s845 = scalar_lea.vmem [#allocation3], %s844
        // Predicated region
        $region113: #{model_forward.1} parent=111 // pred_check
          %p846 = pneg %p325
        $region114: #{model_forward.1} parent=111 // pred_check_branch
          %848 = sbr.rel (%p846) target = $region116
        $region115: #{model_forward.1} parent=111 // pred_region
          %850 = dma.done %s842, 1024
        $region116: #{model_forward.1} parent=111 // pred_fallthru
          _
        %s851 = sand.u32 %s43, 1
        %s852 = scalar_lea.sflag [#allocation7], %s851
        %s853 = sand.u32 %s364, 1
        %s854 = smul.addr %s853, 64
        %s855 = scalar_lea.vmem [#allocation6], %s854
        // Predicated region
        $region117: #{model_forward.1} parent=111 // pred_check
          %p856 = pneg %p377
        $region118: #{model_forward.1} parent=111 // pred_check_branch
          %858 = sbr.rel (%p856) target = $region120
        $region119: #{model_forward.1} parent=111 // pred_region
          %860 = dma.done %s852, 1024
        $region120: #{model_forward.1} parent=111 // pred_fallthru
          _
        // Predicated region
        $region121: #{model_forward.1} parent=111 // pred_check
          %p861 = pneg %p601
        $region122: #{model_forward.1} parent=111 // pred_check_branch
          %863 = sbr.rel (%p861) target = $region124
        $region123: #{model_forward.1} parent=111 // pred_region
          %865 = dma.done [#allocation7], 16
        $region124: #{model_forward.1} parent=111 // pred_fallthru
          _
        %p866 = pneg %p59
        %p867 = pneg %p56
        %p868 = pneg %p80
        %p869 = pneg %p77
        %p870 = pneg %p101
        %p871 = pneg %p98
        %p872 = pneg %p122
        %p873 = pneg %p119
        %p874 = pneg %p143
        %p875 = pneg %p140
        %p876 = scmp.lt.s32.totalorder %s43, 1
        %s877 = scalar_select %p876, %s43, 1
        %s878 = scalar_lea.vmem %s5, %s877
        %p879 = pneg %p169
        %p880 = pneg %p166
        %p881 = scmp.lt.s32.totalorder %s43, 1
        %s882 = scalar_select %p881, %s43, 1
        %s883 = scalar_lea.vmem %s6, %s882
        %p884 = pneg %p195
        %p885 = pneg %p192
        %p886 = scmp.lt.s32.totalorder %s43, 1
        %s887 = scalar_select %p886, %s43, 1
        %s888 = smul.addr %s887, 16
        %s889 = smul.addr %s888, 4
        %s890 = scalar_lea.vmem %s7, %s889
        %p891 = pneg %p221
        %p892 = pneg %p218
        %p893 = scmp.lt.s32.totalorder %s43, 1
        %s894 = scalar_select %p893, %s43, 1
        %s895 = scalar_lea.vmem %s8, %s894
        %p896 = pneg %p247
        %p897 = pneg %p244
        %p898 = scmp.lt.s32.totalorder %s43, 1
        %s899 = scalar_select %p898, %s43, 1
        %s900 = smul.addr %s899, 16
        %s901 = smul.addr %s900, 4
        %s902 = scalar_lea.vmem %s9, %s901
        %p903 = pneg %p273
        %p904 = pneg %p270
        %p905 = scmp.lt.s32.totalorder %s43, 1
        %s906 = scalar_select %p905, %s43, 1
        %s907 = scalar_lea.vmem %s10, %s906
        %p908 = pneg %p299
        %p909 = pneg %p296
        %s910 = sand.u32 %s312, 1
        %s911 = scalar_lea.sflag [#allocation4], %s910
        %s912 = sand.u32 %s312, 1
        %s913 = smul.addr %s912, 64
        %s914 = scalar_lea.vmem [#allocation3], %s913
        %p915 = pneg %p325
        %p916 = pneg %p322
        %p917 = scmp.lt.s32.totalorder %s43, 1
        %s918 = scalar_select %p917, %s43, 1
        %s919 = scalar_lea.vmem %s12, %s918
        %p920 = pneg %p351
        %p921 = pneg %p348
        %s922 = sand.u32 %s43, 1
        %s923 = scalar_lea.sflag [#allocation7], %s922
        %s924 = sand.u32 %s364, 1
        %s925 = smul.addr %s924, 64
        %s926 = scalar_lea.vmem [#allocation6], %s925
        %p927 = pneg %p377
        %p928 = pneg %p374
        %p929 = scmp.lt.s32.totalorder %s43, 1
        %s930 = scalar_select %p929, %s43, 1
        %s931 = scalar_lea.vmem %s14, %s930
        %p932 = pneg %p403
        %p933 = pneg %p400
        %p934 = scmp.lt.s32.totalorder %s43, 1
        %s935 = scalar_select %p934, %s43, 1
        %s936 = scalar_lea.vmem %s15, %s935
        %p937 = pneg %p429
        %p938 = pneg %p426
        %p939 = scmp.lt.s32.totalorder %s43, 1
        %s940 = scalar_select %p939, %s43, 1
        %s941 = scalar_lea.vmem %s16, %s940
        %p942 = pneg %p455
        %p943 = pneg %p452
        %p944 = scmp.lt.s32.totalorder %s43, 1
        %s945 = scalar_select %p944, %s43, 1
        %s946 = smul.addr %s945, 32
        %s947 = smul.addr %s946, 4
        %s948 = scalar_lea.vmem %s17, %s947
        %p949 = pneg %p481
        %p950 = pneg %p478
        %p951 = scmp.lt.s32.totalorder %s43, 1
        %s952 = scalar_select %p951, %s43, 1
        %s953 = smul.addr %s952, 2
        %s954 = scalar_lea.vmem %s18, %s953
        %p955 = pneg %p507
        %p956 = pneg %p504
        %p957 = scmp.lt.s32.totalorder %s43, 1
        %s958 = scalar_select %p957, %s43, 1
        %s959 = smul.addr %s958, 32
        %s960 = smul.addr %s959, 4
        %s961 = scalar_lea.vmem %s19, %s960
        %p962 = pneg %p533
        %p963 = pneg %p530
        %p964 = scmp.lt.s32.totalorder %s43, 1
        %s965 = scalar_select %p964, %s43, 1
        %s966 = scalar_lea.vmem %s20, %s965
        %p967 = pneg %p559
        %p968 = pneg %p556
        %p969 = pneg %p580
        %p970 = pneg %p577
        %p971 = pneg %p601
        %p972 = pneg %p598
        %p973 = pneg %p622
        %p974 = pneg %p619
        %p975 = pneg %p648
        %p976 = pneg %p645
        %p977 = scmp.lt.s32.totalorder %s43, 1
        %s978 = scalar_select %p977, %s43, 1
        %s979 = smul.addr %s978, 2
        %s980 = scalar_lea.vmem %s24, %s979
        %p981 = scmp.lt.s32.totalorder %s43, 1
        %s982 = scalar_select %p981, %s43, 1
        %s983 = scalar_lea.vmem %s5, %s982
        %p984 = scmp.lt.s32.totalorder %s43, 1
        %s985 = scalar_select %p984, %s43, 1
        %s986 = scalar_lea.vmem %s6, %s985
        %p987 = scmp.lt.s32.totalorder %s43, 1
        %s988 = scalar_select %p987, %s43, 1
        %s989 = smul.addr %s988, 16
        %s990 = smul.addr %s989, 4
        %s991 = scalar_lea.vmem %s7, %s990
        %p992 = scmp.lt.s32.totalorder %s43, 1
        %s993 = scalar_select %p992, %s43, 1
        %s994 = scalar_lea.vmem %s8, %s993
        %p995 = scmp.lt.s32.totalorder %s43, 1
        %s996 = scalar_select %p995, %s43, 1
        %s997 = smul.addr %s996, 16
        %s998 = smul.addr %s997, 4
        %s999 = scalar_lea.vmem %s9, %s998
        %p1000 = scmp.lt.s32.totalorder %s43, 1
        %s1001 = scalar_select %p1000, %s43, 1
        %s1002 = scalar_lea.vmem %s10, %s1001
        %p1003 = scmp.lt.s32.totalorder %s43, 1
        %s1004 = scalar_select %p1003, %s43, 1
        %s1005 = scalar_lea.vmem %s12, %s1004
        %p1006 = scmp.lt.s32.totalorder %s43, 1
        %s1007 = scalar_select %p1006, %s43, 1
        %s1008 = scalar_lea.vmem %s14, %s1007
        %p1009 = scmp.lt.s32.totalorder %s43, 1
        %s1010 = scalar_select %p1009, %s43, 1
        %s1011 = scalar_lea.vmem %s15, %s1010
        %p1012 = scmp.lt.s32.totalorder %s43, 1
        %s1013 = scalar_select %p1012, %s43, 1
        %s1014 = scalar_lea.vmem %s16, %s1013
        %p1015 = scmp.lt.s32.totalorder %s43, 1
        %s1016 = scalar_select %p1015, %s43, 1
        %s1017 = smul.addr %s1016, 32
        %s1018 = smul.addr %s1017, 4
        %s1019 = scalar_lea.vmem %s17, %s1018
        %p1020 = scmp.lt.s32.totalorder %s43, 1
        %s1021 = scalar_select %p1020, %s43, 1
        %s1022 = smul.addr %s1021, 2
        %s1023 = scalar_lea.vmem %s18, %s1022
        %p1024 = scmp.lt.s32.totalorder %s43, 1
        %s1025 = scalar_select %p1024, %s43, 1
        %s1026 = smul.addr %s1025, 32
        %s1027 = smul.addr %s1026, 4
        %s1028 = scalar_lea.vmem %s19, %s1027
        %p1029 = scmp.lt.s32.totalorder %s43, 1
        %s1030 = scalar_select %p1029, %s43, 1
        %s1031 = scalar_lea.vmem %s20, %s1030
        %p1032 = scmp.lt.s32.totalorder %s43, 1
        %s1033 = scalar_select %p1032, %s43, 1
        %s1034 = smul.addr %s1033, 2
        %s1035 = scalar_lea.vmem %s24, %s1034
        %p1037 = scmp.eq.s32.totalorder %s43, 0
        // Predicated region
        $region125: #{model_forward.1} parent=111 // pred_check
          %p1038 = pneg %p1037
        $region126: #{model_forward.1} parent=111 // pred_check_branch
          %1040 = sbr.rel (%p1038) target = $region128
        $region127: #{model_forward.1} parent=111 // pred_region
          %v1041 = vld [vmem:[%s0] sm:$0xff]
          %v1042 = vld [vmem:[%s0 + $0x8] sm:$0xff]
          %v1043 = vld [vmem:[%s0 + $0x10] sm:$0xff]
          %v1044 = vld [vmem:[%s0 + $0x18] sm:$0xff]
          %v1045 = vld [vmem:[%s0 + $0x20] sm:$0xff]
          %v1046 = vld [vmem:[%s0 + $0x28] sm:$0xff]
          %v1047 = vld [vmem:[%s2] sm:$0xf]
          %v1048 = vld [vmem:[%s2 + $0x4] sm:$0xf]
          %v1049 = vld [vmem:[%s2 + $0x8] sm:$0xf]
          %v1050 = vld [vmem:[%s2 + $0xc] sm:$0xf]
          %v1051 = vld [vmem:[%s2 + $0x10] sm:$0xf]
          %v1052 = vld [vmem:[%s2 + $0x14] sm:$0xf]
          %v1053 = vld [vmem:[%s2 + $0x18] sm:$0xf]
          %v1054 = vld [vmem:[%s2 + $0x1c] sm:$0xf]
          %v1055 = vld [vmem:[%s2 + $0x20] sm:$0xf]
          %v1056 = vld [vmem:[%s2 + $0x24] sm:$0xf]
          %v1057 = vld [vmem:[%s2 + $0x28] sm:$0xf]
          %v1058 = vld [vmem:[%s2 + $0x2c] sm:$0xf]
          %v1059 = vld [vmem:[%s2 + $0x30] sm:$0xf]
          %v1060 = vld [vmem:[%s2 + $0x34] sm:$0xf]
          %v1061 = vld [vmem:[%s2 + $0x38] sm:$0xf]
          %v1062 = vld [vmem:[%s2 + $0x3c] sm:$0xf]
          %v1063 = vld [vmem:[%s2 + $0x40] sm:$0xf]
          %v1064 = vld [vmem:[%s2 + $0x44] sm:$0xf]
          %v1065 = vld [vmem:[%s2 + $0x48] sm:$0xf]
          %v1066 = vld [vmem:[%s2 + $0x4c] sm:$0xf]
          %v1067 = vld [vmem:[%s2 + $0x50] sm:$0xf]
          %v1068 = vld [vmem:[%s2 + $0x54] sm:$0xf]
          %v1069 = vld [vmem:[%s2 + $0x58] sm:$0xf]
          %v1070 = vld [vmem:[%s2 + $0x5c] sm:$0xf]
          %v1071 = vld [vmem:[%s2 + $0x60] sm:$0xf]
          %v1072 = vld [vmem:[%s2 + $0x64] sm:$0xf]
          %v1073 = vld [vmem:[%s2 + $0x68] sm:$0xf]
          %v1074 = vld [vmem:[%s2 + $0x6c] sm:$0xf]
          %v1075 = vld [vmem:[%s2 + $0x70] sm:$0xf]
          %v1076 = vld [vmem:[%s2 + $0x74] sm:$0xf]
          %v1077 = vld [vmem:[%s2 + $0x78] sm:$0xf]
          %v1078 = vld [vmem:[%s2 + $0x7c] sm:$0xf]
          %v1079 = vld [vmem:[%s2 + $0x80] sm:$0xf]
          %v1080 = vld [vmem:[%s2 + $0x84] sm:$0xf]
          %v1081 = vld [vmem:[%s2 + $0x88] sm:$0xf]
          %v1082 = vld [vmem:[%s2 + $0x8c] sm:$0xf]
          %v1083 = vld [vmem:[%s2 + $0x90] sm:$0xf]
          %v1084 = vld [vmem:[%s2 + $0x94] sm:$0xf]
          %v1085 = vld [vmem:[%s2 + $0x98] sm:$0xf]
          %v1086 = vld [vmem:[%s2 + $0x9c] sm:$0xf]
          %v1087 = vld [vmem:[%s2 + $0xa0] sm:$0xf]
          %v1088 = vld [vmem:[%s2 + $0xa4] sm:$0xf]
          %v1089 = vld [vmem:[%s2 + $0xa8] sm:$0xf]
          %v1090 = vld [vmem:[%s2 + $0xac] sm:$0xf]
          %v1091 = vld [vmem:[%s2 + $0xb0] sm:$0xf]
          %v1092 = vld [vmem:[%s2 + $0xb4] sm:$0xf]
          %v1093 = vld [vmem:[%s2 + $0xb8] sm:$0xf]
          %v1094 = vld [vmem:[%s2 + $0xbc] sm:$0xf]
          %v1095 = vld [vmem:[%s2 + $0xc0] sm:$0xf]
          %v1096 = vld [vmem:[%s2 + $0xc4] sm:$0xf]
          %v1097 = vld [vmem:[%s2 + $0xc8] sm:$0xf]
          %v1098 = vld [vmem:[%s2 + $0xcc] sm:$0xf]
          %v1099 = vld [vmem:[%s2 + $0xd0] sm:$0xf]
          %v1100 = vld [vmem:[%s2 + $0xd4] sm:$0xf]
          %v1101 = vld [vmem:[%s2 + $0xd8] sm:$0xf]
          %v1102 = vld [vmem:[%s2 + $0xdc] sm:$0xf]
          %v1103 = vld [vmem:[%s2 + $0xe0] sm:$0xf]
          %v1104 = vld [vmem:[%s2 + $0xe4] sm:$0xf]
          %v1105 = vld [vmem:[%s2 + $0xe8] sm:$0xf]
          %v1106 = vld [vmem:[%s2 + $0xec] sm:$0xf]
          %v1107 = vld [vmem:[%s2 + $0xf0] sm:$0xf]
          %v1108 = vld [vmem:[%s2 + $0xf4] sm:$0xf]
          %v1109 = vld [vmem:[%s2 + $0xf8] sm:$0xf]
          %v1110 = vld [vmem:[%s2 + $0xfc] sm:$0xf]
          %v1111 = vld [vmem:[%s2 + $0x100] sm:$0xf]
          %v1112 = vld [vmem:[%s2 + $0x104] sm:$0xf]
          %v1113 = vld [vmem:[%s2 + $0x108] sm:$0xf]
          %v1114 = vld [vmem:[%s2 + $0x10c] sm:$0xf]
          %v1115 = vld [vmem:[%s2 + $0x110] sm:$0xf]
          %v1116 = vld [vmem:[%s2 + $0x114] sm:$0xf]
          %v1117 = vld [vmem:[%s2 + $0x118] sm:$0xf]
          %v1118 = vld [vmem:[%s2 + $0x11c] sm:$0xf]
          %v1119 = vld [vmem:[%s2 + $0x120] sm:$0xf]
          %v1120 = vld [vmem:[%s2 + $0x124] sm:$0xf]
          %v1121 = vld [vmem:[%s2 + $0x128] sm:$0xf]
          %v1122 = vld [vmem:[%s2 + $0x12c] sm:$0xf]
          %v1123 = vld [vmem:[%s2 + $0x130] sm:$0xf]
          %v1124 = vld [vmem:[%s2 + $0x134] sm:$0xf]
          %v1125 = vld [vmem:[%s2 + $0x138] sm:$0xf]
          %v1126 = vld [vmem:[%s2 + $0x13c] sm:$0xf]
          %v1127 = vld [vmem:[%s2 + $0x140] sm:$0xf]
          %v1128 = vld [vmem:[%s2 + $0x144] sm:$0xf]
          %v1129 = vld [vmem:[%s2 + $0x148] sm:$0xf]
          %v1130 = vld [vmem:[%s2 + $0x14c] sm:$0xf]
          %v1131 = vld [vmem:[%s2 + $0x150] sm:$0xf]
          %v1132 = vld [vmem:[%s2 + $0x154] sm:$0xf]
          %v1133 = vld [vmem:[%s2 + $0x158] sm:$0xf]
          %v1134 = vld [vmem:[%s2 + $0x15c] sm:$0xf]
          %v1135 = vld [vmem:[%s2 + $0x160] sm:$0xf]
          %v1136 = vld [vmem:[%s2 + $0x164] sm:$0xf]
          %v1137 = vld [vmem:[%s2 + $0x168] sm:$0xf]
          %v1138 = vld [vmem:[%s2 + $0x16c] sm:$0xf]
          %v1139 = vld [vmem:[%s2 + $0x170] sm:$0xf]
          %v1140 = vld [vmem:[%s2 + $0x174] sm:$0xf]
          %v1141 = vld [vmem:[%s2 + $0x178] sm:$0xf]
          %v1142 = vld [vmem:[%s2 + $0x17c] sm:$0xf]
          %v1149 = vunpack.c.l.b16 %v1041
          %v1150 = vunpack.c.h.b16 %v1041
          %v1151 = vunpack.c.l.b16 %v1042
          %v1152 = vunpack.c.h.b16 %v1042
          %v1153 = vunpack.c.l.b16 %v1043
          %v1154 = vunpack.c.h.b16 %v1043
          %v1155 = vunpack.c.l.b16 %v1044
          %v1156 = vunpack.c.h.b16 %v1044
          %v1157 = vunpack.c.l.b16 %v1045
          %v1158 = vunpack.c.h.b16 %v1045
          %v1159 = vunpack.c.l.b16 %v1046
          %v1160 = vunpack.c.h.b16 %v1046
          %v1161 = vpack.c.b16 %v1155, %v1149
          %v1162 = vpack.c.b16 %v1156, %v1150
          %v1163 = vpack.c.b16 %v1157, %v1151
          %v1164 = vpack.c.b16 %v1158, %v1152
          %v1165 = vpack.c.b16 %v1159, %v1153
          %v1166 = vpack.c.b16 %v1160, %v1154
          %v1269 = vunpack.c.l.b16 %v1047
          %v1270 = vunpack.c.l.b16 %v1048
          %v1271 = vunpack.c.l.b16 %v1049
          %v1272 = vunpack.c.l.b16 %v1050
          %v1273 = vunpack.c.l.b16 %v1051
          %v1274 = vunpack.c.l.b16 %v1052
          %v1275 = vunpack.c.l.b16 %v1053
          %v1276 = vunpack.c.l.b16 %v1054
          %v1277 = vunpack.c.l.b16 %v1055
          %v1278 = vunpack.c.l.b16 %v1056
          %v1279 = vunpack.c.l.b16 %v1057
          %v1280 = vunpack.c.l.b16 %v1058
          %v1281 = vunpack.c.l.b16 %v1059
          %v1282 = vunpack.c.l.b16 %v1060
          %v1283 = vunpack.c.l.b16 %v1061
          %v1284 = vunpack.c.l.b16 %v1062
          %v1285 = vunpack.c.l.b16 %v1063
          %v1286 = vunpack.c.l.b16 %v1064
          %v1287 = vunpack.c.l.b16 %v1065
          %v1288 = vunpack.c.l.b16 %v1066
          %v1289 = vunpack.c.l.b16 %v1067
          %v1290 = vunpack.c.l.b16 %v1068
          %v1291 = vunpack.c.l.b16 %v1069
          %v1292 = vunpack.c.l.b16 %v1070
          %v1293 = vunpack.c.l.b16 %v1071
          %v1294 = vunpack.c.l.b16 %v1072
          %v1295 = vunpack.c.l.b16 %v1073
          %v1296 = vunpack.c.l.b16 %v1074
          %v1297 = vunpack.c.l.b16 %v1075
          %v1298 = vunpack.c.l.b16 %v1076
          %v1299 = vunpack.c.l.b16 %v1077
          %v1300 = vunpack.c.l.b16 %v1078
          %v1301 = vunpack.c.l.b16 %v1079
          %v1302 = vunpack.c.l.b16 %v1080
          %v1303 = vunpack.c.l.b16 %v1081
          %v1304 = vunpack.c.l.b16 %v1082
          %v1305 = vunpack.c.l.b16 %v1083
          %v1306 = vunpack.c.l.b16 %v1084
          %v1307 = vunpack.c.l.b16 %v1085
          %v1308 = vunpack.c.l.b16 %v1086
          %v1309 = vunpack.c.l.b16 %v1087
          %v1310 = vunpack.c.l.b16 %v1088
          %v1311 = vunpack.c.l.b16 %v1089
          %v1312 = vunpack.c.l.b16 %v1090
          %v1313 = vunpack.c.l.b16 %v1091
          %v1314 = vunpack.c.l.b16 %v1092
          %v1315 = vunpack.c.l.b16 %v1093
          %v1316 = vunpack.c.l.b16 %v1094
          %v1317 = vunpack.c.l.b16 %v1095
          %v1318 = vunpack.c.l.b16 %v1096
          %v1319 = vunpack.c.l.b16 %v1097
          %v1320 = vunpack.c.l.b16 %v1098
          %v1321 = vunpack.c.l.b16 %v1099
          %v1322 = vunpack.c.l.b16 %v1100
          %v1323 = vunpack.c.l.b16 %v1101
          %v1324 = vunpack.c.l.b16 %v1102
          %v1325 = vunpack.c.l.b16 %v1103
          %v1326 = vunpack.c.l.b16 %v1104
          %v1327 = vunpack.c.l.b16 %v1105
          %v1328 = vunpack.c.l.b16 %v1106
          %v1329 = vunpack.c.l.b16 %v1107
          %v1330 = vunpack.c.l.b16 %v1108
          %v1331 = vunpack.c.l.b16 %v1109
          %v1332 = vunpack.c.l.b16 %v1110
          %v1333 = vunpack.c.l.b16 %v1111
          %v1334 = vunpack.c.l.b16 %v1112
          %v1335 = vunpack.c.l.b16 %v1113
          %v1336 = vunpack.c.l.b16 %v1114
          %v1337 = vunpack.c.l.b16 %v1115
          %v1338 = vunpack.c.l.b16 %v1116
          %v1339 = vunpack.c.l.b16 %v1117
          %v1340 = vunpack.c.l.b16 %v1118
          %v1341 = vunpack.c.l.b16 %v1119
          %v1342 = vunpack.c.l.b16 %v1120
          %v1343 = vunpack.c.l.b16 %v1121
          %v1344 = vunpack.c.l.b16 %v1122
          %v1345 = vunpack.c.l.b16 %v1123
          %v1346 = vunpack.c.l.b16 %v1124
          %v1347 = vunpack.c.l.b16 %v1125
          %v1348 = vunpack.c.l.b16 %v1126
          %v1349 = vunpack.c.l.b16 %v1127
          %v1350 = vunpack.c.l.b16 %v1128
          %v1351 = vunpack.c.l.b16 %v1129
          %v1352 = vunpack.c.l.b16 %v1130
          %v1353 = vunpack.c.l.b16 %v1131
          %v1354 = vunpack.c.l.b16 %v1132
          %v1355 = vunpack.c.l.b16 %v1133
          %v1356 = vunpack.c.l.b16 %v1134
          %v1357 = vunpack.c.l.b16 %v1135
          %v1358 = vunpack.c.l.b16 %v1136
          %v1359 = vunpack.c.l.b16 %v1137
          %v1360 = vunpack.c.l.b16 %v1138
          %v1361 = vunpack.c.l.b16 %v1139
          %v1362 = vunpack.c.l.b16 %v1140
          %v1363 = vunpack.c.l.b16 %v1141
          %v1364 = vunpack.c.l.b16 %v1142
          %v1365 = vpack.c.b16 %v1270, %v1269
          %v1366 = vpack.c.b16 %v1272, %v1271
          %v1367 = vpack.c.b16 %v1274, %v1273
          %v1368 = vpack.c.b16 %v1276, %v1275
          %v1369 = vpack.c.b16 %v1278, %v1277
          %v1370 = vpack.c.b16 %v1280, %v1279
          %v1371 = vpack.c.b16 %v1282, %v1281
          %v1372 = vpack.c.b16 %v1284, %v1283
          %v1373 = vpack.c.b16 %v1286, %v1285
          %v1374 = vpack.c.b16 %v1288, %v1287
          %v1375 = vpack.c.b16 %v1290, %v1289
          %v1376 = vpack.c.b16 %v1292, %v1291
          %v1377 = vpack.c.b16 %v1294, %v1293
          %v1378 = vpack.c.b16 %v1296, %v1295
          %v1379 = vpack.c.b16 %v1298, %v1297
          %v1380 = vpack.c.b16 %v1300, %v1299
          %v1381 = vpack.c.b16 %v1302, %v1301
          %v1382 = vpack.c.b16 %v1304, %v1303
          %v1383 = vpack.c.b16 %v1306, %v1305
          %v1384 = vpack.c.b16 %v1308, %v1307
          %v1385 = vpack.c.b16 %v1310, %v1309
          %v1386 = vpack.c.b16 %v1312, %v1311
          %v1387 = vpack.c.b16 %v1314, %v1313
          %v1388 = vpack.c.b16 %v1316, %v1315
          %v1389 = vpack.c.b16 %v1318, %v1317
          %v1390 = vpack.c.b16 %v1320, %v1319
          %v1391 = vpack.c.b16 %v1322, %v1321
          %v1392 = vpack.c.b16 %v1324, %v1323
          %v1393 = vpack.c.b16 %v1326, %v1325
          %v1394 = vpack.c.b16 %v1328, %v1327
          %v1395 = vpack.c.b16 %v1330, %v1329
          %v1396 = vpack.c.b16 %v1332, %v1331
          %v1397 = vpack.c.b16 %v1334, %v1333
          %v1398 = vpack.c.b16 %v1336, %v1335
          %v1399 = vpack.c.b16 %v1338, %v1337
          %v1400 = vpack.c.b16 %v1340, %v1339
          %v1401 = vpack.c.b16 %v1342, %v1341
          %v1402 = vpack.c.b16 %v1344, %v1343
          %v1403 = vpack.c.b16 %v1346, %v1345
          %v1404 = vpack.c.b16 %v1348, %v1347
          %v1405 = vpack.c.b16 %v1350, %v1349
          %v1406 = vpack.c.b16 %v1352, %v1351
          %v1407 = vpack.c.b16 %v1354, %v1353
          %v1408 = vpack.c.b16 %v1356, %v1355
          %v1409 = vpack.c.b16 %v1358, %v1357
          %v1410 = vpack.c.b16 %v1360, %v1359
          %v1411 = vpack.c.b16 %v1362, %v1361
          %v1412 = vpack.c.b16 %v1364, %v1363
          %1461 = vmatpush.bf16.msra.mxu0 %v1372
          %1462 = vmatpush.bf16.msra.mxu0 %v1371
          %1463 = vmatpush.bf16.msra.mxu0 %v1370
          %1464 = vmatpush.bf16.msra.mxu0 %v1369
          %1465 = vmatpush.bf16.msra.mxu0 %v1368
          %1466 = vmatpush.bf16.msra.mxu0 %v1367
          %1467 = vmatpush.bf16.msra.mxu0 %v1366
          %1468 = vmatpush.bf16.msra.mxu0 %v1365
          %1469 = vmatmul.bf16.gmra.mxu0 %v1161
          %v1470 = vpop.f32.mrf.mxu0
          %v1471 = vadd.f32 0.0, %v1470
          %v1472 = vpop.f32.mrf.mxu0
          %v1473 = vadd.f32 0.0, %v1472
          %1474 = vdwg.mxu0
          %1475 = vmatpush.bf16.msra.mxu0 %v1380
          %1476 = vmatpush.bf16.msra.mxu0 %v1379
          %1477 = vmatpush.bf16.msra.mxu0 %v1378
          %1478 = vmatpush.bf16.msra.mxu0 %v1377
          %1479 = vmatpush.bf16.msra.mxu0 %v1376
          %1480 = vmatpush.bf16.msra.mxu0 %v1375
          %1481 = vmatpush.bf16.msra.mxu0 %v1374
          %1482 = vmatpush.bf16.msra.mxu0 %v1373
          %1483 = vmatmul.bf16.gmra.mxu0 %v1162
          %v1484 = vpop.f32.mrf.mxu0
          %v1485 = vadd.f32 %v1471, %v1484
          %v1486 = vpop.f32.mrf.mxu0
          %v1487 = vadd.f32 %v1473, %v1486
          %1488 = vdwg.mxu0
          %1489 = vmatpush.bf16.msra.mxu0 %v1388
          %1490 = vmatpush.bf16.msra.mxu0 %v1387
          %1491 = vmatpush.bf16.msra.mxu0 %v1386
          %1492 = vmatpush.bf16.msra.mxu0 %v1385
          %1493 = vmatpush.bf16.msra.mxu0 %v1384
          %1494 = vmatpush.bf16.msra.mxu0 %v1383
          %1495 = vmatpush.bf16.msra.mxu0 %v1382
          %1496 = vmatpush.bf16.msra.mxu0 %v1381
          %1497 = vmatmul.bf16.gmra.mxu0 %v1163
          %v1498 = vpop.f32.mrf.mxu0
          %v1499 = vadd.f32 %v1485, %v1498
          %v1500 = vpop.f32.mrf.mxu0
          %v1501 = vadd.f32 %v1487, %v1500
          %1502 = vdwg.mxu0
          %1503 = vmatpush.bf16.msra.mxu0 %v1396
          %1504 = vmatpush.bf16.msra.mxu0 %v1395
          %1505 = vmatpush.bf16.msra.mxu0 %v1394
          %1506 = vmatpush.bf16.msra.mxu0 %v1393
          %1507 = vmatpush.bf16.msra.mxu0 %v1392
          %1508 = vmatpush.bf16.msra.mxu0 %v1391
          %1509 = vmatpush.bf16.msra.mxu0 %v1390
          %1510 = vmatpush.bf16.msra.mxu0 %v1389
          %1511 = vmatmul.bf16.gmra.mxu0 %v1164
          %v1512 = vpop.f32.mrf.mxu0
          %v1513 = vadd.f32 %v1499, %v1512
          %v1514 = vpop.f32.mrf.mxu0
          %v1515 = vadd.f32 %v1501, %v1514
          %1516 = vdwg.mxu0
          %1517 = vmatpush.bf16.msra.mxu0 %v1404
          %1518 = vmatpush.bf16.msra.mxu0 %v1403
          %1519 = vmatpush.bf16.msra.mxu0 %v1402
          %1520 = vmatpush.bf16.msra.mxu0 %v1401
          %1521 = vmatpush.bf16.msra.mxu0 %v1400
          %1522 = vmatpush.bf16.msra.mxu0 %v1399
          %1523 = vmatpush.bf16.msra.mxu0 %v1398
          %1524 = vmatpush.bf16.msra.mxu0 %v1397
          %1525 = vmatmul.bf16.gmra.mxu0 %v1165
          %v1526 = vpop.f32.mrf.mxu0
          %v1527 = vadd.f32 %v1513, %v1526
          %v1528 = vpop.f32.mrf.mxu0
          %v1529 = vadd.f32 %v1515, %v1528
          %1530 = vdwg.mxu0
          %1531 = vmatpush.bf16.msra.mxu0 %v1412
          %1532 = vmatpush.bf16.msra.mxu0 %v1411
          %1533 = vmatpush.bf16.msra.mxu0 %v1410
          %1534 = vmatpush.bf16.msra.mxu0 %v1409
          %1535 = vmatpush.bf16.msra.mxu0 %v1408
          %1536 = vmatpush.bf16.msra.mxu0 %v1407
          %1537 = vmatpush.bf16.msra.mxu0 %v1406
          %1538 = vmatpush.bf16.msra.mxu0 %v1405
          %1539 = vmatmul.bf16.gmra.mxu0 %v1166
          %v1540 = vpop.f32.mrf.mxu0
          %v1541 = vadd.f32 %v1527, %v1540
          %v1542 = vpop.f32.mrf.mxu0
          %v1543 = vadd.f32 %v1529, %v1542
          %1544 = vdwg.mxu0
          %v1545 = vld [vmem:[%s1] sm:$0xff]
          %v1546 = vadd.f32 %v1541, %v1545
          %v1547 = vadd.f32 %v1543, %v1545
          %v1548 = vld [vmem:[%s3] sm:$0x1]
          %v1549 = vld [vmem:[%s4] sm:$0x1]
          %1550 = vadd.xlane.f32.xlu0 %v1546
          %v1551 = vpop.xlane.xlu0 %1550
          %1552 = vadd.xlane.f32.xlu0 %v1547
          %v1553 = vpop.xlane.xlu0 %1552
          %v1554 = vrcp.pop 128.0
          %v1555 = vmul.f32 128.0, %v1554
          %v1556 = vsub.f32 1.0, %v1555
          %v1557 = vmul.f32 %v1554, %v1556
          %v1558 = vadd.f32 %v1554, %v1557
          %vm1559 = vweird.f32 %v1554
          %v1560 = vsel %vm1559, %v1554, %v1558
          %v1561 = vmul.f32 %v1551, %v1560
          %v1562 = vmul.f32 %v1553, %v1560
          %v1563 = vsub.f32 %v1546, %v1561
          %v1564 = vsub.f32 %v1547, %v1562
          %v1565 = vmul.f32 %v1563, %v1563
          %v1566 = vmul.f32 %v1564, %v1564
          %1567 = vadd.xlane.f32.xlu0 %v1565
          %v1568 = vpop.xlane.xlu0 %1567
          %1569 = vadd.xlane.f32.xlu0 %v1566
          %v1570 = vpop.xlane.xlu0 %1569
          %v1571 = vmul.f32 %v1568, %v1560
          %v1572 = vmul.f32 %v1570, %v1560
          %v1573 = vadd.f32 %v1571, 1e-05
          %v1574 = vadd.f32 %v1572, 1e-05
          %v1575 = vrsqrt.pop %v1573
          %v1576 = vmul.f32 %v1575, %v1573
          %v1577 = vmul.f32 %v1576, %v1575
          %v1578 = vmul.f32 0.5, %v1577
          %v1579 = vsub.f32 1.5, %v1578
          %v1580 = vmul.f32 %v1575, %v1579
          %vm1581 = vweird.f32 %v1573
          %vm1582 = vweird.f32 %v1575
          %vm1583 = vmor %vm1581, %vm1582
          %v1584 = vsel %vm1583, %v1575, %v1580
          %v1585 = vrsqrt.pop %v1574
          %v1586 = vmul.f32 %v1585, %v1574
          %v1587 = vmul.f32 %v1586, %v1585
          %v1588 = vmul.f32 0.5, %v1587
          %v1589 = vsub.f32 1.5, %v1588
          %v1590 = vmul.f32 %v1585, %v1589
          %vm1591 = vweird.f32 %v1574
          %vm1592 = vweird.f32 %v1585
          %vm1593 = vmor %vm1591, %vm1592
          %v1594 = vsel %vm1593, %v1585, %v1590
          %v1595 = vmul.f32 %v1563, %v1584
          %v1596 = vmul.f32 %v1564, %v1594
          %v1598 = vperm.slane %v1548, 0
          %v1600 = vmul.f32 %v1595, %v1598
          %v1601 = vmul.f32 %v1596, %v1598
          %v1603 = vperm.slane %v1549, 0
          %v1605 = vadd.f32 %v1600, %v1603
          %v1606 = vadd.f32 %v1601, %v1603
          %1607 = vst [vmem:[#allocation2] sm:$0xff] %v1605
          %1608 = vst [vmem:[#allocation2 + $0x8] sm:$0xff] %v1606
        $region128: #{model_forward.1} parent=111 // pred_fallthru
          _
        %v1609 = vld [vmem:[#allocation2] sm:$0xff]
        %v1610 = vld [vmem:[#allocation2 + $0x8] sm:$0xff]
        %v1611 = vlaneseq
        %v1612 = vand.u32 %v1611, 127
        %vm1613 = vcmp.lt.s32.totalorder %v1612, 5
        %v1614 = vsel %vm1613, 0.0, -1e+30
        %v1615 = vld [vmem:[%s983] sm:$0x1]
        %v1616 = vld [vmem:[%s986] sm:$0x1]
        %1617 = vadd.xlane.f32.xlu0 %v1609
        %v1618 = vpop.xlane.xlu0 %1617
        %1619 = vadd.xlane.f32.xlu0 %v1610
        %v1620 = vpop.xlane.xlu0 %1619
        %v1621 = vrcp.pop 128.0
        %v1622 = vmul.f32 128.0, %v1621
        %v1623 = vsub.f32 1.0, %v1622
        %v1624 = vmul.f32 %v1621, %v1623
        %v1625 = vadd.f32 %v1621, %v1624
        %vm1626 = vweird.f32 %v1621
        %v1627 = vsel %vm1626, %v1621, %v1625
        %v1628 = vmul.f32 %v1618, %v1627
        %v1629 = vmul.f32 %v1620, %v1627
        %v1630 = vsub.f32 %v1609, %v1628
        %v1631 = vsub.f32 %v1610, %v1629
        %v1632 = vmul.f32 %v1630, %v1630
        %v1633 = vmul.f32 %v1631, %v1631
        %1634 = vadd.xlane.f32.xlu0 %v1632
        %v1635 = vpop.xlane.xlu0 %1634
        %1636 = vadd.xlane.f32.xlu0 %v1633
        %v1637 = vpop.xlane.xlu0 %1636
        %v1638 = vmul.f32 %v1635, %v1627
        %v1639 = vmul.f32 %v1637, %v1627
        %v1640 = vadd.f32 %v1638, 1e-05
        %v1641 = vadd.f32 %v1639, 1e-05
        %v1642 = vrsqrt.pop %v1640
        %v1643 = vmul.f32 %v1642, %v1640
        %v1644 = vmul.f32 %v1643, %v1642
        %v1645 = vmul.f32 0.5, %v1644
        %v1646 = vsub.f32 1.5, %v1645
        %v1647 = vmul.f32 %v1642, %v1646
        %vm1648 = vweird.f32 %v1640
        %vm1649 = vweird.f32 %v1642
        %vm1650 = vmor %vm1648, %vm1649
        %v1651 = vsel %vm1650, %v1642, %v1647
        %v1652 = vrsqrt.pop %v1641
        %v1653 = vmul.f32 %v1652, %v1641
        %v1654 = vmul.f32 %v1653, %v1652
        %v1655 = vmul.f32 0.5, %v1654
        %v1656 = vsub.f32 1.5, %v1655
        %v1657 = vmul.f32 %v1652, %v1656
        %vm1658 = vweird.f32 %v1641
        %vm1659 = vweird.f32 %v1652
        %vm1660 = vmor %vm1658, %vm1659
        %v1661 = vsel %vm1660, %v1652, %v1657
        %v1662 = vmul.f32 %v1630, %v1651
        %v1663 = vmul.f32 %v1631, %v1661
        %v1665 = vperm.slane %v1615, 0
        %v1667 = vmul.f32 %v1662, %v1665
        %v1668 = vmul.f32 %v1663, %v1665
        %v1670 = vperm.slane %v1616, 0
        %v1672 = vadd.f32 %v1667, %v1670
        %v1673 = vadd.f32 %v1668, %v1670
        %v1674 = vpack.c.bf16 %v1673, %v1672
        %v1675 = vld [vmem:[%s991] sm:$0xf]
        %v1676 = vld [vmem:[%s991 + $0x4] sm:$0xf]
        %v1677 = vld [vmem:[%s991 + $0x8] sm:$0xf]
        %v1678 = vld [vmem:[%s991 + $0xc] sm:$0xf]
        %v1679 = vld [vmem:[%s991 + $0x10] sm:$0xf]
        %v1680 = vld [vmem:[%s991 + $0x14] sm:$0xf]
        %v1681 = vld [vmem:[%s991 + $0x18] sm:$0xf]
        %v1682 = vld [vmem:[%s991 + $0x1c] sm:$0xf]
        %v1683 = vld [vmem:[%s991 + $0x20] sm:$0xf]
        %v1684 = vld [vmem:[%s991 + $0x24] sm:$0xf]
        %v1685 = vld [vmem:[%s991 + $0x28] sm:$0xf]
        %v1686 = vld [vmem:[%s991 + $0x2c] sm:$0xf]
        %v1687 = vld [vmem:[%s991 + $0x30] sm:$0xf]
        %v1688 = vld [vmem:[%s991 + $0x34] sm:$0xf]
        %v1689 = vld [vmem:[%s991 + $0x38] sm:$0xf]
        %v1690 = vld [vmem:[%s991 + $0x3c] sm:$0xf]
        %v1691 = vld [vmem:[%s994] sm:$0x1]
        %v1693 = vperm.slane %v1691, 0
        %v1711 = vunpack.c.l.b16 %v1675
        %v1712 = vunpack.c.l.b16 %v1676
        %v1713 = vunpack.c.l.b16 %v1677
        %v1714 = vunpack.c.l.b16 %v1678
        %v1715 = vunpack.c.l.b16 %v1679
        %v1716 = vunpack.c.l.b16 %v1680
        %v1717 = vunpack.c.l.b16 %v1681
        %v1718 = vunpack.c.l.b16 %v1682
        %v1719 = vunpack.c.l.b16 %v1683
        %v1720 = vunpack.c.l.b16 %v1684
        %v1721 = vunpack.c.l.b16 %v1685
        %v1722 = vunpack.c.l.b16 %v1686
        %v1723 = vunpack.c.l.b16 %v1687
        %v1724 = vunpack.c.l.b16 %v1688
        %v1725 = vunpack.c.l.b16 %v1689
        %v1726 = vunpack.c.l.b16 %v1690
        %v1727 = vpack.c.b16 %v1712, %v1711
        %v1728 = vpack.c.b16 %v1714, %v1713
        %v1729 = vpack.c.b16 %v1716, %v1715
        %v1730 = vpack.c.b16 %v1718, %v1717
        %v1731 = vpack.c.b16 %v1720, %v1719
        %v1732 = vpack.c.b16 %v1722, %v1721
        %v1733 = vpack.c.b16 %v1724, %v1723
        %v1734 = vpack.c.b16 %v1726, %v1725
        %1743 = vmatpush.bf16.msra.mxu0 %v1734
        %1744 = vmatpush.bf16.msra.mxu0 %v1733
        %1745 = vmatpush.bf16.msra.mxu0 %v1732
        %1746 = vmatpush.bf16.msra.mxu0 %v1731
        %1747 = vmatpush.bf16.msra.mxu0 %v1730
        %1748 = vmatpush.bf16.msra.mxu0 %v1729
        %1749 = vmatpush.bf16.msra.mxu0 %v1728
        %1750 = vmatpush.bf16.msra.mxu0 %v1727
        %1751 = vmatmul.bf16.gmra.mxu0 %v1674
        %v1752 = vpop.f32.mrf.mxu0
        %v1753 = vadd.f32 %v1693, %v1752
        %v1754 = vpop.f32.mrf.mxu0
        %v1755 = vadd.f32 %v1693, %v1754
        %1756 = vdwg.mxu0
        %v1757 = vld [vmem:[%s999] sm:$0xf]
        %v1758 = vld [vmem:[%s999 + $0x4] sm:$0xf]
        %v1759 = vld [vmem:[%s999 + $0x8] sm:$0xf]
        %v1760 = vld [vmem:[%s999 + $0xc] sm:$0xf]
        %v1761 = vld [vmem:[%s999 + $0x10] sm:$0xf]
        %v1762 = vld [vmem:[%s999 + $0x14] sm:$0xf]
        %v1763 = vld [vmem:[%s999 + $0x18] sm:$0xf]
        %v1764 = vld [vmem:[%s999 + $0x1c] sm:$0xf]
        %v1765 = vld [vmem:[%s999 + $0x20] sm:$0xf]
        %v1766 = vld [vmem:[%s999 + $0x24] sm:$0xf]
        %v1767 = vld [vmem:[%s999 + $0x28] sm:$0xf]
        %v1768 = vld [vmem:[%s999 + $0x2c] sm:$0xf]
        %v1769 = vld [vmem:[%s999 + $0x30] sm:$0xf]
        %v1770 = vld [vmem:[%s999 + $0x34] sm:$0xf]
        %v1771 = vld [vmem:[%s999 + $0x38] sm:$0xf]
        %v1772 = vld [vmem:[%s999 + $0x3c] sm:$0xf]
        %v1773 = vld [vmem:[%s1002] sm:$0x1]
        %v1775 = vperm.slane %v1773, 0
        %v1793 = vunpack.c.l.b16 %v1757
        %v1794 = vunpack.c.l.b16 %v1758
        %v1795 = vunpack.c.l.b16 %v1759
        %v1796 = vunpack.c.l.b16 %v1760
        %v1797 = vunpack.c.l.b16 %v1761
        %v1798 = vunpack.c.l.b16 %v1762
        %v1799 = vunpack.c.l.b16 %v1763
        %v1800 = vunpack.c.l.b16 %v1764
        %v1801 = vunpack.c.l.b16 %v1765
        %v1802 = vunpack.c.l.b16 %v1766
        %v1803 = vunpack.c.l.b16 %v1767
        %v1804 = vunpack.c.l.b16 %v1768
        %v1805 = vunpack.c.l.b16 %v1769
        %v1806 = vunpack.c.l.b16 %v1770
        %v1807 = vunpack.c.l.b16 %v1771
        %v1808 = vunpack.c.l.b16 %v1772
        %v1809 = vpack.c.b16 %v1794, %v1793
        %v1810 = vpack.c.b16 %v1796, %v1795
        %v1811 = vpack.c.b16 %v1798, %v1797
        %v1812 = vpack.c.b16 %v1800, %v1799
        %v1813 = vpack.c.b16 %v1802, %v1801
        %v1814 = vpack.c.b16 %v1804, %v1803
        %v1815 = vpack.c.b16 %v1806, %v1805
        %v1816 = vpack.c.b16 %v1808, %v1807
        %1825 = vmatpush.bf16.msra.mxu0 %v1816
        %1826 = vmatpush.bf16.msra.mxu0 %v1815
        %1827 = vmatpush.bf16.msra.mxu0 %v1814
        %1828 = vmatpush.bf16.msra.mxu0 %v1813
        %1829 = vmatpush.bf16.msra.mxu0 %v1812
        %1830 = vmatpush.bf16.msra.mxu0 %v1811
        %1831 = vmatpush.bf16.msra.mxu0 %v1810
        %1832 = vmatpush.bf16.msra.mxu0 %v1809
        %1833 = vmatmul.bf16.gmra.mxu0 %v1674
        %v1834 = vpop.f32.mrf.mxu0
        %v1835 = vadd.f32 %v1775, %v1834
        %v1836 = vpop.f32.mrf.mxu0
        %v1837 = vadd.f32 %v1775, %v1836
        %1838 = vdwg.mxu0
        %v1839 = vld [vmem:[%s845] sm:$0xf]
        %v1840 = vld [vmem:[%s845 + $0x4] sm:$0xf]
        %v1841 = vld [vmem:[%s845 + $0x8] sm:$0xf]
        %v1842 = vld [vmem:[%s845 + $0xc] sm:$0xf]
        %v1843 = vld [vmem:[%s845 + $0x10] sm:$0xf]
        %v1844 = vld [vmem:[%s845 + $0x14] sm:$0xf]
        %v1845 = vld [vmem:[%s845 + $0x18] sm:$0xf]
        %v1846 = vld [vmem:[%s845 + $0x1c] sm:$0xf]
        %v1847 = vld [vmem:[%s845 + $0x20] sm:$0xf]
        %v1848 = vld [vmem:[%s845 + $0x24] sm:$0xf]
        %v1849 = vld [vmem:[%s845 + $0x28] sm:$0xf]
        %v1850 = vld [vmem:[%s845 + $0x2c] sm:$0xf]
        %v1851 = vld [vmem:[%s845 + $0x30] sm:$0xf]
        %v1852 = vld [vmem:[%s845 + $0x34] sm:$0xf]
        %v1853 = vld [vmem:[%s845 + $0x38] sm:$0xf]
        %v1854 = vld [vmem:[%s845 + $0x3c] sm:$0xf]
        %v1855 = vld [vmem:[%s1005] sm:$0x1]
        %v1857 = vperm.slane %v1855, 0
        %v1875 = vunpack.c.l.b16 %v1839
        %v1876 = vunpack.c.l.b16 %v1840
        %v1877 = vunpack.c.l.b16 %v1841
        %v1878 = vunpack.c.l.b16 %v1842
        %v1879 = vunpack.c.l.b16 %v1843
        %v1880 = vunpack.c.l.b16 %v1844
        %v1881 = vunpack.c.l.b16 %v1845
        %v1882 = vunpack.c.l.b16 %v1846
        %v1883 = vunpack.c.l.b16 %v1847
        %v1884 = vunpack.c.l.b16 %v1848
        %v1885 = vunpack.c.l.b16 %v1849
        %v1886 = vunpack.c.l.b16 %v1850
        %v1887 = vunpack.c.l.b16 %v1851
        %v1888 = vunpack.c.l.b16 %v1852
        %v1889 = vunpack.c.l.b16 %v1853
        %v1890 = vunpack.c.l.b16 %v1854
        %v1891 = vpack.c.b16 %v1876, %v1875
        %v1892 = vpack.c.b16 %v1878, %v1877
        %v1893 = vpack.c.b16 %v1880, %v1879
        %v1894 = vpack.c.b16 %v1882, %v1881
        %v1895 = vpack.c.b16 %v1884, %v1883
        %v1896 = vpack.c.b16 %v1886, %v1885
        %v1897 = vpack.c.b16 %v1888, %v1887
        %v1898 = vpack.c.b16 %v1890, %v1889
        %1907 = vmatpush.bf16.msra.mxu0 %v1898
        %1908 = vmatpush.bf16.msra.mxu0 %v1897
        %1909 = vmatpush.bf16.msra.mxu0 %v1896
        %1910 = vmatpush.bf16.msra.mxu0 %v1895
        %1911 = vmatpush.bf16.msra.mxu0 %v1894
        %1912 = vmatpush.bf16.msra.mxu0 %v1893
        %1913 = vmatpush.bf16.msra.mxu0 %v1892
        %1914 = vmatpush.bf16.msra.mxu0 %v1891
        %1915 = vmatmul.bf16.gmra.mxu0 %v1674
        %v1916 = vpop.f32.mrf.mxu0
        %v1917 = vadd.f32 %v1857, %v1916
        %v1918 = vpop.f32.mrf.mxu0
        %v1919 = vadd.f32 %v1857, %v1918
        %1920 = vdwg.mxu0
        %v1921 = vpack.c.bf16 %v1753, %v1753
        %v1922 = vpack.c.bf16 %v1755, %v1755
        %v1923 = vpack.c.bf16 %v1835, %v1835
        %v1924 = vpack.c.bf16 %v1837, %v1837
        %v1925 = vpack.c.bf16 %v1917, %v1917
        %v1926 = vpack.c.bf16 %v1919, %v1919
        %vm1927 = vcmask 261120
        %v1929 = vsel %vm1927, %v1921, 0
        %v1932 = vsel %vm1927, %v1923, 0
        %1934 = vmatpush.bf16.xpose.msra.mxu0 0
        %1935 = vmatpush.bf16.xpose.msra.mxu0 0
        %1936 = vmatpush.bf16.xpose.msra.mxu0 0
        %1937 = vmatpush.bf16.xpose.msra.mxu0 0
        %1938 = vmatpush.bf16.xpose.msra.mxu0 0
        %1939 = vmatpush.bf16.xpose.msra.mxu0 0
        %1940 = vmatpush.bf16.xpose.msra.mxu0 0
        %1941 = vmatpush.bf16.xpose.msra.mxu0 %v1932
        %1942 = vmatmul.bf16.gmra.mxu0 %v1929
        %v1943 = vpop.f32.mrf.mxu0
        %v1944 = vadd.f32 %v1614, %v1943
        %v1945 = vpop.f32.mrf.mxu0
        %1946 = vdwg.mxu0
        %v1948 = vsel %vm1927, %v1922, 0
        %v1951 = vsel %vm1927, %v1924, 0
        %1953 = vmatpush.bf16.xpose.msra.mxu0 0
        %1954 = vmatpush.bf16.xpose.msra.mxu0 0
        %1955 = vmatpush.bf16.xpose.msra.mxu0 0
        %1956 = vmatpush.bf16.xpose.msra.mxu0 0
        %1957 = vmatpush.bf16.xpose.msra.mxu0 0
        %1958 = vmatpush.bf16.xpose.msra.mxu0 0
        %1959 = vmatpush.bf16.xpose.msra.mxu0 0
        %1960 = vmatpush.bf16.xpose.msra.mxu0 %v1951
        %1961 = vmatmul.bf16.gmra.mxu0 %v1948
        %v1962 = vpop.f32.mrf.mxu0
        %v1963 = vadd.f32 %v1614, %v1962
        %v1964 = vpop.f32.mrf.mxu0
        %1965 = vdwg.mxu0
        %vm1966 = vcmask 64512
        %v1967 = vsel %vm1966, %v1944, -inf
        %1968 = vmax.xlane.f32.xlu0 %v1967
        %v1969 = vpop.xlane.xlu0 %1968
        %v1970 = vsel %vm1966, %v1963, -inf
        %1971 = vmax.xlane.f32.xlu0 %v1970
        %v1972 = vpop.xlane.xlu0 %1971
        %v1973 = vsub.f32 %v1944, %v1969
        %v1974 = vsub.f32 %v1963, %v1972
        %v1975 = vmul.f32 %v1973, 1.442695
        %v1976 = vpow.pop %v1975
        %v1977 = vmul.f32 %v1974, 1.442695
        %v1978 = vpow.pop %v1977
        %v1979 = vsel %vm1966, %v1976, 0.0
        %1980 = vadd.xlane.f32.xlu0 %v1979
        %v1981 = vpop.xlane.xlu0 %1980
        %v1982 = vsel %vm1966, %v1978, 0.0
        %1983 = vadd.xlane.f32.xlu0 %v1982
        %v1984 = vpop.xlane.xlu0 %1983
        %v1985 = vrcp.pop %v1981
        %v1986 = vmul.f32 %v1981, %v1985
        %v1987 = vsub.f32 1.0, %v1986
        %v1988 = vmul.f32 %v1985, %v1987
        %v1989 = vadd.f32 %v1985, %v1988
        %vm1990 = vweird.f32 %v1981
        %vm1991 = vweird.f32 %v1985
        %vm1992 = vmor %vm1990, %vm1991
        %v1993 = vsel %vm1992, %v1985, %v1989
        %v1994 = vand.u32 2147483647, %v1981
        %vm1995 = vcmp.eq.f32.partialorder %v1994, 8.507059e+37
        %v1996 = vand.u32 %v1981, 2147483648
        %v1997 = vor.u32 1.1754944e-38, %v1996
        %v1998 = vsel %vm1995, %v1997, %v1993
        %v1999 = vrcp.pop %v1984
        %v2000 = vmul.f32 %v1984, %v1999
        %v2001 = vsub.f32 1.0, %v2000
        %v2002 = vmul.f32 %v1999, %v2001
        %v2003 = vadd.f32 %v1999, %v2002
        %vm2004 = vweird.f32 %v1984
        %vm2005 = vweird.f32 %v1999
        %vm2006 = vmor %vm2004, %vm2005
        %v2007 = vsel %vm2006, %v1999, %v2003
        %v2008 = vand.u32 2147483647, %v1984
        %vm2009 = vcmp.eq.f32.partialorder %v2008, 8.507059e+37
        %v2010 = vand.u32 %v1984, 2147483648
        %v2011 = vor.u32 1.1754944e-38, %v2010
        %v2012 = vsel %vm2009, %v2011, %v2007
        %v2013 = vmul.f32 %v1976, %v1998
        %v2014 = vmul.f32 %v1978, %v2012
        %v2015 = vpack.c.bf16 %v2013, %v2013
        %v2016 = vpack.c.bf16 %v2014, %v2014
        %v2018 = vsel %vm1966, %v2015, 0
        %vm2020 = vcmask 1043456
        %v2022 = vsel %vm2020, %v1925, 0
        %2024 = vmatpush.bf16.msra.mxu0 0
        %2025 = vmatpush.bf16.msra.mxu0 0
        %2026 = vmatpush.bf16.msra.mxu0 0
        %2027 = vmatpush.bf16.msra.mxu0 0
        %2028 = vmatpush.bf16.msra.mxu0 0
        %2029 = vmatpush.bf16.msra.mxu0 0
        %2030 = vmatpush.bf16.msra.mxu0 0
        %2031 = vmatpush.bf16.msra.mxu0 %v2022
        %2032 = vmatmul.bf16.gmra.mxu0 %v2018
        %v2033 = vpop.f32.mrf.mxu0
        %v2034 = vadd.f32 0.0, %v2033
        %v2035 = vpop.f32.mrf.mxu0
        %2036 = vdwg.mxu0
        %v2038 = vsel %vm1966, %v2016, 0
        %v2041 = vsel %vm2020, %v1926, 0
        %2043 = vmatpush.bf16.msra.mxu0 0
        %2044 = vmatpush.bf16.msra.mxu0 0
        %2045 = vmatpush.bf16.msra.mxu0 0
        %2046 = vmatpush.bf16.msra.mxu0 0
        %2047 = vmatpush.bf16.msra.mxu0 0
        %2048 = vmatpush.bf16.msra.mxu0 0
        %2049 = vmatpush.bf16.msra.mxu0 0
        %2050 = vmatpush.bf16.msra.mxu0 %v2041
        %2051 = vmatmul.bf16.gmra.mxu0 %v2038
        %v2052 = vpop.f32.mrf.mxu0
        %v2053 = vadd.f32 0.0, %v2052
        %v2054 = vpop.f32.mrf.mxu0
        %2055 = vdwg.mxu0
        %v2057 = vunpack.c.l.b16 %v1921
        %v2058 = vpack.c.b16 %v2057, %v2057
        %2059 = vrot.lane.b32.xlu0 %v2058, 96
        %v2060 = vpop.permute.xlu0 %2059
        %v2062 = vunpack.c.l.b16 %v1923
        %v2063 = vpack.c.b16 %v2062, %v2062
        %2064 = vrot.lane.b32.xlu0 %v2063, 96
        %v2065 = vpop.permute.xlu0 %2064
        %v2067 = vsel %vm1927, %v2060, 0
        %v2070 = vsel %vm1927, %v2065, 0
        %2072 = vmatpush.bf16.xpose.msra.mxu0 0
        %2073 = vmatpush.bf16.xpose.msra.mxu0 0
        %2074 = vmatpush.bf16.xpose.msra.mxu0 0
        %2075 = vmatpush.bf16.xpose.msra.mxu0 0
        %2076 = vmatpush.bf16.xpose.msra.mxu0 0
        %2077 = vmatpush.bf16.xpose.msra.mxu0 0
        %2078 = vmatpush.bf16.xpose.msra.mxu0 0
        %2079 = vmatpush.bf16.xpose.msra.mxu0 %v2070
        %2080 = vmatmul.bf16.gmra.mxu0 %v2067
        %v2081 = vpop.f32.mrf.mxu0
        %v2082 = vadd.f32 %v1614, %v2081
        %v2083 = vpop.f32.mrf.mxu0
        %2084 = vdwg.mxu0
        %v2086 = vunpack.c.l.b16 %v1922
        %v2087 = vpack.c.b16 %v2086, %v2086
        %2088 = vrot.lane.b32.xlu0 %v2087, 96
        %v2089 = vpop.permute.xlu0 %2088
        %v2091 = vunpack.c.l.b16 %v1924
        %v2092 = vpack.c.b16 %v2091, %v2091
        %2093 = vrot.lane.b32.xlu0 %v2092, 96
        %v2094 = vpop.permute.xlu0 %2093
        %v2096 = vsel %vm1927, %v2089, 0
        %v2099 = vsel %vm1927, %v2094, 0
        %2101 = vmatpush.bf16.xpose.msra.mxu0 0
        %2102 = vmatpush.bf16.xpose.msra.mxu0 0
        %2103 = vmatpush.bf16.xpose.msra.mxu0 0
        %2104 = vmatpush.bf16.xpose.msra.mxu0 0
        %2105 = vmatpush.bf16.xpose.msra.mxu0 0
        %2106 = vmatpush.bf16.xpose.msra.mxu0 0
        %2107 = vmatpush.bf16.xpose.msra.mxu0 0
        %2108 = vmatpush.bf16.xpose.msra.mxu0 %v2099
        %2109 = vmatmul.bf16.gmra.mxu0 %v2096
        %v2110 = vpop.f32.mrf.mxu0
        %v2111 = vadd.f32 %v1614, %v2110
        %v2112 = vpop.f32.mrf.mxu0
        %2113 = vdwg.mxu0
        %v2114 = vsel %vm1966, %v2082, -inf
        %2115 = vmax.xlane.f32.xlu0 %v2114
        %v2116 = vpop.xlane.xlu0 %2115
        %v2117 = vsel %vm1966, %v2111, -inf
        %2118 = vmax.xlane.f32.xlu0 %v2117
        %v2119 = vpop.xlane.xlu0 %2118
        %v2120 = vsub.f32 %v2082, %v2116
        %v2121 = vsub.f32 %v2111, %v2119
        %v2122 = vmul.f32 %v2120, 1.442695
        %v2123 = vpow.pop %v2122
        %v2124 = vmul.f32 %v2121, 1.442695
        %v2125 = vpow.pop %v2124
        %v2126 = vsel %vm1966, %v2123, 0.0
        %2127 = vadd.xlane.f32.xlu0 %v2126
        %v2128 = vpop.xlane.xlu0 %2127
        %v2129 = vsel %vm1966, %v2125, 0.0
        %2130 = vadd.xlane.f32.xlu0 %v2129
        %v2131 = vpop.xlane.xlu0 %2130
        %v2132 = vrcp.pop %v2128
        %v2133 = vmul.f32 %v2128, %v2132
        %v2134 = vsub.f32 1.0, %v2133
        %v2135 = vmul.f32 %v2132, %v2134
        %v2136 = vadd.f32 %v2132, %v2135
        %vm2137 = vweird.f32 %v2128
        %vm2138 = vweird.f32 %v2132
        %vm2139 = vmor %vm2137, %vm2138
        %v2140 = vsel %vm2139, %v2132, %v2136
        %v2141 = vand.u32 2147483647, %v2128
        %vm2142 = vcmp.eq.f32.partialorder %v2141, 8.507059e+37
        %v2143 = vand.u32 %v2128, 2147483648
        %v2144 = vor.u32 1.1754944e-38, %v2143
        %v2145 = vsel %vm2142, %v2144, %v2140
        %v2146 = vrcp.pop %v2131
        %v2147 = vmul.f32 %v2131, %v2146
        %v2148 = vsub.f32 1.0, %v2147
        %v2149 = vmul.f32 %v2146, %v2148
        %v2150 = vadd.f32 %v2146, %v2149
        %vm2151 = vweird.f32 %v2131
        %vm2152 = vweird.f32 %v2146
        %vm2153 = vmor %vm2151, %vm2152
        %v2154 = vsel %vm2153, %v2146, %v2150
        %v2155 = vand.u32 2147483647, %v2131
        %vm2156 = vcmp.eq.f32.partialorder %v2155, 8.507059e+37
        %v2157 = vand.u32 %v2131, 2147483648
        %v2158 = vor.u32 1.1754944e-38, %v2157
        %v2159 = vsel %vm2156, %v2158, %v2154
        %v2160 = vmul.f32 %v2123, %v2145
        %v2161 = vmul.f32 %v2125, %v2159
        %v2162 = vpack.c.bf16 %v2160, %v2160
        %v2163 = vpack.c.bf16 %v2161, %v2161
        %v2165 = vunpack.c.l.b16 %v1925
        %v2166 = vpack.c.b16 %v2165, %v2165
        %2167 = vrot.lane.b32.xlu0 %v2166, 96
        %v2168 = vpop.permute.xlu0 %2167
        %v2170 = vsel %vm1966, %v2162, 0
        %v2173 = vsel %vm2020, %v2168, 0
        %2175 = vmatpush.bf16.msra.mxu0 0
        %2176 = vmatpush.bf16.msra.mxu0 0
        %2177 = vmatpush.bf16.msra.mxu0 0
        %2178 = vmatpush.bf16.msra.mxu0 0
        %2179 = vmatpush.bf16.msra.mxu0 0
        %2180 = vmatpush.bf16.msra.mxu0 0
        %2181 = vmatpush.bf16.msra.mxu0 0
        %2182 = vmatpush.bf16.msra.mxu0 %v2173
        %2183 = vmatmul.bf16.gmra.mxu0 %v2170
        %v2184 = vpop.f32.mrf.mxu0
        %v2185 = vadd.f32 0.0, %v2184
        %v2186 = vpop.f32.mrf.mxu0
        %2187 = vdwg.mxu0
        %v2189 = vunpack.c.l.b16 %v1926
        %v2190 = vpack.c.b16 %v2189, %v2189
        %2191 = vrot.lane.b32.xlu0 %v2190, 96
        %v2192 = vpop.permute.xlu0 %2191
        %v2194 = vsel %vm1966, %v2163, 0
        %v2197 = vsel %vm2020, %v2192, 0
        %2199 = vmatpush.bf16.msra.mxu0 0
        %2200 = vmatpush.bf16.msra.mxu0 0
        %2201 = vmatpush.bf16.msra.mxu0 0
        %2202 = vmatpush.bf16.msra.mxu0 0
        %2203 = vmatpush.bf16.msra.mxu0 0
        %2204 = vmatpush.bf16.msra.mxu0 0
        %2205 = vmatpush.bf16.msra.mxu0 0
        %2206 = vmatpush.bf16.msra.mxu0 %v2197
        %2207 = vmatmul.bf16.gmra.mxu0 %v2194
        %v2208 = vpop.f32.mrf.mxu0
        %v2209 = vadd.f32 0.0, %v2208
        %v2210 = vpop.f32.mrf.mxu0
        %2211 = vdwg.mxu0
        %2212 = vrot.lane.b32.xlu0 %v2058, 64
        %v2213 = vpop.permute.xlu0 %2212
        %2214 = vrot.lane.b32.xlu0 %v2063, 64
        %v2215 = vpop.permute.xlu0 %2214
        %v2217 = vsel %vm1927, %v2213, 0
        %v2220 = vsel %vm1927, %v2215, 0
        %2222 = vmatpush.bf16.xpose.msra.mxu0 0
        %2223 = vmatpush.bf16.xpose.msra.mxu0 0
        %2224 = vmatpush.bf16.xpose.msra.mxu0 0
        %2225 = vmatpush.bf16.xpose.msra.mxu0 0
        %2226 = vmatpush.bf16.xpose.msra.mxu0 0
        %2227 = vmatpush.bf16.xpose.msra.mxu0 0
        %2228 = vmatpush.bf16.xpose.msra.mxu0 0
        %2229 = vmatpush.bf16.xpose.msra.mxu0 %v2220
        %2230 = vmatmul.bf16.gmra.mxu0 %v2217
        %v2231 = vpop.f32.mrf.mxu0
        %v2232 = vadd.f32 %v1614, %v2231
        %v2233 = vpop.f32.mrf.mxu0
        %2234 = vdwg.mxu0
        %2235 = vrot.lane.b32.xlu0 %v2087, 64
        %v2236 = vpop.permute.xlu0 %2235
        %2237 = vrot.lane.b32.xlu0 %v2092, 64
        %v2238 = vpop.permute.xlu0 %2237
        %v2240 = vsel %vm1927, %v2236, 0
        %v2243 = vsel %vm1927, %v2238, 0
        %2245 = vmatpush.bf16.xpose.msra.mxu0 0
        %2246 = vmatpush.bf16.xpose.msra.mxu0 0
        %2247 = vmatpush.bf16.xpose.msra.mxu0 0
        %2248 = vmatpush.bf16.xpose.msra.mxu0 0
        %2249 = vmatpush.bf16.xpose.msra.mxu0 0
        %2250 = vmatpush.bf16.xpose.msra.mxu0 0
        %2251 = vmatpush.bf16.xpose.msra.mxu0 0
        %2252 = vmatpush.bf16.xpose.msra.mxu0 %v2243
        %2253 = vmatmul.bf16.gmra.mxu0 %v2240
        %v2254 = vpop.f32.mrf.mxu0
        %v2255 = vadd.f32 %v1614, %v2254
        %v2256 = vpop.f32.mrf.mxu0
        %2257 = vdwg.mxu0
        %v2258 = vsel %vm1966, %v2232, -inf
        %2259 = vmax.xlane.f32.xlu0 %v2258
        %v2260 = vpop.xlane.xlu0 %2259
        %v2261 = vsel %vm1966, %v2255, -inf
        %2262 = vmax.xlane.f32.xlu0 %v2261
        %v2263 = vpop.xlane.xlu0 %2262
        %v2264 = vsub.f32 %v2232, %v2260
        %v2265 = vsub.f32 %v2255, %v2263
        %v2266 = vmul.f32 %v2264, 1.442695
        %v2267 = vpow.pop %v2266
        %v2268 = vmul.f32 %v2265, 1.442695
        %v2269 = vpow.pop %v2268
        %v2270 = vsel %vm1966, %v2267, 0.0
        %2271 = vadd.xlane.f32.xlu0 %v2270
        %v2272 = vpop.xlane.xlu0 %2271
        %v2273 = vsel %vm1966, %v2269, 0.0
        %2274 = vadd.xlane.f32.xlu0 %v2273
        %v2275 = vpop.xlane.xlu0 %2274
        %v2276 = vrcp.pop %v2272
        %v2277 = vmul.f32 %v2272, %v2276
        %v2278 = vsub.f32 1.0, %v2277
        %v2279 = vmul.f32 %v2276, %v2278
        %v2280 = vadd.f32 %v2276, %v2279
        %vm2281 = vweird.f32 %v2272
        %vm2282 = vweird.f32 %v2276
        %vm2283 = vmor %vm2281, %vm2282
        %v2284 = vsel %vm2283, %v2276, %v2280
        %v2285 = vand.u32 2147483647, %v2272
        %vm2286 = vcmp.eq.f32.partialorder %v2285, 8.507059e+37
        %v2287 = vand.u32 %v2272, 2147483648
        %v2288 = vor.u32 1.1754944e-38, %v2287
        %v2289 = vsel %vm2286, %v2288, %v2284
        %v2290 = vrcp.pop %v2275
        %v2291 = vmul.f32 %v2275, %v2290
        %v2292 = vsub.f32 1.0, %v2291
        %v2293 = vmul.f32 %v2290, %v2292
        %v2294 = vadd.f32 %v2290, %v2293
        %vm2295 = vweird.f32 %v2275
        %vm2296 = vweird.f32 %v2290
        %vm2297 = vmor %vm2295, %vm2296
        %v2298 = vsel %vm2297, %v2290, %v2294
        %v2299 = vand.u32 2147483647, %v2275
        %vm2300 = vcmp.eq.f32.partialorder %v2299, 8.507059e+37
        %v2301 = vand.u32 %v2275, 2147483648
        %v2302 = vor.u32 1.1754944e-38, %v2301
        %v2303 = vsel %vm2300, %v2302, %v2298
        %v2304 = vmul.f32 %v2267, %v2289
        %v2305 = vmul.f32 %v2269, %v2303
        %v2306 = vpack.c.bf16 %v2304, %v2304
        %v2307 = vpack.c.bf16 %v2305, %v2305
        %2308 = vrot.lane.b32.xlu0 %v2166, 64
        %v2309 = vpop.permute.xlu0 %2308
        %v2311 = vsel %vm1966, %v2306, 0
        %v2314 = vsel %vm2020, %v2309, 0
        %2316 = vmatpush.bf16.msra.mxu0 0
        %2317 = vmatpush.bf16.msra.mxu0 0
        %2318 = vmatpush.bf16.msra.mxu0 0
        %2319 = vmatpush.bf16.msra.mxu0 0
        %2320 = vmatpush.bf16.msra.mxu0 0
        %2321 = vmatpush.bf16.msra.mxu0 0
        %2322 = vmatpush.bf16.msra.mxu0 0
        %2323 = vmatpush.bf16.msra.mxu0 %v2314
        %2324 = vmatmul.bf16.gmra.mxu0 %v2311
        %v2325 = vpop.f32.mrf.mxu0
        %v2326 = vadd.f32 0.0, %v2325
        %v2327 = vpop.f32.mrf.mxu0
        %2328 = vdwg.mxu0
        %2329 = vrot.lane.b32.xlu0 %v2190, 64
        %v2330 = vpop.permute.xlu0 %2329
        %v2332 = vsel %vm1966, %v2307, 0
        %v2335 = vsel %vm2020, %v2330, 0
        %2337 = vmatpush.bf16.msra.mxu0 0
        %2338 = vmatpush.bf16.msra.mxu0 0
        %2339 = vmatpush.bf16.msra.mxu0 0
        %2340 = vmatpush.bf16.msra.mxu0 0
        %2341 = vmatpush.bf16.msra.mxu0 0
        %2342 = vmatpush.bf16.msra.mxu0 0
        %2343 = vmatpush.bf16.msra.mxu0 0
        %2344 = vmatpush.bf16.msra.mxu0 %v2335
        %2345 = vmatmul.bf16.gmra.mxu0 %v2332
        %v2346 = vpop.f32.mrf.mxu0
        %v2347 = vadd.f32 0.0, %v2346
        %v2348 = vpop.f32.mrf.mxu0
        %2349 = vdwg.mxu0
        %2350 = vrot.lane.b32.xlu0 %v2058, 32
        %v2351 = vpop.permute.xlu0 %2350
        %2352 = vrot.lane.b32.xlu0 %v2063, 32
        %v2353 = vpop.permute.xlu0 %2352
        %v2355 = vsel %vm1927, %v2351, 0
        %v2358 = vsel %vm1927, %v2353, 0
        %2360 = vmatpush.bf16.xpose.msra.mxu0 0
        %2361 = vmatpush.bf16.xpose.msra.mxu0 0
        %2362 = vmatpush.bf16.xpose.msra.mxu0 0
        %2363 = vmatpush.bf16.xpose.msra.mxu0 0
        %2364 = vmatpush.bf16.xpose.msra.mxu0 0
        %2365 = vmatpush.bf16.xpose.msra.mxu0 0
        %2366 = vmatpush.bf16.xpose.msra.mxu0 0
        %2367 = vmatpush.bf16.xpose.msra.mxu0 %v2358
        %2368 = vmatmul.bf16.gmra.mxu0 %v2355
        %v2369 = vpop.f32.mrf.mxu0
        %v2370 = vadd.f32 %v1614, %v2369
        %v2371 = vpop.f32.mrf.mxu0
        %2372 = vdwg.mxu0
        %2373 = vrot.lane.b32.xlu0 %v2087, 32
        %v2374 = vpop.permute.xlu0 %2373
        %2375 = vrot.lane.b32.xlu0 %v2092, 32
        %v2376 = vpop.permute.xlu0 %2375
        %v2378 = vsel %vm1927, %v2374, 0
        %v2381 = vsel %vm1927, %v2376, 0
        %2383 = vmatpush.bf16.xpose.msra.mxu0 0
        %2384 = vmatpush.bf16.xpose.msra.mxu0 0
        %2385 = vmatpush.bf16.xpose.msra.mxu0 0
        %2386 = vmatpush.bf16.xpose.msra.mxu0 0
        %2387 = vmatpush.bf16.xpose.msra.mxu0 0
        %2388 = vmatpush.bf16.xpose.msra.mxu0 0
        %2389 = vmatpush.bf16.xpose.msra.mxu0 0
        %2390 = vmatpush.bf16.xpose.msra.mxu0 %v2381
        %2391 = vmatmul.bf16.gmra.mxu0 %v2378
        %v2392 = vpop.f32.mrf.mxu0
        %v2393 = vadd.f32 %v1614, %v2392
        %v2394 = vpop.f32.mrf.mxu0
        %2395 = vdwg.mxu0
        %v2396 = vsel %vm1966, %v2370, -inf
        %2397 = vmax.xlane.f32.xlu0 %v2396
        %v2398 = vpop.xlane.xlu0 %2397
        %v2399 = vsel %vm1966, %v2393, -inf
        %2400 = vmax.xlane.f32.xlu0 %v2399
        %v2401 = vpop.xlane.xlu0 %2400
        %v2402 = vsub.f32 %v2370, %v2398
        %v2403 = vsub.f32 %v2393, %v2401
        %v2404 = vmul.f32 %v2402, 1.442695
        %v2405 = vpow.pop %v2404
        %v2406 = vmul.f32 %v2403, 1.442695
        %v2407 = vpow.pop %v2406
        %v2408 = vsel %vm1966, %v2405, 0.0
        %2409 = vadd.xlane.f32.xlu0 %v2408
        %v2410 = vpop.xlane.xlu0 %2409
        %v2411 = vsel %vm1966, %v2407, 0.0
        %2412 = vadd.xlane.f32.xlu0 %v2411
        %v2413 = vpop.xlane.xlu0 %2412
        %v2414 = vrcp.pop %v2410
        %v2415 = vmul.f32 %v2410, %v2414
        %v2416 = vsub.f32 1.0, %v2415
        %v2417 = vmul.f32 %v2414, %v2416
        %v2418 = vadd.f32 %v2414, %v2417
        %vm2419 = vweird.f32 %v2410
        %vm2420 = vweird.f32 %v2414
        %vm2421 = vmor %vm2419, %vm2420
        %v2422 = vsel %vm2421, %v2414, %v2418
        %v2423 = vand.u32 2147483647, %v2410
        %vm2424 = vcmp.eq.f32.partialorder %v2423, 8.507059e+37
        %v2425 = vand.u32 %v2410, 2147483648
        %v2426 = vor.u32 1.1754944e-38, %v2425
        %v2427 = vsel %vm2424, %v2426, %v2422
        %v2428 = vrcp.pop %v2413
        %v2429 = vmul.f32 %v2413, %v2428
        %v2430 = vsub.f32 1.0, %v2429
        %v2431 = vmul.f32 %v2428, %v2430
        %v2432 = vadd.f32 %v2428, %v2431
        %vm2433 = vweird.f32 %v2413
        %vm2434 = vweird.f32 %v2428
        %vm2435 = vmor %vm2433, %vm2434
        %v2436 = vsel %vm2435, %v2428, %v2432
        %v2437 = vand.u32 2147483647, %v2413
        %vm2438 = vcmp.eq.f32.partialorder %v2437, 8.507059e+37
        %v2439 = vand.u32 %v2413, 2147483648
        %v2440 = vor.u32 1.1754944e-38, %v2439
        %v2441 = vsel %vm2438, %v2440, %v2436
        %v2442 = vmul.f32 %v2405, %v2427
        %v2443 = vmul.f32 %v2407, %v2441
        %v2444 = vpack.c.bf16 %v2442, %v2442
        %v2445 = vpack.c.bf16 %v2443, %v2443
        %2446 = vrot.lane.b32.xlu0 %v2166, 32
        %v2447 = vpop.permute.xlu0 %2446
        %v2449 = vsel %vm1966, %v2444, 0
        %v2452 = vsel %vm2020, %v2447, 0
        %2454 = vmatpush.bf16.msra.mxu0 0
        %2455 = vmatpush.bf16.msra.mxu0 0
        %2456 = vmatpush.bf16.msra.mxu0 0
        %2457 = vmatpush.bf16.msra.mxu0 0
        %2458 = vmatpush.bf16.msra.mxu0 0
        %2459 = vmatpush.bf16.msra.mxu0 0
        %2460 = vmatpush.bf16.msra.mxu0 0
        %2461 = vmatpush.bf16.msra.mxu0 %v2452
        %2462 = vmatmul.bf16.gmra.mxu0 %v2449
        %v2463 = vpop.f32.mrf.mxu0
        %v2464 = vadd.f32 0.0, %v2463
        %v2465 = vpop.f32.mrf.mxu0
        %2466 = vdwg.mxu0
        %2467 = vrot.lane.b32.xlu0 %v2190, 32
        %v2468 = vpop.permute.xlu0 %2467
        %v2470 = vsel %vm1966, %v2445, 0
        %v2473 = vsel %vm2020, %v2468, 0
        %2475 = vmatpush.bf16.msra.mxu0 0
        %2476 = vmatpush.bf16.msra.mxu0 0
        %2477 = vmatpush.bf16.msra.mxu0 0
        %2478 = vmatpush.bf16.msra.mxu0 0
        %2479 = vmatpush.bf16.msra.mxu0 0
        %2480 = vmatpush.bf16.msra.mxu0 0
        %2481 = vmatpush.bf16.msra.mxu0 0
        %2482 = vmatpush.bf16.msra.mxu0 %v2473
        %2483 = vmatmul.bf16.gmra.mxu0 %v2470
        %v2484 = vpop.f32.mrf.mxu0
        %v2485 = vadd.f32 0.0, %v2484
        %v2486 = vpop.f32.mrf.mxu0
        %2487 = vdwg.mxu0
        %2490 = vrot.lane.b32.xlu0 %v2185, 32
        %v2491 = vpop.permute.xlu0 %2490
        %2492 = vrot.lane.b32.xlu0 %v2209, 32
        %v2493 = vpop.permute.xlu0 %2492
        %2498 = vrot.lane.b32.xlu0 %v2326, 64
        %v2499 = vpop.permute.xlu0 %2498
        %2500 = vrot.lane.b32.xlu0 %v2347, 64
        %v2501 = vpop.permute.xlu0 %2500
        %2506 = vrot.lane.b32.xlu0 %v2464, 96
        %v2507 = vpop.permute.xlu0 %2506
        %2508 = vrot.lane.b32.xlu0 %v2485, 96
        %v2509 = vpop.permute.xlu0 %2508
        %v2512 = vsel %vm1927, %v2034, %v2491
        %v2513 = vsel %vm1927, %v2053, %v2493
        %vm2514 = vcmask 523264
        %v2515 = vsel %vm2514, %v2512, %v2499
        %v2516 = vsel %vm2514, %v2513, %v2501
        %vm2517 = vcmask 785408
        %v2518 = vsel %vm2517, %v2515, %v2507
        %v2519 = vsel %vm2517, %v2516, %v2509
        %v2520 = vpack.c.bf16 %v2519, %v2518
        %v2521 = vld [vmem:[%s855] sm:$0xf]
        %v2522 = vld [vmem:[%s855 + $0x4] sm:$0xf]
        %v2523 = vld [vmem:[%s855 + $0x8] sm:$0xf]
        %v2524 = vld [vmem:[%s855 + $0xc] sm:$0xf]
        %v2525 = vld [vmem:[%s855 + $0x10] sm:$0xf]
        %v2526 = vld [vmem:[%s855 + $0x14] sm:$0xf]
        %v2527 = vld [vmem:[%s855 + $0x18] sm:$0xf]
        %v2528 = vld [vmem:[%s855 + $0x1c] sm:$0xf]
        %v2529 = vld [vmem:[%s855 + $0x20] sm:$0xf]
        %v2530 = vld [vmem:[%s855 + $0x24] sm:$0xf]
        %v2531 = vld [vmem:[%s855 + $0x28] sm:$0xf]
        %v2532 = vld [vmem:[%s855 + $0x2c] sm:$0xf]
        %v2533 = vld [vmem:[%s855 + $0x30] sm:$0xf]
        %v2534 = vld [vmem:[%s855 + $0x34] sm:$0xf]
        %v2535 = vld [vmem:[%s855 + $0x38] sm:$0xf]
        %v2536 = vld [vmem:[%s855 + $0x3c] sm:$0xf]
        %v2537 = vld [vmem:[%s1008] sm:$0x1]
        %v2539 = vperm.slane %v2537, 0
        %v2557 = vunpack.c.l.b16 %v2521
        %v2558 = vunpack.c.l.b16 %v2522
        %v2559 = vunpack.c.l.b16 %v2523
        %v2560 = vunpack.c.l.b16 %v2524
        %v2561 = vunpack.c.l.b16 %v2525
        %v2562 = vunpack.c.l.b16 %v2526
        %v2563 = vunpack.c.l.b16 %v2527
        %v2564 = vunpack.c.l.b16 %v2528
        %v2565 = vunpack.c.l.b16 %v2529
        %v2566 = vunpack.c.l.b16 %v2530
        %v2567 = vunpack.c.l.b16 %v2531
        %v2568 = vunpack.c.l.b16 %v2532
        %v2569 = vunpack.c.l.b16 %v2533
        %v2570 = vunpack.c.l.b16 %v2534
        %v2571 = vunpack.c.l.b16 %v2535
        %v2572 = vunpack.c.l.b16 %v2536
        %v2573 = vpack.c.b16 %v2558, %v2557
        %v2574 = vpack.c.b16 %v2560, %v2559
        %v2575 = vpack.c.b16 %v2562, %v2561
        %v2576 = vpack.c.b16 %v2564, %v2563
        %v2577 = vpack.c.b16 %v2566, %v2565
        %v2578 = vpack.c.b16 %v2568, %v2567
        %v2579 = vpack.c.b16 %v2570, %v2569
        %v2580 = vpack.c.b16 %v2572, %v2571
        %2589 = vmatpush.bf16.msra.mxu0 %v2580
        %2590 = vmatpush.bf16.msra.mxu0 %v2579
        %2591 = vmatpush.bf16.msra.mxu0 %v2578
        %2592 = vmatpush.bf16.msra.mxu0 %v2577
        %2593 = vmatpush.bf16.msra.mxu0 %v2576
        %2594 = vmatpush.bf16.msra.mxu0 %v2575
        %2595 = vmatpush.bf16.msra.mxu0 %v2574
        %2596 = vmatpush.bf16.msra.mxu0 %v2573
        %2597 = vmatmul.bf16.gmra.mxu0 %v2520
        %v2598 = vpop.f32.mrf.mxu0
        %v2599 = vadd.f32 %v2539, %v2598
        %v2600 = vpop.f32.mrf.mxu0
        %v2601 = vadd.f32 %v2539, %v2600
        %2602 = vdwg.mxu0
        %v2603 = vadd.f32 %v1609, %v2599
        %v2604 = vadd.f32 %v1610, %v2601
        %v2605 = vld [vmem:[%s1011] sm:$0x1]
        %v2606 = vld [vmem:[%s1014] sm:$0x1]
        %2607 = vadd.xlane.f32.xlu0 %v2603
        %v2608 = vpop.xlane.xlu0 %2607
        %2609 = vadd.xlane.f32.xlu0 %v2604
        %v2610 = vpop.xlane.xlu0 %2609
        %v2611 = vmul.f32 %v2608, %v1627
        %v2612 = vmul.f32 %v2610, %v1627
        %v2613 = vsub.f32 %v2603, %v2611
        %v2614 = vsub.f32 %v2604, %v2612
        %v2615 = vmul.f32 %v2613, %v2613
        %v2616 = vmul.f32 %v2614, %v2614
        %2617 = vadd.xlane.f32.xlu0 %v2615
        %v2618 = vpop.xlane.xlu0 %2617
        %2619 = vadd.xlane.f32.xlu0 %v2616
        %v2620 = vpop.xlane.xlu0 %2619
        %v2621 = vmul.f32 %v2618, %v1627
        %v2622 = vmul.f32 %v2620, %v1627
        %v2623 = vadd.f32 %v2621, 1e-05
        %v2624 = vadd.f32 %v2622, 1e-05
        %v2625 = vrsqrt.pop %v2623
        %v2626 = vmul.f32 %v2625, %v2623
        %v2627 = vmul.f32 %v2626, %v2625
        %v2628 = vmul.f32 0.5, %v2627
        %v2629 = vsub.f32 1.5, %v2628
        %v2630 = vmul.f32 %v2625, %v2629
        %vm2631 = vweird.f32 %v2623
        %vm2632 = vweird.f32 %v2625
        %vm2633 = vmor %vm2631, %vm2632
        %v2634 = vsel %vm2633, %v2625, %v2630
        %v2635 = vrsqrt.pop %v2624
        %v2636 = vmul.f32 %v2635, %v2624
        %v2637 = vmul.f32 %v2636, %v2635
        %v2638 = vmul.f32 0.5, %v2637
        %v2639 = vsub.f32 1.5, %v2638
        %v2640 = vmul.f32 %v2635, %v2639
        %vm2641 = vweird.f32 %v2624
        %vm2642 = vweird.f32 %v2635
        %vm2643 = vmor %vm2641, %vm2642
        %v2644 = vsel %vm2643, %v2635, %v2640
        %v2645 = vmul.f32 %v2613, %v2634
        %v2646 = vmul.f32 %v2614, %v2644
        %v2648 = vperm.slane %v2605, 0
        %v2650 = vmul.f32 %v2645, %v2648
        %v2651 = vmul.f32 %v2646, %v2648
        %v2653 = vperm.slane %v2606, 0
        %v2655 = vadd.f32 %v2650, %v2653
        %v2656 = vadd.f32 %v2651, %v2653
        %v2659 = vrot.slane %v2656, 7
        %vm2660 = vcmask 1041409
        %v2661 = vsel %vm2660, %v2659, %v2655
        %2663 = vst [vmem:[%s1035] sm:$0x3] %v2661
        %v2664 = vpack.c.bf16 %v2656, %v2655
        %v2665 = vld [vmem:[%s1019] sm:$0xff]
        %v2666 = vld [vmem:[%s1019 + $0x8] sm:$0xff]
        %v2667 = vld [vmem:[%s1019 + $0x10] sm:$0xff]
        %v2668 = vld [vmem:[%s1019 + $0x18] sm:$0xff]
        %v2669 = vld [vmem:[%s1019 + $0x20] sm:$0xff]
        %v2670 = vld [vmem:[%s1019 + $0x28] sm:$0xff]
        %v2671 = vld [vmem:[%s1019 + $0x30] sm:$0xff]
        %v2672 = vld [vmem:[%s1019 + $0x38] sm:$0xff]
        %v2673 = vld [vmem:[%s1019 + $0x40] sm:$0xff]
        %v2674 = vld [vmem:[%s1019 + $0x48] sm:$0xff]
        %v2675 = vld [vmem:[%s1019 + $0x50] sm:$0xff]
        %v2676 = vld [vmem:[%s1019 + $0x58] sm:$0xff]
        %v2677 = vld [vmem:[%s1019 + $0x60] sm:$0xff]
        %v2678 = vld [vmem:[%s1019 + $0x68] sm:$0xff]
        %v2679 = vld [vmem:[%s1019 + $0x70] sm:$0xff]
        %v2680 = vld [vmem:[%s1019 + $0x78] sm:$0xff]
        %v2681 = vld [vmem:[%s1023] sm:$0x3]
        %v2683 = vperm.slane %v2681, 0
        %v2684 = vperm.slane %v2681, 1
        %v2703 = vunpack.c.l.b16 %v2665
        %v2704 = vunpack.c.h.b16 %v2665
        %v2705 = vunpack.c.l.b16 %v2666
        %v2706 = vunpack.c.h.b16 %v2666
        %v2707 = vunpack.c.l.b16 %v2667
        %v2708 = vunpack.c.h.b16 %v2667
        %v2709 = vunpack.c.l.b16 %v2668
        %v2710 = vunpack.c.h.b16 %v2668
        %v2711 = vunpack.c.l.b16 %v2669
        %v2712 = vunpack.c.h.b16 %v2669
        %v2713 = vunpack.c.l.b16 %v2670
        %v2714 = vunpack.c.h.b16 %v2670
        %v2715 = vunpack.c.l.b16 %v2671
        %v2716 = vunpack.c.h.b16 %v2671
        %v2717 = vunpack.c.l.b16 %v2672
        %v2718 = vunpack.c.h.b16 %v2672
        %v2719 = vunpack.c.l.b16 %v2673
        %v2720 = vunpack.c.h.b16 %v2673
        %v2721 = vunpack.c.l.b16 %v2674
        %v2722 = vunpack.c.h.b16 %v2674
        %v2723 = vunpack.c.l.b16 %v2675
        %v2724 = vunpack.c.h.b16 %v2675
        %v2725 = vunpack.c.l.b16 %v2676
        %v2726 = vunpack.c.h.b16 %v2676
        %v2727 = vunpack.c.l.b16 %v2677
        %v2728 = vunpack.c.h.b16 %v2677
        %v2729 = vunpack.c.l.b16 %v2678
        %v2730 = vunpack.c.h.b16 %v2678
        %v2731 = vunpack.c.l.b16 %v2679
        %v2732 = vunpack.c.h.b16 %v2679
        %v2733 = vunpack.c.l.b16 %v2680
        %v2734 = vunpack.c.h.b16 %v2680
        %v2735 = vpack.c.b16 %v2705, %v2703
        %v2736 = vpack.c.b16 %v2706, %v2704
        %v2737 = vpack.c.b16 %v2709, %v2707
        %v2738 = vpack.c.b16 %v2710, %v2708
        %v2739 = vpack.c.b16 %v2713, %v2711
        %v2740 = vpack.c.b16 %v2714, %v2712
        %v2741 = vpack.c.b16 %v2717, %v2715
        %v2742 = vpack.c.b16 %v2718, %v2716
        %v2743 = vpack.c.b16 %v2721, %v2719
        %v2744 = vpack.c.b16 %v2722, %v2720
        %v2745 = vpack.c.b16 %v2725, %v2723
        %v2746 = vpack.c.b16 %v2726, %v2724
        %v2747 = vpack.c.b16 %v2729, %v2727
        %v2748 = vpack.c.b16 %v2730, %v2728
        %v2749 = vpack.c.b16 %v2733, %v2731
        %v2750 = vpack.c.b16 %v2734, %v2732
        %2767 = vmatpush.bf16.msra.mxu0 %v2749
        %2768 = vmatpush.bf16.msra.mxu0 %v2747
        %2769 = vmatpush.bf16.msra.mxu0 %v2745
        %2770 = vmatpush.bf16.msra.mxu0 %v2743
        %2771 = vmatpush.bf16.msra.mxu0 %v2741
        %2772 = vmatpush.bf16.msra.mxu0 %v2739
        %2773 = vmatpush.bf16.msra.mxu0 %v2737
        %2774 = vmatpush.bf16.msra.mxu0 %v2735
        %2775 = vmatmul.bf16.gmra.mxu0 %v2664
        %v2776 = vpop.f32.mrf.mxu0
        %v2777 = vadd.f32 %v2683, %v2776
        %v2778 = vpop.f32.mrf.mxu0
        %v2779 = vadd.f32 %v2683, %v2778
        %2780 = vdwg.mxu0
        %2781 = vmatpush.bf16.msra.mxu0 %v2750
        %2782 = vmatpush.bf16.msra.mxu0 %v2748
        %2783 = vmatpush.bf16.msra.mxu0 %v2746
        %2784 = vmatpush.bf16.msra.mxu0 %v2744
        %2785 = vmatpush.bf16.msra.mxu0 %v2742
        %2786 = vmatpush.bf16.msra.mxu0 %v2740
        %2787 = vmatpush.bf16.msra.mxu0 %v2738
        %2788 = vmatpush.bf16.msra.mxu0 %v2736
        %2789 = vmatmul.bf16.gmra.mxu0 %v2664
        %v2790 = vpop.f32.mrf.mxu0
        %v2791 = vadd.f32 %v2684, %v2790
        %v2792 = vpop.f32.mrf.mxu0
        %v2793 = vadd.f32 %v2684, %v2792
        %2794 = vdwg.mxu0
        %v2795 = vmul.f32 %v2777, 1.702
        %v2796 = vmul.f32 %v2791, 1.702
        %v2797 = vmul.f32 %v2779, 1.702
        %v2798 = vmul.f32 %v2793, 1.702
        %v2799 = vxor.u32 %v2795, 2147483648
        %v2800 = vxor.u32 %v2796, 2147483648
        %v2801 = vxor.u32 %v2797, 2147483648
        %v2802 = vxor.u32 %v2798, 2147483648
        %v2803 = vmul.f32 %v2799, 1.442695
        %v2804 = vpow.pop %v2803
        %v2805 = vmul.f32 %v2800, 1.442695
        %v2806 = vpow.pop %v2805
        %v2807 = vmul.f32 %v2801, 1.442695
        %v2808 = vpow.pop %v2807
        %v2809 = vmul.f32 %v2802, 1.442695
        %v2810 = vpow.pop %v2809
        %v2811 = vadd.f32 %v2804, 1.0
        %v2812 = vadd.f32 %v2806, 1.0
        %v2813 = vadd.f32 %v2808, 1.0
        %v2814 = vadd.f32 %v2810, 1.0
        %v2815 = vrcp.pop %v2811
        %v2816 = vmul.f32 %v2811, %v2815
        %v2817 = vsub.f32 1.0, %v2816
        %v2818 = vmul.f32 %v2815, %v2817
        %v2819 = vadd.f32 %v2815, %v2818
        %vm2820 = vweird.f32 %v2811
        %vm2821 = vweird.f32 %v2815
        %vm2822 = vmor %vm2820, %vm2821
        %v2823 = vsel %vm2822, %v2815, %v2819
        %v2824 = vand.u32 2147483647, %v2811
        %vm2825 = vcmp.eq.f32.partialorder %v2824, 8.507059e+37
        %v2826 = vand.u32 %v2811, 2147483648
        %v2827 = vor.u32 1.1754944e-38, %v2826
        %v2828 = vsel %vm2825, %v2827, %v2823
        %v2829 = vmul.f32 1.0, %v2828
        %v2830 = vrcp.pop %v2812
        %v2831 = vmul.f32 %v2812, %v2830
        %v2832 = vsub.f32 1.0, %v2831
        %v2833 = vmul.f32 %v2830, %v2832
        %v2834 = vadd.f32 %v2830, %v2833
        %vm2835 = vweird.f32 %v2812
        %vm2836 = vweird.f32 %v2830
        %vm2837 = vmor %vm2835, %vm2836
        %v2838 = vsel %vm2837, %v2830, %v2834
        %v2839 = vand.u32 2147483647, %v2812
        %vm2840 = vcmp.eq.f32.partialorder %v2839, 8.507059e+37
        %v2841 = vand.u32 %v2812, 2147483648
        %v2842 = vor.u32 1.1754944e-38, %v2841
        %v2843 = vsel %vm2840, %v2842, %v2838
        %v2844 = vmul.f32 1.0, %v2843
        %v2845 = vrcp.pop %v2813
        %v2846 = vmul.f32 %v2813, %v2845
        %v2847 = vsub.f32 1.0, %v2846
        %v2848 = vmul.f32 %v2845, %v2847
        %v2849 = vadd.f32 %v2845, %v2848
        %vm2850 = vweird.f32 %v2813
        %vm2851 = vweird.f32 %v2845
        %vm2852 = vmor %vm2850, %vm2851
        %v2853 = vsel %vm2852, %v2845, %v2849
        %v2854 = vand.u32 2147483647, %v2813
        %vm2855 = vcmp.eq.f32.partialorder %v2854, 8.507059e+37
        %v2856 = vand.u32 %v2813, 2147483648
        %v2857 = vor.u32 1.1754944e-38, %v2856
        %v2858 = vsel %vm2855, %v2857, %v2853
        %v2859 = vmul.f32 1.0, %v2858
        %v2860 = vrcp.pop %v2814
        %v2861 = vmul.f32 %v2814, %v2860
        %v2862 = vsub.f32 1.0, %v2861
        %v2863 = vmul.f32 %v2860, %v2862
        %v2864 = vadd.f32 %v2860, %v2863
        %vm2865 = vweird.f32 %v2814
        %vm2866 = vweird.f32 %v2860
        %vm2867 = vmor %vm2865, %vm2866
        %v2868 = vsel %vm2867, %v2860, %v2864
        %v2869 = vand.u32 2147483647, %v2814
        %vm2870 = vcmp.eq.f32.partialorder %v2869, 8.507059e+37
        %v2871 = vand.u32 %v2814, 2147483648
        %v2872 = vor.u32 1.1754944e-38, %v2871
        %v2873 = vsel %vm2870, %v2872, %v2868
        %v2874 = vmul.f32 1.0, %v2873
        %v2875 = vmul.f32 %v2777, %v2829
        %v2876 = vmul.f32 %v2791, %v2844
        %v2877 = vmul.f32 %v2779, %v2859
        %v2878 = vmul.f32 %v2793, %v2874
        %v2879 = vpack.c.bf16 %v2877, %v2875
        %v2880 = vpack.c.bf16 %v2878, %v2876
        %v2881 = vld [vmem:[%s1028] sm:$0xf]
        %v2882 = vld [vmem:[%s1028 + $0x4] sm:$0xf]
        %v2883 = vld [vmem:[%s1028 + $0x8] sm:$0xf]
        %v2884 = vld [vmem:[%s1028 + $0xc] sm:$0xf]
        %v2885 = vld [vmem:[%s1028 + $0x10] sm:$0xf]
        %v2886 = vld [vmem:[%s1028 + $0x14] sm:$0xf]
        %v2887 = vld [vmem:[%s1028 + $0x18] sm:$0xf]
        %v2888 = vld [vmem:[%s1028 + $0x1c] sm:$0xf]
        %v2889 = vld [vmem:[%s1028 + $0x20] sm:$0xf]
        %v2890 = vld [vmem:[%s1028 + $0x24] sm:$0xf]
        %v2891 = vld [vmem:[%s1028 + $0x28] sm:$0xf]
        %v2892 = vld [vmem:[%s1028 + $0x2c] sm:$0xf]
        %v2893 = vld [vmem:[%s1028 + $0x30] sm:$0xf]
        %v2894 = vld [vmem:[%s1028 + $0x34] sm:$0xf]
        %v2895 = vld [vmem:[%s1028 + $0x38] sm:$0xf]
        %v2896 = vld [vmem:[%s1028 + $0x3c] sm:$0xf]
        %v2897 = vld [vmem:[%s1028 + $0x40] sm:$0xf]
        %v2898 = vld [vmem:[%s1028 + $0x44] sm:$0xf]
        %v2899 = vld [vmem:[%s1028 + $0x48] sm:$0xf]
        %v2900 = vld [vmem:[%s1028 + $0x4c] sm:$0xf]
        %v2901 = vld [vmem:[%s1028 + $0x50] sm:$0xf]
        %v2902 = vld [vmem:[%s1028 + $0x54] sm:$0xf]
        %v2903 = vld [vmem:[%s1028 + $0x58] sm:$0xf]
        %v2904 = vld [vmem:[%s1028 + $0x5c] sm:$0xf]
        %v2905 = vld [vmem:[%s1028 + $0x60] sm:$0xf]
        %v2906 = vld [vmem:[%s1028 + $0x64] sm:$0xf]
        %v2907 = vld [vmem:[%s1028 + $0x68] sm:$0xf]
        %v2908 = vld [vmem:[%s1028 + $0x6c] sm:$0xf]
        %v2909 = vld [vmem:[%s1028 + $0x70] sm:$0xf]
        %v2910 = vld [vmem:[%s1028 + $0x74] sm:$0xf]
        %v2911 = vld [vmem:[%s1028 + $0x78] sm:$0xf]
        %v2912 = vld [vmem:[%s1028 + $0x7c] sm:$0xf]
        %v2945 = vunpack.c.l.b16 %v2881
        %v2946 = vunpack.c.l.b16 %v2882
        %v2947 = vunpack.c.l.b16 %v2883
        %v2948 = vunpack.c.l.b16 %v2884
        %v2949 = vunpack.c.l.b16 %v2885
        %v2950 = vunpack.c.l.b16 %v2886
        %v2951 = vunpack.c.l.b16 %v2887
        %v2952 = vunpack.c.l.b16 %v2888
        %v2953 = vunpack.c.l.b16 %v2889
        %v2954 = vunpack.c.l.b16 %v2890
        %v2955 = vunpack.c.l.b16 %v2891
        %v2956 = vunpack.c.l.b16 %v2892
        %v2957 = vunpack.c.l.b16 %v2893
        %v2958 = vunpack.c.l.b16 %v2894
        %v2959 = vunpack.c.l.b16 %v2895
        %v2960 = vunpack.c.l.b16 %v2896
        %v2961 = vunpack.c.l.b16 %v2897
        %v2962 = vunpack.c.l.b16 %v2898
        %v2963 = vunpack.c.l.b16 %v2899
        %v2964 = vunpack.c.l.b16 %v2900
        %v2965 = vunpack.c.l.b16 %v2901
        %v2966 = vunpack.c.l.b16 %v2902
        %v2967 = vunpack.c.l.b16 %v2903
        %v2968 = vunpack.c.l.b16 %v2904
        %v2969 = vunpack.c.l.b16 %v2905
        %v2970 = vunpack.c.l.b16 %v2906
        %v2971 = vunpack.c.l.b16 %v2907
        %v2972 = vunpack.c.l.b16 %v2908
        %v2973 = vunpack.c.l.b16 %v2909
        %v2974 = vunpack.c.l.b16 %v2910
        %v2975 = vunpack.c.l.b16 %v2911
        %v2976 = vunpack.c.l.b16 %v2912
        %v2977 = vpack.c.b16 %v2946, %v2945
        %v2978 = vpack.c.b16 %v2948, %v2947
        %v2979 = vpack.c.b16 %v2950, %v2949
        %v2980 = vpack.c.b16 %v2952, %v2951
        %v2981 = vpack.c.b16 %v2954, %v2953
        %v2982 = vpack.c.b16 %v2956, %v2955
        %v2983 = vpack.c.b16 %v2958, %v2957
        %v2984 = vpack.c.b16 %v2960, %v2959
        %v2985 = vpack.c.b16 %v2962, %v2961
        %v2986 = vpack.c.b16 %v2964, %v2963
        %v2987 = vpack.c.b16 %v2966, %v2965
        %v2988 = vpack.c.b16 %v2968, %v2967
        %v2989 = vpack.c.b16 %v2970, %v2969
        %v2990 = vpack.c.b16 %v2972, %v2971
        %v2991 = vpack.c.b16 %v2974, %v2973
        %v2992 = vpack.c.b16 %v2976, %v2975
        %3009 = vmatpush.bf16.msra.mxu0 %v2984
        %3010 = vmatpush.bf16.msra.mxu0 %v2983
        %3011 = vmatpush.bf16.msra.mxu0 %v2982
        %3012 = vmatpush.bf16.msra.mxu0 %v2981
        %3013 = vmatpush.bf16.msra.mxu0 %v2980
        %3014 = vmatpush.bf16.msra.mxu0 %v2979
        %3015 = vmatpush.bf16.msra.mxu0 %v2978
        %3016 = vmatpush.bf16.msra.mxu0 %v2977
        %3017 = vmatmul.bf16.gmra.mxu0 %v2879
        %v3018 = vpop.f32.mrf.mxu0
        %v3019 = vadd.f32 0.0, %v3018
        %v3020 = vpop.f32.mrf.mxu0
        %v3021 = vadd.f32 0.0, %v3020
        %3022 = vdwg.mxu0
        %3023 = vmatpush.bf16.msra.mxu0 %v2992
        %3024 = vmatpush.bf16.msra.mxu0 %v2991
        %3025 = vmatpush.bf16.msra.mxu0 %v2990
        %3026 = vmatpush.bf16.msra.mxu0 %v2989
        %3027 = vmatpush.bf16.msra.mxu0 %v2988
        %3028 = vmatpush.bf16.msra.mxu0 %v2987
        %3029 = vmatpush.bf16.msra.mxu0 %v2986
        %3030 = vmatpush.bf16.msra.mxu0 %v2985
        %3031 = vmatmul.bf16.gmra.mxu0 %v2880
        %v3032 = vpop.f32.mrf.mxu0
        %v3033 = vadd.f32 %v3019, %v3032
        %v3034 = vpop.f32.mrf.mxu0
        %v3035 = vadd.f32 %v3021, %v3034
        %3036 = vdwg.mxu0
        %v3037 = vadd.f32 %v2603, %v3033
        %v3038 = vadd.f32 %v2604, %v3035
        %v3039 = vld [vmem:[%s1031] sm:$0x1]
        %v3041 = vperm.slane %v3039, 0
        %v3043 = vadd.f32 %v3037, %v3041
        %v3044 = vadd.f32 %v3038, %v3041
        %3045 = vst [vmem:[#allocation2] sm:$0xff] %v3043
        %3046 = vst [vmem:[#allocation2 + $0x8] sm:$0xff] %v3044
        %p3047 = scmp.eq.s32.totalorder %s43, 1
        // Predicated region
        $region129: #{model_forward.1} parent=111 // pred_check
          %p3048 = pneg %p3047
        $region130: #{model_forward.1} parent=111 // pred_check_branch
          %3050 = sbr.rel (%p3048) target = $region132
        $region131: #{model_forward.1} parent=111 // pred_region
          %v3051 = vpack.c.bf16 %v3043, %v3043
          %v3052 = vpack.c.bf16 %v3044, %v3044
          %v3053 = vld [vmem:[%s21] sm:$0xf]
          %v3054 = vld [vmem:[%s21 + $0x4] sm:$0xf]
          %v3055 = vld [vmem:[%s21 + $0x8] sm:$0xf]
          %v3056 = vld [vmem:[%s21 + $0xc] sm:$0xf]
          %v3057 = vld [vmem:[%s21 + $0x10] sm:$0xf]
          %v3058 = vld [vmem:[%s21 + $0x14] sm:$0xf]
          %v3059 = vld [vmem:[%s21 + $0x18] sm:$0xf]
          %v3060 = vld [vmem:[%s21 + $0x1c] sm:$0xf]
          %v3061 = vld [vmem:[%s21 + $0x20] sm:$0xf]
          %v3062 = vld [vmem:[%s21 + $0x24] sm:$0xf]
          %v3063 = vld [vmem:[%s21 + $0x28] sm:$0xf]
          %v3064 = vld [vmem:[%s21 + $0x2c] sm:$0xf]
          %v3065 = vld [vmem:[%s21 + $0x30] sm:$0xf]
          %v3066 = vld [vmem:[%s21 + $0x34] sm:$0xf]
          %v3067 = vld [vmem:[%s21 + $0x38] sm:$0xf]
          %v3068 = vld [vmem:[%s21 + $0x3c] sm:$0xf]
          %v3069 = vld [vmem:[#allocation8] sm:$0x1]
          %v3071 = vperm.slane %v3069, 0
          %v3075 = vunpack.c.l.b16 %v3051
          %v3076 = vunpack.c.l.b16 %v3052
          %v3077 = vrot.slane %v3076, 7
          %v3078 = vsel %vm2660, %v3077, %v3075
          %v3079 = vpack.c.b16 %v3078, %v3078
          %v3097 = vunpack.c.l.b16 %v3053
          %v3098 = vunpack.c.l.b16 %v3054
          %v3099 = vunpack.c.l.b16 %v3055
          %v3100 = vunpack.c.l.b16 %v3056
          %v3101 = vunpack.c.l.b16 %v3057
          %v3102 = vunpack.c.l.b16 %v3058
          %v3103 = vunpack.c.l.b16 %v3059
          %v3104 = vunpack.c.l.b16 %v3060
          %v3105 = vunpack.c.l.b16 %v3061
          %v3106 = vunpack.c.l.b16 %v3062
          %v3107 = vunpack.c.l.b16 %v3063
          %v3108 = vunpack.c.l.b16 %v3064
          %v3109 = vunpack.c.l.b16 %v3065
          %v3110 = vunpack.c.l.b16 %v3066
          %v3111 = vunpack.c.l.b16 %v3067
          %v3112 = vunpack.c.l.b16 %v3068
          %v3113 = vpack.c.b16 %v3098, %v3097
          %v3114 = vpack.c.b16 %v3100, %v3099
          %v3115 = vpack.c.b16 %v3102, %v3101
          %v3116 = vpack.c.b16 %v3104, %v3103
          %v3117 = vpack.c.b16 %v3106, %v3105
          %v3118 = vpack.c.b16 %v3108, %v3107
          %v3119 = vpack.c.b16 %v3110, %v3109
          %v3120 = vpack.c.b16 %v3112, %v3111
          %3129 = vmatpush.bf16.msra.mxu0 %v3120
          %3130 = vmatpush.bf16.msra.mxu0 %v3119
          %3131 = vmatpush.bf16.msra.mxu0 %v3118
          %3132 = vmatpush.bf16.msra.mxu0 %v3117
          %3133 = vmatpush.bf16.msra.mxu0 %v3116
          %3134 = vmatpush.bf16.msra.mxu0 %v3115
          %3135 = vmatpush.bf16.msra.mxu0 %v3114
          %3136 = vmatpush.bf16.msra.mxu0 %v3113
          %3137 = vmatmul.bf16.gmra.mxu0 %v3079
          %v3138 = vpop.f32.mrf.mxu0
          %v3139 = vadd.f32 %v3071, %v3138
          %v3140 = vpop.f32.mrf.mxu0
          %3141 = vdwg.mxu0
          %3142 = vst [vmem:[#allocation9] sm:$0x3] %v3139
        $region132: #{model_forward.1} parent=111 // pred_fallthru
          _
        %p3143 = scmp.lt.s32.totalorder %s43, 1
        %s3144 = scalar_select %p3143, %s43, 1
        %s3145 = smul.addr %s3144, 2
        %s3146 = scalar_lea.vmem %s24, %s3145
        // Predicated region
        $region133: #{model_forward.1} parent=111 // pred_check
          %p3147 = pneg %p619
        $region134: #{model_forward.1} parent=111 // pred_check_branch
          %3149 = sbr.rel (%p3147) target = $region136
        $region135: #{model_forward.1} parent=111 // pred_region
          %3151 = vsyncadd [#allocation5], 0
          %s3153 = sshll.u32 [#allocation9], 4
          %s3154 = int_to_ptr.vmem [resolvable:$true] %s3153
          %s3155 = sshll.u32 %s23, 4
          %s3156 = int_to_ptr.hbm [resolvable:$true] %s3155
          %3158 = dma.vmem_to_hbm [thread:$0]  %s3154, 32, %s3156, [#allocation5]
        $region136: #{model_forward.1} parent=111 // pred_fallthru
          _
        // Predicated region
        $region137: #{model_forward.1} parent=111 // pred_check
          %p3159 = pneg %p645
        $region138: #{model_forward.1} parent=111 // pred_check_branch
          %3161 = sbr.rel (%p3159) target = $region140
        $region139: #{model_forward.1} parent=111 // pred_region
          _
        $region140: #{model_forward.1} parent=111 // pred_fallthru
          _
        // Predicated region
        $region141: #{model_forward.1} parent=111 // pred_check
          %p3162 = pneg %p619
        $region142: #{model_forward.1} parent=111 // pred_check_branch
          %3164 = sbr.rel (%p3162) target = $region144
        $region143: #{model_forward.1} parent=111 // pred_region
          %3166 = dma.done [#allocation5], 32
        $region144: #{model_forward.1} parent=111 // pred_fallthru
          _
      $region112: #{model_forward.1} parent=5 // pred_fallthru
        _
      %p3167 = scmp.le.s32.totalorder 2, %s38
      // Predicated region
      $region145: #{model_forward.1} parent=5 // pred_check
        %p3168 = pneg %p3167
      $region146: #{model_forward.1} parent=5 // pred_check_branch
        %3170 = sbr.rel (%p3168) target = $region148
      $region147: #{model_forward.1} parent=5 // pred_region
        %s3171 = ssub.s32 %s38, 2
        // Predicated region
        $region149: #{model_forward.1} parent=147 // pred_check
          %p3172 = pneg %p651
        $region150: #{model_forward.1} parent=147 // pred_check_branch
          %3174 = sbr.rel (%p3172) target = $region152
        $region151: #{model_forward.1} parent=147 // pred_region
          %p3175 = scmp.lt.s32.totalorder %s44, 1
          %s3176 = scalar_select %p3175, %s44, 1
          %s3177 = smul.addr %s3176, 2
          %s3178 = scalar_lea.vmem %s24, %s3177
        $region152: #{model_forward.1} parent=147 // pred_fallthru
          _
      $region148: #{model_forward.1} parent=5 // pred_fallthru
        _
    $region6: #{model_forward.1} parent=1 // loop_footer
      %s42 = sadd.s32 1, %s38
    $region7: #{model_forward.1} parent=1 // loop_footer_branch
      %37 = sbr.rel target = $region3
    $region8: #{model_forward.1} parent=1 // loop_exit
      _
    %3179 = vsyncpa [#allocation4], 1
    %s3180 = scalar_lea.sflag [#allocation4], 1
    %3181 = vsyncpa %s3180, 1
    %3182 = vsyncpa [#allocation7], 1
    %s3183 = scalar_lea.sflag [#allocation7], 1
    %3184 = vsyncpa %s3183, 1
    %3185 = vsyncpa [#allocation5], 1
    %s3186 = scalar_lea.sflag [#allocation5], 1
    %3187 = vsyncpa %s3186, 1

</llo_original>
